<compile_context>
chip_gen: v7x
topology: tpu7x:2x2x1
jax: 0.10.0
libtpu: 0.0.40
codegen_flags: <defaults>
</compile_context>

<pallas_src>
import functools
import math

import jax
import jax.numpy as jnp
from jax.experimental import pallas as pl
from jax.experimental.pallas import tpu as pltpu


def _mlp_kernel(x_ref, w1_ref, b1_ref, kw_ref, kb_ref, w2_ref, b2_ref, o_ref,
                *, H, W, TILE_H, mm_dtype):
    """One (batch, row-tile) grid step: fused fc1(+halo) -> dwconv 3x3 -> GELU -> fc2."""
    t = pl.program_id(1)
    n_tiles = pl.num_programs(1)
    hid = w1_ref.shape[1]
    tile_n = TILE_H * W
    L = (TILE_H + 2) * W

    r0 = t * TILE_H                                        # first image row of tile
    tok0 = pl.multiple_of(r0 * W, tile_n)                  # first token of tile
    top_start = pl.multiple_of(jnp.maximum(r0 - 1, 0) * W, W)
    bot_start = pl.multiple_of(jnp.minimum(r0 + TILE_H, H - 1) * W, W)

    # ---- haloed x slab, assembled on the narrow (Cin-wide) side --------------
    # Concatenating here is ~hid/Cin times cheaper than concatenating fc1 outputs.
    x_ext = jnp.concatenate(
        [x_ref[pl.ds(top_start, W), :],
         x_ref[pl.ds(tok0, tile_n), :],
         x_ref[pl.ds(bot_start, W), :]], axis=0).astype(mm_dtype)      # (L, Cin)

    # ---- single fused fc1 matmul (MXU: bf16 in, f32 accumulate) --------------
    h_ext = jnp.dot(x_ext, w1_ref[...],
                    preferred_element_type=jnp.float32) + b1_ref[...]  # (L, hid)

    # Zero the halo rows that fall outside the image: exactly reproduces the
    # conv's SAME zero padding (including the fc1 bias on those rows).
    row = jax.lax.broadcasted_iota(jnp.int32, (L, 1), 0)
    valid = ((row >= W) | (t > 0)) & ((row < L - W) | (t + 1 < n_tiles))
    h_ext = jnp.where(valid, h_ext, 0.0)

    # ---- depthwise 3x3 conv ---------------------------------------------------
    # Column (+/-1) shifts via XLU roll + lane/column boundary mask.  One
    # variant is materialized at a time (dj outer) and consumed immediately.
    col = jax.lax.broadcasted_iota(jnp.int32, (L, 1), 0) % W
    kw = kw_ref[...]                                       # (9, hid) f32, index di*3+dj

    # dj = 1 (center column): no shift.  Fold the center tap + conv bias into
    # the accumulator init (saves a zeros-init and one full-tile add).
    acc = h_ext[W:W + tile_n] * kw[4] + kb_ref[...]
    acc = acc + h_ext[0:tile_n] * kw[1]
    acc = acc + h_ext[2 * W:2 * W + tile_n] * kw[7]

    # dj = 0 (column offset -1): in[., w-1]
    v = jnp.where(col >= 1, pltpu.roll(h_ext, shift=1, axis=0), 0.0)
    acc = acc + v[0:tile_n] * kw[0]
    acc = acc + v[W:W + tile_n] * kw[3]
    acc = acc + v[2 * W:2 * W + tile_n] * kw[6]

    # dj = 2 (column offset +1): in[., w+1]
    v = jnp.where(col < W - 1, pltpu.roll(h_ext, shift=L - 1, axis=0), 0.0)
    acc = acc + v[0:tile_n] * kw[2]
    acc = acc + v[W:W + tile_n] * kw[5]
    acc = acc + v[2 * W:2 * W + tile_n] * kw[8]

    # ---- GELU (tanh approximation -> EUP slot; tiny deviation vs exact erf) --
    act = jax.nn.gelu(acc, approximate=True)

    # ---- fc2 (MXU: bf16 in, f32 accumulate); dropout p=0 is the identity -----
    out = jnp.dot(act.astype(mm_dtype), w2_ref[...],
                  preferred_element_type=jnp.float32) + b2_ref[...]
    o_ref[...] = out.astype(o_ref.dtype)


def _round_up(v, m):
    return (v + m - 1) // m * m


def _vmem_capacity_bytes():
    try:
        return int(pltpu.get_tpu_info().vmem_capacity_bytes)
    except Exception:
        return 128 * 1024 * 1024   # conservative default (v5e/v6e size)


def _pick_tile_h(H, W, hid, budget_bytes):
    """Largest row tile whose haloed f32 hidden tile fits the budget.

    Prefers token tiles (tile_h * W) that are multiples of 256 (then 128) for
    clean MXU M shapes, then >= 2 tiles (so the tile axis can shard across
    TensorCores even when B is small), then the largest tile.
    """
    row_bytes = W * hid * 4
    divisors = [d for d in range(1, H + 1) if H % d == 0]
    valid = [d for d in divisors if (d * W) % 8 == 0 or d == H]
    fits = [d for d in valid if (d + 2) * row_bytes <= budget_bytes]
    if not fits:
        return min(valid)

    def score(d):
        tn = d * W
        align = 2 if tn % 256 == 0 else (1 if tn % 128 == 0 else 0)
        multi = 1 if d < H else 0
        return (align, multi, d)

    return max(fits, key=score)


def mlp_pallas(x, params, H, W, *, tile_h=None, mm_dtype=jnp.bfloat16):
    """x: (B, N, C_in) float32 with N = H*W.  Returns (B, N, C_out)."""
    B, N, Cin = x.shape
    assert N == H * W
    w1, b1, kw, kb, w2, b2 = (params[k] for k in ("w1", "b1", "kw", "kb", "w2", "b2"))
    hid = w1.shape[1]
    Cout = w2.shape[1]

    # Pad hidden dim to a lane-dense multiple of 128.  Exact: padded hidden
    # channels stay identically zero through fc1/conv/GELU and hit zero rows
    # of w2, so the output is the same computation.
    hid_p = _round_up(hid, 128)
    if hid_p != hid:
        p = hid_p - hid
        w1 = jnp.pad(w1, ((0, 0), (0, p)))
        b1 = jnp.pad(b1, ((0, 0), (0, p)))
        kw = jnp.pad(kw, ((0, 0), (0, p)))
        kb = jnp.pad(kb, ((0, 0), (0, p)))
        w2 = jnp.pad(w2, ((0, p), (0, 0)))

    # Lane-pad Cout when it is not tiny (keeps the fc2 writeback lane-dense);
    # for small Cout the extra output HBM bytes would negate the win.
    Cout_p = Cout
    if Cout % 128 != 0 and Cout >= 64:
        Cout_p = _round_up(Cout, 128)
        w2 = jnp.pad(w2, ((0, 0), (0, Cout_p - Cout)))
        b2 = jnp.pad(b2, ((0, 0), (0, Cout_p - Cout)))

    # bf16 weights in HBM (full-rate MXU, half the weight DMA); biases/taps f32.
    w1 = w1.astype(mm_dtype)
    w2 = w2.astype(mm_dtype)
    b1 = b1.astype(jnp.float32)
    b2 = b2.astype(jnp.float32)
    kw = kw.astype(jnp.float32)
    kb = kb.astype(jnp.float32)

    vmem_cap = _vmem_capacity_bytes()
    if tile_h is None:
        tile_h = _pick_tile_h(H, W, hid_p, budget_bytes=vmem_cap // 16)
    assert H % tile_h == 0
    n_tiles = H // tile_h
    tile_n = tile_h * W

    kernel = functools.partial(_mlp_kernel, H=H, W=W, TILE_H=tile_h,
                               mm_dtype=mm_dtype)

    # --- VMEM budget: double-buffered blocks + in-kernel tile intermediates ---
    itemsize = x.dtype.itemsize
    tile_bytes = (tile_h + 2) * W * hid_p * 4
    weight_bytes = sum(a.size * a.dtype.itemsize for a in (w1, b1, kw, kb, w2, b2))
    est = (2 * N * Cin * itemsize            # resident-per-batch x block (2 bufs)
           + 2 * tile_n * Cout_p * itemsize  # output tile (2 bufs)
           + 2 * weight_bytes                # weight blocks (double-buffered)
           + 6 * tile_bytes)                 # h_ext / variant / acc / act live tiles
    vmem_limit = int(min(int(0.75 * vmem_cap), max(32 * 1024 * 1024, 2 * est)))

    cost = pl.CostEstimate(
        flops=int(2 * B * (N + 2 * W * n_tiles) * Cin * hid_p
                  + 18 * B * N * hid_p
                  + 2 * B * N * hid_p * Cout_p),
        transcendentals=int(B * N * hid_p),
        bytes_accessed=int(x.size * itemsize + B * N * Cout_p * itemsize
                           + weight_bytes))

    out = pl.pallas_call(
        kernel,
        out_shape=jax.ShapeDtypeStruct((B, N, Cout_p), x.dtype),
        grid_spec=pltpu.PrefetchScalarGridSpec(
            num_scalar_prefetch=0,
            grid=(B, n_tiles),
            in_specs=[
                # x: full (N, Cin) resident per batch element (re-fetched only
                # when b changes); squeezed batch dim -> 2-D ref in the kernel.
                pl.BlockSpec((None, N, Cin), lambda b, t: (b, 0, 0)),
                pl.BlockSpec((Cin, hid_p), lambda b, t: (0, 0)),    # w1 (bf16)
                pl.BlockSpec((1, hid_p), lambda b, t: (0, 0)),      # b1
                pl.BlockSpec((9, hid_p), lambda b, t: (0, 0)),      # dwconv weight
                pl.BlockSpec((1, hid_p), lambda b, t: (0, 0)),      # dwconv bias
                pl.BlockSpec((hid_p, Cout_p), lambda b, t: (0, 0)), # w2 (bf16)
                pl.BlockSpec((1, Cout_p), lambda b, t: (0, 0)),     # b2
            ],
            out_specs=pl.BlockSpec((None, tile_n, Cout_p), lambda b, t: (b, t, 0)),
        ),
        compiler_params=pltpu.CompilerParams(
            dimension_semantics=("parallel", "parallel"),
            vmem_limit_bytes=vmem_limit),
        cost_estimate=cost,
    )(x, w1, b1, kw, kb, w2, b2)

    if Cout_p != Cout:
        out = out[..., :Cout]
    return out


def make_params(key, in_features, hidden_features, out_features):
    """Deterministic synthetic params mirroring Mlp._init_weights shapes."""
    k1, k2, k3 = jax.random.split(key, 3)
    w1 = jax.random.normal(k1, (in_features, hidden_features), jnp.float32) * 0.02
    b1 = jnp.zeros((1, hidden_features), jnp.float32)
    w2 = jax.random.normal(k2, (hidden_features, out_features), jnp.float32) * 0.02
    b2 = jnp.zeros((1, out_features), jnp.float32)
    # Depthwise Conv2d(hid, hid, 3, groups=hid): weight (hid, 1, 3, 3),
    # init N(0, sqrt(2/fan_out)), fan_out = 9. Stored here as (9, hid).
    fan_out = 9
    kw = (jax.random.normal(k3, (9, hidden_features), jnp.float32)
          * math.sqrt(2.0 / fan_out))
    kb = jnp.zeros((1, hidden_features), jnp.float32)
    return dict(w1=w1, b1=b1, kw=kw, kb=kb, w2=w2, b2=b2)


def mlp_reference(x, params, H, W):
    """Pure-JAX (f32, exact-erf GELU) reference of the PyTorch forward."""
    B, N, Cin = x.shape
    hid = params["w1"].shape[1]
    h = x @ params["w1"] + params["b1"]                    # (B, N, hid)
    img = h.reshape(B, H, W, hid)                          # NHWC
    kern = params["kw"].reshape(3, 3, 1, hid)              # HWIO, groups=hid
    conv = jax.lax.conv_general_dilated(
        img, kern, window_strides=(1, 1), padding="SAME",
        dimension_numbers=("NHWC", "HWIO", "NHWC"),
        feature_group_count=hid) + params["kb"]
    act = jax.nn.gelu(conv, approximate=False)
    h2 = act.reshape(B, N, hid)
    return h2 @ params["w2"] + params["b2"]


if __name__ == "__main__":
    B, H, W = 2, 16, 16
    N = H * W
    in_features, hidden_features, out_features = 16, 32, 16

    key = jax.random.PRNGKey(0)
    kx, kp = jax.random.split(key)
    x = jax.random.normal(kx, (B, N, in_features), jnp.float32)
    params = make_params(kp, in_features, hidden_features, out_features)

    ref = mlp_reference(x, params, H, W)

    # Auto-tiled run.
    out = jax.block_until_ready(mlp_pallas(x, params, H, W))
    assert out.shape == (B, N, out_features)
    # bf16 MXU operands (f32 accumulate) + tanh GELU => slightly looser
    # tolerance vs the pure-f32 exact-erf reference.
    max_err = float(jnp.max(jnp.abs(out - ref)))
    assert jnp.allclose(out, ref, atol=3e-3, rtol=2e-2), (
        f"mismatch vs reference: max abs err = {max_err:.3e}")

    # Explicit multi-tile run (exercises the interior-halo path at 0 < t < last).
    out2 = jax.block_until_ready(mlp_pallas(x, params, H, W, tile_h=4))
    max_err2 = float(jnp.max(jnp.abs(out2 - ref)))
    assert jnp.allclose(out2, ref, atol=3e-3, rtol=2e-2), (
        f"multi-tile mismatch vs reference: max abs err = {max_err2:.3e}")

    print("KERNEL_OK")
</pallas_src>

<mosaic_0001>
module attributes {stable_mosaic.version = 11 : i64} {
  func.func @_mlp_kernel(%arg0: i32, %arg1: i32, %arg2: memref<1x256x16xf32, #tpu.memory_space<vmem>>, %arg3: memref<16x128xbf16, #tpu.memory_space<vmem>>, %arg4: memref<1x128xf32, #tpu.memory_space<vmem>>, %arg5: memref<9x128xf32, #tpu.memory_space<vmem>>, %arg6: memref<1x128xf32, #tpu.memory_space<vmem>>, %arg7: memref<128x16xbf16, #tpu.memory_space<vmem>>, %arg8: memref<1x16xf32, #tpu.memory_space<vmem>>, %arg9: memref<1x256x16xf32, #tpu.memory_space<vmem>>) attributes {dimension_semantics = [#tpu.dimension_semantics<parallel>, #tpu.dimension_semantics<parallel>], iteration_bounds = array<i64: 2, 1>, scalar_prefetch = 0 : i64, scratch_operands = 0 : i64, tpu.core_type = #tpu.core_type<tc>, window_params = [{transform_indices = @transform_0, window_bounds = array<i64: 1, 256, 16>}, {pipeline_mode = #tpu.pipeline_mode<synchronous>, transform_indices = @transform_1, window_bounds = array<i64: 16, 128>}, {pipeline_mode = #tpu.pipeline_mode<synchronous>, transform_indices = @transform_2, window_bounds = array<i64: 1, 128>}, {pipeline_mode = #tpu.pipeline_mode<synchronous>, transform_indices = @transform_3, window_bounds = array<i64: 9, 128>}, {pipeline_mode = #tpu.pipeline_mode<synchronous>, transform_indices = @transform_4, window_bounds = array<i64: 1, 128>}, {pipeline_mode = #tpu.pipeline_mode<synchronous>, transform_indices = @transform_5, window_bounds = array<i64: 128, 16>}, {pipeline_mode = #tpu.pipeline_mode<synchronous>, transform_indices = @transform_6, window_bounds = array<i64: 1, 16>}, {transform_indices = @transform_7, window_bounds = array<i64: 1, 256, 16>}]} {
    %c16_i32 = arith.constant 16 : i32
    %0 = arith.muli %arg1, %c16_i32 : i32
    %c16_i32_0 = arith.constant 16 : i32
    %1 = arith.muli %0, %c16_i32_0 : i32
    %2 = tpu.assume_multiple %1, 256 : i32
    %c1_i32 = arith.constant 1 : i32
    %3 = arith.subi %0, %c1_i32 : i32
    %c0_i32 = arith.constant 0 : i32
    %4 = arith.maxsi %3, %c0_i32 : i32
    %c16_i32_1 = arith.constant 16 : i32
    %5 = arith.muli %4, %c16_i32_1 : i32
    %6 = tpu.assume_multiple %5, 16 : i32
    %c16_i32_2 = arith.constant 16 : i32
    %7 = arith.addi %0, %c16_i32_2 : i32
    %c15_i32 = arith.constant 15 : i32
    %8 = arith.minsi %7, %c15_i32 : i32
    %c16_i32_3 = arith.constant 16 : i32
    %9 = arith.muli %8, %c16_i32_3 : i32
    %10 = tpu.assume_multiple %9, 16 : i32
    %c0 = arith.constant 0 : index
    %11 = arith.index_cast %6 : i32 to index
    %c0_4 = arith.constant 0 : index
    %12 = vector.load %arg2[%c0, %11, %c0_4] : memref<1x256x16xf32, #tpu.memory_space<vmem>>, vector<1x16x16xf32>
    %13 = vector.shape_cast %12 : vector<1x16x16xf32> to vector<16x16xf32>
    %c0_5 = arith.constant 0 : index
    %14 = arith.index_cast %2 : i32 to index
    %c0_6 = arith.constant 0 : index
    %15 = vector.load %arg2[%c0_5, %14, %c0_6] : memref<1x256x16xf32, #tpu.memory_space<vmem>>, vector<1x256x16xf32>
    %16 = vector.shape_cast %15 : vector<1x256x16xf32> to vector<256x16xf32>
    %c0_7 = arith.constant 0 : index
    %17 = arith.index_cast %10 : i32 to index
    %c0_8 = arith.constant 0 : index
    %18 = vector.load %arg2[%c0_7, %17, %c0_8] : memref<1x256x16xf32, #tpu.memory_space<vmem>>, vector<1x16x16xf32>
    %19 = vector.shape_cast %18 : vector<1x16x16xf32> to vector<16x16xf32>
    %20 = tpu.concatenate %13, %16, %19 in 0 : vector<16x16xf32>, vector<256x16xf32>, vector<16x16xf32> -> vector<288x16xf32>
    %21 = arith.truncf %20 : vector<288x16xf32> to vector<288x16xbf16>
    %c0_9 = arith.constant 0 : index
    %c0_10 = arith.constant 0 : index
    %22 = vector.load %arg3[%c0_9, %c0_10] : memref<16x128xbf16, #tpu.memory_space<vmem>>, vector<16x128xbf16>
    %cst = arith.constant dense<0.000000e+00> : vector<288x128xf32>
    %23 = tpu.matmul %21, %22, %cst {dimension_numbers = #tpu.dot_dimension_numbers<[1], [0], [0], [1], [0, 0, 1, 1], [], []>} : vector<288x16xbf16>, vector<16x128xbf16>, vector<288x128xf32> -> vector<288x128xf32>
    %c0_11 = arith.constant 0 : index
    %c0_12 = arith.constant 0 : index
    %24 = vector.load %arg4[%c0_11, %c0_12] : memref<1x128xf32, #tpu.memory_space<vmem>>, vector<1x128xf32>
    %25 = vector.broadcast %24 : vector<1x128xf32> to vector<288x128xf32>
    %26 = arith.addf %23, %25 : vector<288x128xf32>
    %27 = tpu.iota {dimensions = array<i32: 0>} : vector<288x1xi32>
    %c16_i32_13 = arith.constant 16 : i32
    %28 = vector.broadcast %c16_i32_13 : i32 to vector<288x1xi32>
    %29 = arith.cmpi sge, %27, %28 : vector<288x1xi32>
    %c0_i32_14 = arith.constant 0 : i32
    %30 = arith.cmpi sgt, %arg1, %c0_i32_14 : i32
    %31 = vector.broadcast %30 : i1 to vector<288x1xi1>
    %32 = arith.ori %29, %31 : vector<288x1xi1>
    %c272_i32 = arith.constant 272 : i32
    %33 = vector.broadcast %c272_i32 : i32 to vector<288x1xi32>
    %34 = arith.cmpi slt, %27, %33 : vector<288x1xi32>
    %c1_i32_15 = arith.constant 1 : i32
    %35 = arith.addi %arg1, %c1_i32_15 : i32
    %c1_i32_16 = arith.constant 1 : i32
    %36 = arith.cmpi slt, %35, %c1_i32_16 : i32
    %37 = vector.broadcast %36 : i1 to vector<288x1xi1>
    %38 = arith.ori %34, %37 : vector<288x1xi1>
    %39 = arith.andi %32, %38 : vector<288x1xi1>
    %cst_17 = arith.constant 0.000000e+00 : f32
    %40 = vector.shape_cast %39 : vector<288x1xi1> to vector<288x1xi1>
    %41 = vector.broadcast %40 : vector<288x1xi1> to vector<288x128xi1>
    %42 = vector.broadcast %cst_17 : f32 to vector<288x128xf32>
    %43 = arith.select %41, %26, %42 : vector<288x128xi1>, vector<288x128xf32>
    %44 = tpu.iota {dimensions = array<i32: 0>} : vector<288x1xi32>
    %c16_i32_18 = arith.constant 16 : i32
    %c0_i32_19 = arith.constant 0 : i32
    %45 = arith.cmpi eq, %c16_i32_18, %c0_i32_19 : i32
    %c1_i32_20 = arith.constant 1 : i32
    %46 = arith.select %45, %c1_i32_20, %c16_i32_18 : i32
    %47 = vector.broadcast %46 : i32 to vector<288x1xi32>
    %48 = arith.remsi %44, %47 : vector<288x1xi32>
    %c0_i32_21 = arith.constant 0 : i32
    %49 = vector.broadcast %c0_i32_21 : i32 to vector<288x1xi32>
    %50 = arith.cmpi ne, %48, %49 : vector<288x1xi32>
    %c0_i32_22 = arith.constant 0 : i32
    %51 = vector.broadcast %c0_i32_22 : i32 to vector<288x1xi32>
    %52 = arith.cmpi slt, %48, %51 : vector<288x1xi32>
    %c0_i32_23 = arith.constant 0 : i32
    %53 = arith.cmpi slt, %46, %c0_i32_23 : i32
    %54 = vector.broadcast %53 : i1 to vector<288x1xi1>
    %55 = vector.broadcast %54 : vector<288x1xi1> to vector<288x1xi1>
    %56 = arith.xori %52, %55 : vector<288x1xi1>
    %57 = arith.andi %56, %50 : vector<288x1xi1>
    %58 = vector.broadcast %46 : i32 to vector<288x1xi32>
    %59 = arith.addi %48, %58 : vector<288x1xi32>
    %60 = arith.select %57, %59, %48 : vector<288x1xi1>, vector<288x1xi32>
    %c0_24 = arith.constant 0 : index
    %c0_25 = arith.constant 0 : index
    %61 = vector.load %arg5[%c0_24, %c0_25] : memref<9x128xf32, #tpu.memory_space<vmem>>, vector<9x128xf32>
    %62 = vector.extract_strided_slice %43 {offsets = [16, 0], sizes = [256, 128], strides = [1, 1]} : vector<288x128xf32> to vector<256x128xf32>
    %63 = vector.extract_strided_slice %61 {offsets = [4, 0], sizes = [1, 128], strides = [1, 1]} : vector<9x128xf32> to vector<1x128xf32>
    %64 = vector.shape_cast %63 : vector<1x128xf32> to vector<128xf32>
    %65 = vector.shape_cast %64 : vector<128xf32> to vector<1x128xf32>
    %66 = vector.broadcast %65 : vector<1x128xf32> to vector<256x128xf32>
    %67 = arith.mulf %62, %66 : vector<256x128xf32>
    %c0_26 = arith.constant 0 : index
    %c0_27 = arith.constant 0 : index
    %68 = vector.load %arg6[%c0_26, %c0_27] : memref<1x128xf32, #tpu.memory_space<vmem>>, vector<1x128xf32>
    %69 = vector.broadcast %68 : vector<1x128xf32> to vector<256x128xf32>
    %70 = arith.addf %67, %69 : vector<256x128xf32>
    %71 = vector.extract_strided_slice %43 {offsets = [0, 0], sizes = [256, 128], strides = [1, 1]} : vector<288x128xf32> to vector<256x128xf32>
    %72 = vector.extract_strided_slice %61 {offsets = [1, 0], sizes = [1, 128], strides = [1, 1]} : vector<9x128xf32> to vector<1x128xf32>
    %73 = vector.shape_cast %72 : vector<1x128xf32> to vector<128xf32>
    %74 = vector.shape_cast %73 : vector<128xf32> to vector<1x128xf32>
    %75 = vector.broadcast %74 : vector<1x128xf32> to vector<256x128xf32>
    %76 = arith.mulf %71, %75 : vector<256x128xf32>
    %77 = arith.addf %70, %76 : vector<256x128xf32>
    %78 = vector.extract_strided_slice %43 {offsets = [32, 0], sizes = [256, 128], strides = [1, 1]} : vector<288x128xf32> to vector<256x128xf32>
    %79 = vector.extract_strided_slice %61 {offsets = [7, 0], sizes = [1, 128], strides = [1, 1]} : vector<9x128xf32> to vector<1x128xf32>
    %80 = vector.shape_cast %79 : vector<1x128xf32> to vector<128xf32>
    %81 = vector.shape_cast %80 : vector<128xf32> to vector<1x128xf32>
    %82 = vector.broadcast %81 : vector<1x128xf32> to vector<256x128xf32>
    %83 = arith.mulf %78, %82 : vector<256x128xf32>
    %84 = arith.addf %77, %83 : vector<256x128xf32>
    %c1_i32_28 = arith.constant 1 : i32
    %85 = vector.broadcast %c1_i32_28 : i32 to vector<288x1xi32>
    %86 = arith.cmpi sge, %60, %85 : vector<288x1xi32>
    %c1_i32_29 = arith.constant 1 : i32
    %87 = tpu.dynamic_rotate %43 by %c1_i32_29 dim 0 : vector<288x128xf32>, i32 -> vector<288x128xf32>
    %cst_30 = arith.constant 0.000000e+00 : f32
    %88 = vector.shape_cast %86 : vector<288x1xi1> to vector<288x1xi1>
    %89 = vector.broadcast %88 : vector<288x1xi1> to vector<288x128xi1>
    %90 = vector.broadcast %cst_30 : f32 to vector<288x128xf32>
    %91 = arith.select %89, %87, %90 : vector<288x128xi1>, vector<288x128xf32>
    %92 = vector.extract_strided_slice %91 {offsets = [0, 0], sizes = [256, 128], strides = [1, 1]} : vector<288x128xf32> to vector<256x128xf32>
    %93 = vector.extract_strided_slice %61 {offsets = [0, 0], sizes = [1, 128], strides = [1, 1]} : vector<9x128xf32> to vector<1x128xf32>
    %94 = vector.shape_cast %93 : vector<1x128xf32> to vector<128xf32>
    %95 = vector.shape_cast %94 : vector<128xf32> to vector<1x128xf32>
    %96 = vector.broadcast %95 : vector<1x128xf32> to vector<256x128xf32>
    %97 = arith.mulf %92, %96 : vector<256x128xf32>
    %98 = arith.addf %84, %97 : vector<256x128xf32>
    %99 = vector.extract_strided_slice %91 {offsets = [16, 0], sizes = [256, 128], strides = [1, 1]} : vector<288x128xf32> to vector<256x128xf32>
    %100 = vector.extract_strided_slice %61 {offsets = [3, 0], sizes = [1, 128], strides = [1, 1]} : vector<9x128xf32> to vector<1x128xf32>
    %101 = vector.shape_cast %100 : vector<1x128xf32> to vector<128xf32>
    %102 = vector.shape_cast %101 : vector<128xf32> to vector<1x128xf32>
    %103 = vector.broadcast %102 : vector<1x128xf32> to vector<256x128xf32>
    %104 = arith.mulf %99, %103 : vector<256x128xf32>
    %105 = arith.addf %98, %104 : vector<256x128xf32>
    %106 = vector.extract_strided_slice %91 {offsets = [32, 0], sizes = [256, 128], strides = [1, 1]} : vector<288x128xf32> to vector<256x128xf32>
    %107 = vector.extract_strided_slice %61 {offsets = [6, 0], sizes = [1, 128], strides = [1, 1]} : vector<9x128xf32> to vector<1x128xf32>
    %108 = vector.shape_cast %107 : vector<1x128xf32> to vector<128xf32>
    %109 = vector.shape_cast %108 : vector<128xf32> to vector<1x128xf32>
    %110 = vector.broadcast %109 : vector<1x128xf32> to vector<256x128xf32>
    %111 = arith.mulf %106, %110 : vector<256x128xf32>
    %112 = arith.addf %105, %111 : vector<256x128xf32>
    %c15_i32_31 = arith.constant 15 : i32
    %113 = vector.broadcast %c15_i32_31 : i32 to vector<288x1xi32>
    %114 = arith.cmpi slt, %60, %113 : vector<288x1xi32>
    %c287_i32 = arith.constant 287 : i32
    %115 = tpu.dynamic_rotate %43 by %c287_i32 dim 0 : vector<288x128xf32>, i32 -> vector<288x128xf32>
    %cst_32 = arith.constant 0.000000e+00 : f32
    %116 = vector.shape_cast %114 : vector<288x1xi1> to vector<288x1xi1>
    %117 = vector.broadcast %116 : vector<288x1xi1> to vector<288x128xi1>
    %118 = vector.broadcast %cst_32 : f32 to vector<288x128xf32>
    %119 = arith.select %117, %115, %118 : vector<288x128xi1>, vector<288x128xf32>
    %120 = vector.extract_strided_slice %119 {offsets = [0, 0], sizes = [256, 128], strides = [1, 1]} : vector<288x128xf32> to vector<256x128xf32>
    %121 = vector.extract_strided_slice %61 {offsets = [2, 0], sizes = [1, 128], strides = [1, 1]} : vector<9x128xf32> to vector<1x128xf32>
    %122 = vector.shape_cast %121 : vector<1x128xf32> to vector<128xf32>
    %123 = vector.shape_cast %122 : vector<128xf32> to vector<1x128xf32>
    %124 = vector.broadcast %123 : vector<1x128xf32> to vector<256x128xf32>
    %125 = arith.mulf %120, %124 : vector<256x128xf32>
    %126 = arith.addf %112, %125 : vector<256x128xf32>
    %127 = vector.extract_strided_slice %119 {offsets = [16, 0], sizes = [256, 128], strides = [1, 1]} : vector<288x128xf32> to vector<256x128xf32>
    %128 = vector.extract_strided_slice %61 {offsets = [5, 0], sizes = [1, 128], strides = [1, 1]} : vector<9x128xf32> to vector<1x128xf32>
    %129 = vector.shape_cast %128 : vector<1x128xf32> to vector<128xf32>
    %130 = vector.shape_cast %129 : vector<128xf32> to vector<1x128xf32>
    %131 = vector.broadcast %130 : vector<1x128xf32> to vector<256x128xf32>
    %132 = arith.mulf %127, %131 : vector<256x128xf32>
    %133 = arith.addf %126, %132 : vector<256x128xf32>
    %134 = vector.extract_strided_slice %119 {offsets = [32, 0], sizes = [256, 128], strides = [1, 1]} : vector<288x128xf32> to vector<256x128xf32>
    %135 = vector.extract_strided_slice %61 {offsets = [8, 0], sizes = [1, 128], strides = [1, 1]} : vector<9x128xf32> to vector<1x128xf32>
    %136 = vector.shape_cast %135 : vector<1x128xf32> to vector<128xf32>
    %137 = vector.shape_cast %136 : vector<128xf32> to vector<1x128xf32>
    %138 = vector.broadcast %137 : vector<1x128xf32> to vector<256x128xf32>
    %139 = arith.mulf %134, %138 : vector<256x128xf32>
    %140 = arith.addf %133, %139 : vector<256x128xf32>
    %141 = arith.mulf %140, %140 : vector<256x128xf32>
    %142 = arith.mulf %140, %141 : vector<256x128xf32>
    %cst_33 = arith.constant 4.471500e-02 : f32
    %143 = vector.broadcast %cst_33 : f32 to vector<256x128xf32>
    %144 = arith.mulf %143, %142 : vector<256x128xf32>
    %145 = arith.addf %140, %144 : vector<256x128xf32>
    %cst_34 = arith.constant 0.797884583 : f32
    %146 = vector.broadcast %cst_34 : f32 to vector<256x128xf32>
    %147 = arith.mulf %146, %145 : vector<256x128xf32>
    %148 = math.tanh %147 : vector<256x128xf32>
    %cst_35 = arith.constant 1.000000e+00 : f32
    %149 = vector.broadcast %cst_35 : f32 to vector<256x128xf32>
    %150 = arith.addf %149, %148 : vector<256x128xf32>
    %cst_36 = arith.constant 5.000000e-01 : f32
    %151 = vector.broadcast %cst_36 : f32 to vector<256x128xf32>
    %152 = arith.mulf %151, %150 : vector<256x128xf32>
    %153 = arith.mulf %140, %152 : vector<256x128xf32>
    %154 = arith.truncf %153 : vector<256x128xf32> to vector<256x128xbf16>
    %c0_37 = arith.constant 0 : index
    %c0_38 = arith.constant 0 : index
    %155 = vector.load %arg7[%c0_37, %c0_38] : memref<128x16xbf16, #tpu.memory_space<vmem>>, vector<128x16xbf16>
    %cst_39 = arith.constant dense<0.000000e+00> : vector<256x16xf32>
    %156 = tpu.matmul %154, %155, %cst_39 {dimension_numbers = #tpu.dot_dimension_numbers<[1], [0], [0], [1], [0, 0, 1, 1], [], []>} : vector<256x128xbf16>, vector<128x16xbf16>, vector<256x16xf32> -> vector<256x16xf32>
    %c0_40 = arith.constant 0 : index
    %c0_41 = arith.constant 0 : index
    %157 = vector.load %arg8[%c0_40, %c0_41] : memref<1x16xf32, #tpu.memory_space<vmem>>, vector<1x16xf32>
    %158 = vector.broadcast %157 : vector<1x16xf32> to vector<256x16xf32>
    %159 = arith.addf %156, %158 : vector<256x16xf32>
    %c0_42 = arith.constant 0 : index
    %c0_43 = arith.constant 0 : index
    %c0_44 = arith.constant 0 : index
    %160 = vector.load %arg9[%c0_42, %c0_43, %c0_44] : memref<1x256x16xf32, #tpu.memory_space<vmem>>, vector<1x256x16xf32>
    %161 = vector.shape_cast %160 : vector<1x256x16xf32> to vector<256x16xf32>
    %162 = vector.shape_cast %159 : vector<256x16xf32> to vector<1x256x16xf32>
    tpu.vector_store %arg9[%c0_42, %c0_43, %c0_44], %162 {strides = array<i32>} : memref<1x256x16xf32, #tpu.memory_space<vmem>>, vector<1x256x16xf32>,
    return
  }
  func.func @transform_0(%arg0: i32, %arg1: i32) -> (i32, i32, i32) {
    %c0_i32 = arith.constant 0 : i32
    %c0_i32_0 = arith.constant 0 : i32
    %c0_i32_1 = arith.constant 0 : i32
    return %arg0, %c0_i32, %c0_i32_0 : i32, i32, i32
  }
  func.func @transform_1(%arg0: i32, %arg1: i32) -> (i32, i32) {
    %c0_i32 = arith.constant 0 : i32
    %c0_i32_0 = arith.constant 0 : i32
    %c0_i32_1 = arith.constant 0 : i32
    return %c0_i32, %c0_i32_0 : i32, i32
  }
  func.func @transform_2(%arg0: i32, %arg1: i32) -> (i32, i32) {
    %c0_i32 = arith.constant 0 : i32
    %c0_i32_0 = arith.constant 0 : i32
    %c0_i32_1 = arith.constant 0 : i32
    return %c0_i32, %c0_i32_0 : i32, i32
  }
  func.func @transform_3(%arg0: i32, %arg1: i32) -> (i32, i32) {
    %c0_i32 = arith.constant 0 : i32
    %c0_i32_0 = arith.constant 0 : i32
    %c0_i32_1 = arith.constant 0 : i32
    return %c0_i32, %c0_i32_0 : i32, i32
  }
  func.func @transform_4(%arg0: i32, %arg1: i32) -> (i32, i32) {
    %c0_i32 = arith.constant 0 : i32
    %c0_i32_0 = arith.constant 0 : i32
    %c0_i32_1 = arith.constant 0 : i32
    return %c0_i32, %c0_i32_0 : i32, i32
  }
  func.func @transform_5(%arg0: i32, %arg1: i32) -> (i32, i32) {
    %c0_i32 = arith.constant 0 : i32
    %c0_i32_0 = arith.constant 0 : i32
    %c0_i32_1 = arith.constant 0 : i32
    return %c0_i32, %c0_i32_0 : i32, i32
  }
  func.func @transform_6(%arg0: i32, %arg1: i32) -> (i32, i32) {
    %c0_i32 = arith.constant 0 : i32
    %c0_i32_0 = arith.constant 0 : i32
    %c0_i32_1 = arith.constant 0 : i32
    return %c0_i32, %c0_i32_0 : i32, i32
  }
  func.func @transform_7(%arg0: i32, %arg1: i32) -> (i32, i32, i32) {
    %c0_i32 = arith.constant 0 : i32
    %c0_i32_0 = arith.constant 0 : i32
    return %arg0, %arg1, %c0_i32 : i32, i32, i32
  }
}

</mosaic_0001>

<llo_original>
// kernel: tpu_custom_call.1
$region0: #{tpu_custom_call.1}
  #allocation0 [shape = 'u32[]', space=smem, size = 0x4, offset = 0x4, fixed_abs, tag = 'smem constant byte address 0x4 - core index']
  #allocation1 [shape = 'u32[144,128]{1,0:T(1,128)}', space=vmem, size = 0x12000, scoped, tag = 'internal scratch']
  %s0 = inlined_call_operand.vmem [shape: f32[2,256,16], index: 0, kind: input, shape index: {}]
  %s1 = inlined_call_operand.vmem [shape: bf16[16,128], index: 1, kind: input, shape index: {}]
  %s2 = inlined_call_operand.vmem [shape: f32[1,128], index: 2, kind: input, shape index: {}]
  %s3 = inlined_call_operand.vmem [shape: f32[9,128], index: 3, kind: input, shape index: {}]
  %s4 = inlined_call_operand.vmem [shape: f32[1,128], index: 4, kind: input, shape index: {}]
  %s5 = inlined_call_operand.vmem [shape: bf16[128,16], index: 5, kind: input, shape index: {}]
  %s6 = inlined_call_operand.vmem [shape: f32[1,16], index: 6, kind: input, shape index: {}]
  %s7 = inlined_call_operand.vmem [shape: f32[2,256,16], index: 7, kind: output, shape index: {}]
  %s8 = sld [smem:[#allocation0]]
  $region61: #{tpu_custom_call.1} parent=0
    _
  %s10 = ssub.s32 1, %s8
  %s11 = scalar_select 0, %s10, %s8
  loop: start=0, step=1, limit=4
  $region2: #{tpu_custom_call.1} parent=0 // loop_pre_header
    _
  $region3: #{tpu_custom_call.1} parent=0 // loop_header
    %s13 = sphi 0, %s17
    %p14 = scmp.ge.s32.totalorder %s13, 4
    %s20 = sphi 0, %s32
    %s21 = sphi 0, %s28
    %s22 = sphi 0, %s20
    %s23 = sphi 0, %s21
    %s24 = sphi 0, %s22
    %s25 = sphi 0, %s23
    %s35 = sphi 0, %s37
    %s38 = sphi 0, %s35
    %s39 = sphi 0, %s38
    %s55 = sphi 0, %s39
    %s59 = sphi 0, %s59
    %s61 = sphi 0, %s59
    %s62 = sphi 0, %s61
    %s76 = sphi 0, %s62
    %s80 = sphi 0, %s80
    %s82 = sphi 0, %s80
    %s83 = sphi 0, %s82
    %s97 = sphi 0, %s83
    %s101 = sphi 0, %s101
    %s103 = sphi 0, %s101
    %s104 = sphi 0, %s103
    %s118 = sphi 0, %s104
    %s122 = sphi 0, %s122
    %s124 = sphi 0, %s122
    %s125 = sphi 0, %s124
    %s139 = sphi 0, %s125
    %s143 = sphi 0, %s143
    %s145 = sphi 0, %s143
    %s146 = sphi 0, %s145
    %s160 = sphi 0, %s146
    %s164 = sphi 0, %s164
    %s166 = sphi 0, %s164
    %s167 = sphi 0, %s166
    %s181 = sphi 0, %s167
    %s189 = sphi 0, %s191
    %s192 = sphi 0, %s189
    %s193 = sphi 0, %s192
    %s209 = sphi 0, %s193
  $region4: #{tpu_custom_call.1} parent=0 // loop_header_branch
    %16 = sbr.rel (%p14) target = $region8
  $region5: #{tpu_custom_call.1} parent=0 // loop_body
    %s18 = ssub.s32 %s13, 1
    %s19 = ssub.s32 %s13, 2
    %s26 = sadd.s32 1, %s21
    %p27 = scmp.ge.s32.totalorder %s26, 1
    %s28 = scalar_select %p27, 0, %s26
    %s29 = sadd.s32 1, %s20
    %s30 = scalar_select %p27, %s29, %s20
    %p31 = scmp.ge.s32.totalorder %s30, 2
    %s32 = scalar_select %p31, 0, %s30
    %s33 = ssub.s32 %s20, %s32
    %p34 = scmp.eq.s32.totalorder %s33, 0
    %s36 = sadd.s32 %s35, 1
    %s37 = scalar_select %p34, %s35, %s36
    %p40 = pneg %p34
    %p41 = scmp.eq.s32.totalorder %s13, 1
    %p42 = por %p40, %p41
    %p43 = scmp.ne.s32.totalorder %s35, %s38
    %p44 = scmp.eq.s32.totalorder %s13, 0
    %p45 = por %p43, %p44
    %p46 = scmp.ne.s32.totalorder %s35, %s38
    %p47 = scmp.eq.s32.totalorder %s18, 1
    %p48 = por %p46, %p47
    %p49 = scmp.ne.s32.totalorder %s38, %s39
    %p50 = scmp.eq.s32.totalorder %s18, 0
    %p51 = por %p49, %p50
    %p52 = scmp.ne.s32.totalorder %s38, %s39
    %p53 = scmp.eq.s32.totalorder %s19, 1
    %p54 = por %p52, %p53
    %p56 = scmp.ne.s32.totalorder %s39, %s55
    %p57 = scmp.eq.s32.totalorder %s19, 0
    %p58 = por %p56, %p57
    %s60 = sadd.s32 %s59, 1
    %p63 = scmp.eq.s32.totalorder %s13, 1
    %p64 = scmp.ne.s32.totalorder %s59, %s61
    %p65 = scmp.eq.s32.totalorder %s13, 0
    %p66 = por %p64, %p65
    %p67 = scmp.ne.s32.totalorder %s59, %s61
    %p68 = scmp.eq.s32.totalorder %s18, 1
    %p69 = por %p67, %p68
    %p70 = scmp.ne.s32.totalorder %s61, %s62
    %p71 = scmp.eq.s32.totalorder %s18, 0
    %p72 = por %p70, %p71
    %p73 = scmp.ne.s32.totalorder %s61, %s62
    %p74 = scmp.eq.s32.totalorder %s19, 1
    %p75 = por %p73, %p74
    %p77 = scmp.ne.s32.totalorder %s62, %s76
    %p78 = scmp.eq.s32.totalorder %s19, 0
    %p79 = por %p77, %p78
    %s81 = sadd.s32 %s80, 1
    %p84 = scmp.eq.s32.totalorder %s13, 1
    %p85 = scmp.ne.s32.totalorder %s80, %s82
    %p86 = scmp.eq.s32.totalorder %s13, 0
    %p87 = por %p85, %p86
    %p88 = scmp.ne.s32.totalorder %s80, %s82
    %p89 = scmp.eq.s32.totalorder %s18, 1
    %p90 = por %p88, %p89
    %p91 = scmp.ne.s32.totalorder %s82, %s83
    %p92 = scmp.eq.s32.totalorder %s18, 0
    %p93 = por %p91, %p92
    %p94 = scmp.ne.s32.totalorder %s82, %s83
    %p95 = scmp.eq.s32.totalorder %s19, 1
    %p96 = por %p94, %p95
    %p98 = scmp.ne.s32.totalorder %s83, %s97
    %p99 = scmp.eq.s32.totalorder %s19, 0
    %p100 = por %p98, %p99
    %s102 = sadd.s32 %s101, 1
    %p105 = scmp.eq.s32.totalorder %s13, 1
    %p106 = scmp.ne.s32.totalorder %s101, %s103
    %p107 = scmp.eq.s32.totalorder %s13, 0
    %p108 = por %p106, %p107
    %p109 = scmp.ne.s32.totalorder %s101, %s103
    %p110 = scmp.eq.s32.totalorder %s18, 1
    %p111 = por %p109, %p110
    %p112 = scmp.ne.s32.totalorder %s103, %s104
    %p113 = scmp.eq.s32.totalorder %s18, 0
    %p114 = por %p112, %p113
    %p115 = scmp.ne.s32.totalorder %s103, %s104
    %p116 = scmp.eq.s32.totalorder %s19, 1
    %p117 = por %p115, %p116
    %p119 = scmp.ne.s32.totalorder %s104, %s118
    %p120 = scmp.eq.s32.totalorder %s19, 0
    %p121 = por %p119, %p120
    %s123 = sadd.s32 %s122, 1
    %p126 = scmp.eq.s32.totalorder %s13, 1
    %p127 = scmp.ne.s32.totalorder %s122, %s124
    %p128 = scmp.eq.s32.totalorder %s13, 0
    %p129 = por %p127, %p128
    %p130 = scmp.ne.s32.totalorder %s122, %s124
    %p131 = scmp.eq.s32.totalorder %s18, 1
    %p132 = por %p130, %p131
    %p133 = scmp.ne.s32.totalorder %s124, %s125
    %p134 = scmp.eq.s32.totalorder %s18, 0
    %p135 = por %p133, %p134
    %p136 = scmp.ne.s32.totalorder %s124, %s125
    %p137 = scmp.eq.s32.totalorder %s19, 1
    %p138 = por %p136, %p137
    %p140 = scmp.ne.s32.totalorder %s125, %s139
    %p141 = scmp.eq.s32.totalorder %s19, 0
    %p142 = por %p140, %p141
    %s144 = sadd.s32 %s143, 1
    %p147 = scmp.eq.s32.totalorder %s13, 1
    %p148 = scmp.ne.s32.totalorder %s143, %s145
    %p149 = scmp.eq.s32.totalorder %s13, 0
    %p150 = por %p148, %p149
    %p151 = scmp.ne.s32.totalorder %s143, %s145
    %p152 = scmp.eq.s32.totalorder %s18, 1
    %p153 = por %p151, %p152
    %p154 = scmp.ne.s32.totalorder %s145, %s146
    %p155 = scmp.eq.s32.totalorder %s18, 0
    %p156 = por %p154, %p155
    %p157 = scmp.ne.s32.totalorder %s145, %s146
    %p158 = scmp.eq.s32.totalorder %s19, 1
    %p159 = por %p157, %p158
    %p161 = scmp.ne.s32.totalorder %s146, %s160
    %p162 = scmp.eq.s32.totalorder %s19, 0
    %p163 = por %p161, %p162
    %s165 = sadd.s32 %s164, 1
    %p168 = scmp.eq.s32.totalorder %s13, 1
    %p169 = scmp.ne.s32.totalorder %s164, %s166
    %p170 = scmp.eq.s32.totalorder %s13, 0
    %p171 = por %p169, %p170
    %p172 = scmp.ne.s32.totalorder %s164, %s166
    %p173 = scmp.eq.s32.totalorder %s18, 1
    %p174 = por %p172, %p173
    %p175 = scmp.ne.s32.totalorder %s166, %s167
    %p176 = scmp.eq.s32.totalorder %s18, 0
    %p177 = por %p175, %p176
    %p178 = scmp.ne.s32.totalorder %s166, %s167
    %p179 = scmp.eq.s32.totalorder %s19, 1
    %p180 = por %p178, %p179
    %p182 = scmp.ne.s32.totalorder %s167, %s181
    %p183 = scmp.eq.s32.totalorder %s19, 0
    %p184 = por %p182, %p183
    %s185 = ssub.s32 %s20, %s32
    %s186 = ssub.s32 %s21, %s28
    %s187 = sor.u32 %s185, %s186
    %p188 = scmp.eq.s32.totalorder %s187, 0
    %s190 = sadd.s32 %s189, 1
    %s191 = scalar_select %p188, %s189, %s190
    %p194 = pneg %p188
    %p195 = scmp.eq.s32.totalorder %s13, 1
    %p196 = por %p194, %p195
    %p197 = scmp.ne.s32.totalorder %s189, %s192
    %p198 = scmp.eq.s32.totalorder %s13, 0
    %p199 = por %p197, %p198
    %p200 = scmp.ne.s32.totalorder %s189, %s192
    %p201 = scmp.eq.s32.totalorder %s18, 1
    %p202 = por %p200, %p201
    %p203 = scmp.ne.s32.totalorder %s192, %s193
    %p204 = scmp.eq.s32.totalorder %s18, 0
    %p205 = por %p203, %p204
    %p206 = scmp.ne.s32.totalorder %s192, %s193
    %p207 = scmp.eq.s32.totalorder %s19, 1
    %p208 = por %p206, %p207
    %p210 = scmp.ne.s32.totalorder %s193, %s209
    %p211 = scmp.eq.s32.totalorder %s19, 0
    %p212 = por %p210, %p211
    %p213 = scmp.le.s32.totalorder 1, %s13
    %p214 = scmp.lt.s32.totalorder %s13, 3
    %p215 = pnand %p213, %p214
    %p216 = pneg %p215
    // Predicated region
    $region9: #{tpu_custom_call.1} parent=5 // pred_check
      _
    $region10: #{tpu_custom_call.1} parent=5 // pred_check_branch
      %218 = sbr.rel (%p215) target = $region12
    $region11: #{tpu_custom_call.1} parent=5 // pred_region
      %s219 = ssub.s32 %s13, 1
      // Predicated region
      $region13: #{tpu_custom_call.1} parent=11 // pred_check
        %p220 = pneg %p72
      $region14: #{tpu_custom_call.1} parent=11 // pred_check_branch
        %222 = sbr.rel (%p220) target = $region16
      $region15: #{tpu_custom_call.1} parent=11 // pred_region
        _
      $region16: #{tpu_custom_call.1} parent=11 // pred_fallthru
        _
      // Predicated region
      $region17: #{tpu_custom_call.1} parent=11 // pred_check
        %p223 = pneg %p93
      $region18: #{tpu_custom_call.1} parent=11 // pred_check_branch
        %225 = sbr.rel (%p223) target = $region20
      $region19: #{tpu_custom_call.1} parent=11 // pred_region
        _
      $region20: #{tpu_custom_call.1} parent=11 // pred_fallthru
        _
      // Predicated region
      $region21: #{tpu_custom_call.1} parent=11 // pred_check
        %p226 = pneg %p114
      $region22: #{tpu_custom_call.1} parent=11 // pred_check_branch
        %228 = sbr.rel (%p226) target = $region24
      $region23: #{tpu_custom_call.1} parent=11 // pred_region
        _
      $region24: #{tpu_custom_call.1} parent=11 // pred_fallthru
        _
      // Predicated region
      $region25: #{tpu_custom_call.1} parent=11 // pred_check
        %p229 = pneg %p135
      $region26: #{tpu_custom_call.1} parent=11 // pred_check_branch
        %231 = sbr.rel (%p229) target = $region28
      $region27: #{tpu_custom_call.1} parent=11 // pred_region
        _
      $region28: #{tpu_custom_call.1} parent=11 // pred_fallthru
        _
      // Predicated region
      $region29: #{tpu_custom_call.1} parent=11 // pred_check
        %p232 = pneg %p156
      $region30: #{tpu_custom_call.1} parent=11 // pred_check_branch
        %234 = sbr.rel (%p232) target = $region32
      $region31: #{tpu_custom_call.1} parent=11 // pred_region
        _
      $region32: #{tpu_custom_call.1} parent=11 // pred_fallthru
        _
      // Predicated region
      $region33: #{tpu_custom_call.1} parent=11 // pred_check
        %p235 = pneg %p177
      $region34: #{tpu_custom_call.1} parent=11 // pred_check_branch
        %237 = sbr.rel (%p235) target = $region36
      $region35: #{tpu_custom_call.1} parent=11 // pred_region
        _
      $region36: #{tpu_custom_call.1} parent=11 // pred_fallthru
        _
    $region12: #{tpu_custom_call.1} parent=5 // pred_fallthru
      _
    %p238 = scmp.lt.s32.totalorder %s13, 2
    // Predicated region
    $region37: #{tpu_custom_call.1} parent=5 // pred_check
      %p239 = pneg %p238
    $region38: #{tpu_custom_call.1} parent=5 // pred_check_branch
      %241 = sbr.rel (%p239) target = $region40
    $region39: #{tpu_custom_call.1} parent=5 // pred_region
      // Predicated region
      $region41: #{tpu_custom_call.1} parent=39 // pred_check
        %p242 = pneg %p45
      $region42: #{tpu_custom_call.1} parent=39 // pred_check_branch
        %244 = sbr.rel (%p242) target = $region44
      $region43: #{tpu_custom_call.1} parent=39 // pred_region
        %p245 = scmp.lt.s32.totalorder %s20, 1
        %s246 = scalar_select %p245, %s20, 1
        %s247 = smul.addr %s246, 32
        %s248 = smul.addr %s247, 8
        %s249 = scalar_lea.vmem %s0, %s248
      $region44: #{tpu_custom_call.1} parent=39 // pred_fallthru
        _
    $region40: #{tpu_custom_call.1} parent=5 // pred_fallthru
      _
    %p250 = scmp.le.s32.totalorder 1, %s13
    %p251 = scmp.lt.s32.totalorder %s13, 3
    %p252 = pnand %p250, %p251
    %p253 = pneg %p252
    // Predicated region
    $region45: #{tpu_custom_call.1} parent=5 // pred_check
      _
    $region46: #{tpu_custom_call.1} parent=5 // pred_check_branch
      %255 = sbr.rel (%p252) target = $region48
    $region47: #{tpu_custom_call.1} parent=5 // pred_region
      %s256 = ssub.s32 %s13, 1
      %p257 = scmp.lt.s32.totalorder %s22, 1
      %s258 = scalar_select %p257, %s22, 1
      %s259 = smul.addr %s258, 32
      %s260 = smul.addr %s259, 8
      %s261 = scalar_lea.vmem %s0, %s260
      %p262 = pneg %p51
      %p263 = pneg %p48
      %p264 = pneg %p72
      %p265 = pneg %p69
      %p266 = pneg %p93
      %p267 = pneg %p90
      %p268 = pneg %p114
      %p269 = pneg %p111
      %p270 = pneg %p135
      %p271 = pneg %p132
      %p272 = pneg %p156
      %p273 = pneg %p153
      %p274 = pneg %p177
      %p275 = pneg %p174
      %p276 = pneg %p205
      %p277 = pneg %p202
      %s278 = smul.u32 32, %s23
      %p279 = scmp.lt.s32.totalorder %s22, 1
      %s280 = scalar_select %p279, %s22, 1
      %p281 = scmp.lt.s32.totalorder %s278, 31
      %s282 = scalar_select %p281, %s278, 31
      %s283 = smul.addr %s280, 32
      %s284 = sadd.s32 %s282, %s283
      %s285 = smul.addr %s284, 8
      %s286 = scalar_lea.vmem %s7, %s285
      %p287 = scmp.lt.s32.totalorder %s22, 1
      %s288 = scalar_select %p287, %s22, 1
      %s289 = smul.addr %s288, 32
      %s290 = smul.addr %s289, 8
      %s291 = scalar_lea.vmem %s0, %s290
      %s292 = smul.u32 32, %s23
      %p293 = scmp.lt.s32.totalorder %s22, 1
      %s294 = scalar_select %p293, %s22, 1
      %p295 = scmp.lt.s32.totalorder %s292, 31
      %s296 = scalar_select %p295, %s292, 31
      %s297 = smul.addr %s294, 32
      %s298 = sadd.s32 %s296, %s297
      %s299 = smul.addr %s298, 8
      %s300 = scalar_lea.vmem %s7, %s299
      %s301 = smul.u32 32, %s23
      %s303 = smul.u32 %s23, 16
      %s304 = smul.u32 %s23, 256
      %s305 = ssub.s32 %s303, 1
      %p306 = scmp.gt.s32.totalorder %s305, 0
      %s307 = scalar_select %p306, %s305, 0
      %s308 = smul.u32 %s307, 16
      %s309 = sadd.s32 %s303, 16
      %p310 = scmp.lt.s32.totalorder %s309, 15
      %s311 = scalar_select %p310, %s309, 15
      %s312 = smul.u32 %s311, 16
      %s313 = scalar_lea.vmem %s291, %s308
      %v314 = vld [vmem:[%s313] sm:$0xff]
      %v315 = vld [vmem:[%s313 + $0x8] sm:$0xff]
      %s316 = scalar_lea.vmem %s291, %s304
      %v317 = vld [vmem:[%s316] sm:$0xff]
      %v318 = vld [vmem:[%s316 + $0x8] sm:$0xff]
      %v319 = vld [vmem:[%s316 + $0x10] sm:$0xff]
      %v320 = vld [vmem:[%s316 + $0x18] sm:$0xff]
      %v321 = vld [vmem:[%s316 + $0x20] sm:$0xff]
      %v322 = vld [vmem:[%s316 + $0x28] sm:$0xff]
      %v323 = vld [vmem:[%s316 + $0x30] sm:$0xff]
      %v324 = vld [vmem:[%s316 + $0x38] sm:$0xff]
      %v325 = vld [vmem:[%s316 + $0x40] sm:$0xff]
      %v326 = vld [vmem:[%s316 + $0x48] sm:$0xff]
      %v327 = vld [vmem:[%s316 + $0x50] sm:$0xff]
      %v328 = vld [vmem:[%s316 + $0x58] sm:$0xff]
      %v329 = vld [vmem:[%s316 + $0x60] sm:$0xff]
      %v330 = vld [vmem:[%s316 + $0x68] sm:$0xff]
      %v331 = vld [vmem:[%s316 + $0x70] sm:$0xff]
      %v332 = vld [vmem:[%s316 + $0x78] sm:$0xff]
      %v333 = vld [vmem:[%s316 + $0x80] sm:$0xff]
      %v334 = vld [vmem:[%s316 + $0x88] sm:$0xff]
      %v335 = vld [vmem:[%s316 + $0x90] sm:$0xff]
      %v336 = vld [vmem:[%s316 + $0x98] sm:$0xff]
      %v337 = vld [vmem:[%s316 + $0xa0] sm:$0xff]
      %v338 = vld [vmem:[%s316 + $0xa8] sm:$0xff]
      %v339 = vld [vmem:[%s316 + $0xb0] sm:$0xff]
      %v340 = vld [vmem:[%s316 + $0xb8] sm:$0xff]
      %v341 = vld [vmem:[%s316 + $0xc0] sm:$0xff]
      %v342 = vld [vmem:[%s316 + $0xc8] sm:$0xff]
      %v343 = vld [vmem:[%s316 + $0xd0] sm:$0xff]
      %v344 = vld [vmem:[%s316 + $0xd8] sm:$0xff]
      %v345 = vld [vmem:[%s316 + $0xe0] sm:$0xff]
      %v346 = vld [vmem:[%s316 + $0xe8] sm:$0xff]
      %v347 = vld [vmem:[%s316 + $0xf0] sm:$0xff]
      %v348 = vld [vmem:[%s316 + $0xf8] sm:$0xff]
      %s349 = scalar_lea.vmem %s291, %s312
      %v350 = vld [vmem:[%s349] sm:$0xff]
      %v351 = vld [vmem:[%s349 + $0x8] sm:$0xff]
      %v352 = vpack.c.bf16 %v315, %v314
      %v353 = vpack.c.bf16 %v318, %v317
      %v354 = vpack.c.bf16 %v320, %v319
      %v355 = vpack.c.bf16 %v322, %v321
      %v356 = vpack.c.bf16 %v324, %v323
      %v357 = vpack.c.bf16 %v326, %v325
      %v358 = vpack.c.bf16 %v328, %v327
      %v359 = vpack.c.bf16 %v330, %v329
      %v360 = vpack.c.bf16 %v332, %v331
      %v361 = vpack.c.bf16 %v334, %v333
      %v362 = vpack.c.bf16 %v336, %v335
      %v363 = vpack.c.bf16 %v338, %v337
      %v364 = vpack.c.bf16 %v340, %v339
      %v365 = vpack.c.bf16 %v342, %v341
      %v366 = vpack.c.bf16 %v344, %v343
      %v367 = vpack.c.bf16 %v346, %v345
      %v368 = vpack.c.bf16 %v348, %v347
      %v369 = vpack.c.bf16 %v351, %v350
      %v370 = vld [vmem:[%s1] sm:$0xf]
      %v371 = vld [vmem:[%s1 + $0x4] sm:$0xf]
      %v372 = vld [vmem:[%s2] sm:$0x1]
      %v374 = vlaneseq
      %v375 = vshrl.u32 %v374, 7
      %v376 = vsub.s32 0, %v375
      %v377 = vrot.slane %v372, %v376
      %v381 = vunpack.c.l.b16 %v370
      %v382 = vunpack.c.l.b16 %v371
      %v383 = vpack.c.b16 %v382, %v381
      %vm385 = vcmask 130048
      %v387 = vsel %vm385, %v352, 0
      %v390 = vsel %vm385, %v353, 0
      %v393 = vsel %vm385, %v354, 0
      %v396 = vsel %vm385, %v355, 0
      %v399 = vsel %vm385, %v356, 0
      %v402 = vsel %vm385, %v357, 0
      %v405 = vsel %vm385, %v358, 0
      %v408 = vsel %vm385, %v359, 0
      %v411 = vsel %vm385, %v360, 0
      %v414 = vsel %vm385, %v361, 0
      %v417 = vsel %vm385, %v362, 0
      %v420 = vsel %vm385, %v363, 0
      %v423 = vsel %vm385, %v364, 0
      %v426 = vsel %vm385, %v365, 0
      %v429 = vsel %vm385, %v366, 0
      %v432 = vsel %vm385, %v367, 0
      %v435 = vsel %vm385, %v368, 0
      %v438 = vsel %vm385, %v369, 0
      %440 = vmatprep.subr.bf16.mxu0 0
      %441 = vmatpush1.bf16.msra.mxu0 %v383
      %442 = vmatprep.subr.bf16.mxu0 0
      %443 = vmatpush1.bf16.msra.mxu0 0
      %444 = vmatprep.subr.bf16.mxu0 0
      %445 = vmatpush1.bf16.msra.mxu0 0
      %446 = vmatprep.subr.bf16.mxu0 0
      %447 = vmatpush1.bf16.msra.mxu0 0
      %448 = vmatprep.subr.bf16.mxu0 0
      %449 = vmatpush1.bf16.msra.mxu0 0
      %450 = vmatprep.subr.bf16.mxu0 0
      %451 = vmatpush1.bf16.msra.mxu0 0
      %452 = vmatprep.subr.bf16.mxu0 0
      %453 = vmatpush1.bf16.msra.mxu0 0
      %454 = vmatprep.subr.bf16.mxu0 0
      %455 = vmatpush1.bf16.msra.mxu0 0
      %456 = vmatprep.subr.bf16.mxu0 0
      %457 = vmatpush1.bf16.msra.mxu0 0
      %458 = vmatprep.subr.bf16.mxu0 0
      %459 = vmatpush1.bf16.msra.mxu0 0
      %460 = vmatprep.subr.bf16.mxu0 0
      %461 = vmatpush1.bf16.msra.mxu0 0
      %462 = vmatprep.subr.bf16.mxu0 0
      %463 = vmatpush1.bf16.msra.mxu0 0
      %464 = vmatprep.subr.bf16.mxu0 0
      %465 = vmatpush1.bf16.msra.mxu0 0
      %466 = vmatprep.subr.bf16.mxu0 0
      %467 = vmatpush1.bf16.msra.mxu0 0
      %468 = vmatprep.subr.bf16.mxu0 0
      %469 = vmatpush1.bf16.msra.mxu0 0
      %470 = vmatprep.subr.bf16.mxu0 0
      %471 = vmatpush1.bf16.msra.mxu0 0
      %472 = vmatprep.mubr.bf16.mxu0 0
      %473 = vmatmul.mubr.bf16.gmra.mrb[0].mxu0 %v387
      %v474 = vpop.f32.mrb[0].mxu0
      %v475 = vadd.f32 %v377, %v474
      %v476 = vpop.f32.mrb[0].mxu0
      %v477 = vpop.f32.mrb[0].mxu0
      %v478 = vadd.f32 %v377, %v477
      %v479 = vpop.f32.mrb[0].mxu0
      %480 = vmatprep.mubr.bf16.mxu0 0
      %481 = vmatmul.mubr.bf16.gmra.mrb[0].mxu0 %v390
      %v482 = vpop.f32.mrb[0].mxu0
      %v483 = vadd.f32 %v377, %v482
      %v484 = vpop.f32.mrb[0].mxu0
      %v485 = vpop.f32.mrb[0].mxu0
      %v486 = vadd.f32 %v377, %v485
      %v487 = vpop.f32.mrb[0].mxu0
      %488 = vmatprep.mubr.bf16.mxu0 0
      %489 = vmatmul.mubr.bf16.gmra.mrb[0].mxu0 %v393
      %v490 = vpop.f32.mrb[0].mxu0
      %v491 = vadd.f32 %v377, %v490
      %v492 = vpop.f32.mrb[0].mxu0
      %v493 = vpop.f32.mrb[0].mxu0
      %v494 = vadd.f32 %v377, %v493
      %v495 = vpop.f32.mrb[0].mxu0
      %496 = vmatprep.mubr.bf16.mxu0 0
      %497 = vmatmul.mubr.bf16.gmra.mrb[0].mxu0 %v396
      %v498 = vpop.f32.mrb[0].mxu0
      %v499 = vadd.f32 %v377, %v498
      %v500 = vpop.f32.mrb[0].mxu0
      %v501 = vpop.f32.mrb[0].mxu0
      %v502 = vadd.f32 %v377, %v501
      %v503 = vpop.f32.mrb[0].mxu0
      %504 = vmatprep.mubr.bf16.mxu0 0
      %505 = vmatmul.mubr.bf16.gmra.mrb[0].mxu0 %v399
      %v506 = vpop.f32.mrb[0].mxu0
      %v507 = vadd.f32 %v377, %v506
      %v508 = vpop.f32.mrb[0].mxu0
      %v509 = vpop.f32.mrb[0].mxu0
      %v510 = vadd.f32 %v377, %v509
      %v511 = vpop.f32.mrb[0].mxu0
      %512 = vmatprep.mubr.bf16.mxu0 0
      %513 = vmatmul.mubr.bf16.gmra.mrb[0].mxu0 %v402
      %v514 = vpop.f32.mrb[0].mxu0
      %v515 = vadd.f32 %v377, %v514
      %v516 = vpop.f32.mrb[0].mxu0
      %v517 = vpop.f32.mrb[0].mxu0
      %v518 = vadd.f32 %v377, %v517
      %v519 = vpop.f32.mrb[0].mxu0
      %520 = vmatprep.mubr.bf16.mxu0 0
      %521 = vmatmul.mubr.bf16.gmra.mrb[0].mxu0 %v405
      %v522 = vpop.f32.mrb[0].mxu0
      %v523 = vadd.f32 %v377, %v522
      %v524 = vpop.f32.mrb[0].mxu0
      %v525 = vpop.f32.mrb[0].mxu0
      %v526 = vadd.f32 %v377, %v525
      %v527 = vpop.f32.mrb[0].mxu0
      %528 = vmatprep.mubr.bf16.mxu0 0
      %529 = vmatmul.mubr.bf16.gmra.mrb[0].mxu0 %v408
      %v530 = vpop.f32.mrb[0].mxu0
      %v531 = vadd.f32 %v377, %v530
      %v532 = vpop.f32.mrb[0].mxu0
      %v533 = vpop.f32.mrb[0].mxu0
      %v534 = vadd.f32 %v377, %v533
      %v535 = vpop.f32.mrb[0].mxu0
      %536 = vmatprep.mubr.bf16.mxu0 0
      %537 = vmatmul.mubr.bf16.gmra.mrb[0].mxu0 %v411
      %v538 = vpop.f32.mrb[0].mxu0
      %v539 = vadd.f32 %v377, %v538
      %v540 = vpop.f32.mrb[0].mxu0
      %v541 = vpop.f32.mrb[0].mxu0
      %v542 = vadd.f32 %v377, %v541
      %v543 = vpop.f32.mrb[0].mxu0
      %544 = vmatprep.mubr.bf16.mxu0 0
      %545 = vmatmul.mubr.bf16.gmra.mrb[0].mxu0 %v414
      %v546 = vpop.f32.mrb[0].mxu0
      %v547 = vadd.f32 %v377, %v546
      %v548 = vpop.f32.mrb[0].mxu0
      %v549 = vpop.f32.mrb[0].mxu0
      %v550 = vadd.f32 %v377, %v549
      %v551 = vpop.f32.mrb[0].mxu0
      %552 = vmatprep.mubr.bf16.mxu0 0
      %553 = vmatmul.mubr.bf16.gmra.mrb[0].mxu0 %v417
      %v554 = vpop.f32.mrb[0].mxu0
      %v555 = vadd.f32 %v377, %v554
      %v556 = vpop.f32.mrb[0].mxu0
      %v557 = vpop.f32.mrb[0].mxu0
      %v558 = vadd.f32 %v377, %v557
      %v559 = vpop.f32.mrb[0].mxu0
      %560 = vmatprep.mubr.bf16.mxu0 0
      %561 = vmatmul.mubr.bf16.gmra.mrb[0].mxu0 %v420
      %v562 = vpop.f32.mrb[0].mxu0
      %v563 = vadd.f32 %v377, %v562
      %v564 = vpop.f32.mrb[0].mxu0
      %v565 = vpop.f32.mrb[0].mxu0
      %v566 = vadd.f32 %v377, %v565
      %v567 = vpop.f32.mrb[0].mxu0
      %568 = vmatprep.mubr.bf16.mxu0 0
      %569 = vmatmul.mubr.bf16.gmra.mrb[0].mxu0 %v423
      %v570 = vpop.f32.mrb[0].mxu0
      %v571 = vadd.f32 %v377, %v570
      %v572 = vpop.f32.mrb[0].mxu0
      %v573 = vpop.f32.mrb[0].mxu0
      %v574 = vadd.f32 %v377, %v573
      %v575 = vpop.f32.mrb[0].mxu0
      %576 = vmatprep.mubr.bf16.mxu0 0
      %577 = vmatmul.mubr.bf16.gmra.mrb[0].mxu0 %v426
      %v578 = vpop.f32.mrb[0].mxu0
      %v579 = vadd.f32 %v377, %v578
      %v580 = vpop.f32.mrb[0].mxu0
      %v581 = vpop.f32.mrb[0].mxu0
      %v582 = vadd.f32 %v377, %v581
      %v583 = vpop.f32.mrb[0].mxu0
      %584 = vmatprep.mubr.bf16.mxu0 0
      %585 = vmatmul.mubr.bf16.gmra.mrb[0].mxu0 %v429
      %v586 = vpop.f32.mrb[0].mxu0
      %v587 = vadd.f32 %v377, %v586
      %v588 = vpop.f32.mrb[0].mxu0
      %v589 = vpop.f32.mrb[0].mxu0
      %v590 = vadd.f32 %v377, %v589
      %v591 = vpop.f32.mrb[0].mxu0
      %592 = vmatprep.mubr.bf16.mxu0 0
      %593 = vmatmul.mubr.bf16.gmra.mrb[0].mxu0 %v432
      %v594 = vpop.f32.mrb[0].mxu0
      %v595 = vadd.f32 %v377, %v594
      %v596 = vpop.f32.mrb[0].mxu0
      %v597 = vpop.f32.mrb[0].mxu0
      %v598 = vadd.f32 %v377, %v597
      %v599 = vpop.f32.mrb[0].mxu0
      %600 = vmatprep.mubr.bf16.mxu0 0
      %601 = vmatmul.mubr.bf16.gmra.mrb[0].mxu0 %v435
      %v602 = vpop.f32.mrb[0].mxu0
      %v603 = vadd.f32 %v377, %v602
      %v604 = vpop.f32.mrb[0].mxu0
      %v605 = vpop.f32.mrb[0].mxu0
      %v606 = vadd.f32 %v377, %v605
      %v607 = vpop.f32.mrb[0].mxu0
      %608 = vmatprep.mubr.bf16.mxu0 0
      %609 = vmatmul.mubr.bf16.gmra.mrb[0].mxu0 %v438
      %v610 = vpop.f32.mrb[0].mxu0
      %v611 = vadd.f32 %v377, %v610
      %v612 = vpop.f32.mrb[0].mxu0
      %v613 = vpop.f32.mrb[0].mxu0
      %v614 = vadd.f32 %v377, %v613
      %v615 = vpop.f32.mrb[0].mxu0
      %616 = vdwg.mxu0
      %v617 = vlaneseq
      %v618 = vshrl.u32 %v617, 7
      %v619 = vadd.s32 %v618, 8
      %v620 = vadd.s32 %v618, 16
      %v621 = vadd.s32 %v618, 24
      %v622 = vadd.s32 %v618, 32
      %v623 = vadd.s32 %v618, 40
      %v624 = vadd.s32 %v618, 48
      %v625 = vadd.s32 %v618, 56
      %v626 = vadd.s32 %v618, 64
      %v627 = vadd.s32 %v618, 72
      %v628 = vadd.s32 %v618, 80
      %v629 = vadd.s32 %v618, 88
      %v630 = vadd.s32 %v618, 96
      %v631 = vadd.s32 %v618, 104
      %v632 = vadd.s32 %v618, 112
      %v633 = vadd.s32 %v618, 120
      %v634 = vadd.s32 %v618, 128
      %v635 = vadd.s32 %v618, 136
      %v636 = vadd.s32 %v618, 144
      %v637 = vadd.s32 %v618, 152
      %v638 = vadd.s32 %v618, 160
      %v639 = vadd.s32 %v618, 168
      %v640 = vadd.s32 %v618, 176
      %v641 = vadd.s32 %v618, 184
      %v642 = vadd.s32 %v618, 192
      %v643 = vadd.s32 %v618, 200
      %v644 = vadd.s32 %v618, 208
      %v645 = vadd.s32 %v618, 216
      %v646 = vadd.s32 %v618, 224
      %v647 = vadd.s32 %v618, 232
      %v648 = vadd.s32 %v618, 240
      %v649 = vadd.s32 %v618, 248
      %v650 = vadd.s32 %v618, 256
      %v651 = vadd.s32 %v618, 264
      %v652 = vadd.s32 %v618, 272
      %v653 = vadd.s32 %v618, 280
      %vm654 = vcmp.ge.s32.totalorder %v618, 16
      %vm655 = vcmp.ge.s32.totalorder %v619, 16
      %vm656 = vcmp.ge.s32.totalorder %v620, 16
      %vm657 = vcmp.ge.s32.totalorder %v621, 16
      %vm658 = vcmp.ge.s32.totalorder %v622, 16
      %vm659 = vcmp.ge.s32.totalorder %v623, 16
      %vm660 = vcmp.ge.s32.totalorder %v624, 16
      %vm661 = vcmp.ge.s32.totalorder %v625, 16
      %vm662 = vcmp.ge.s32.totalorder %v626, 16
      %vm663 = vcmp.ge.s32.totalorder %v627, 16
      %vm664 = vcmp.ge.s32.totalorder %v628, 16
      %vm665 = vcmp.ge.s32.totalorder %v629, 16
      %vm666 = vcmp.ge.s32.totalorder %v630, 16
      %vm667 = vcmp.ge.s32.totalorder %v631, 16
      %vm668 = vcmp.ge.s32.totalorder %v632, 16
      %vm669 = vcmp.ge.s32.totalorder %v633, 16
      %vm670 = vcmp.ge.s32.totalorder %v634, 16
      %vm671 = vcmp.ge.s32.totalorder %v635, 16
      %vm672 = vcmp.ge.s32.totalorder %v636, 16
      %vm673 = vcmp.ge.s32.totalorder %v637, 16
      %vm674 = vcmp.ge.s32.totalorder %v638, 16
      %vm675 = vcmp.ge.s32.totalorder %v639, 16
      %vm676 = vcmp.ge.s32.totalorder %v640, 16
      %vm677 = vcmp.ge.s32.totalorder %v641, 16
      %vm678 = vcmp.ge.s32.totalorder %v642, 16
      %vm679 = vcmp.ge.s32.totalorder %v643, 16
      %vm680 = vcmp.ge.s32.totalorder %v644, 16
      %vm681 = vcmp.ge.s32.totalorder %v645, 16
      %vm682 = vcmp.ge.s32.totalorder %v646, 16
      %vm683 = vcmp.ge.s32.totalorder %v647, 16
      %vm684 = vcmp.ge.s32.totalorder %v648, 16
      %vm685 = vcmp.ge.s32.totalorder %v649, 16
      %vm686 = vcmp.ge.s32.totalorder %v650, 16
      %vm687 = vcmp.ge.s32.totalorder %v651, 16
      %vm688 = vcmp.ge.s32.totalorder %v652, 16
      %vm689 = vcmp.ge.s32.totalorder %v653, 16
      %p690 = scmp.gt.s32.totalorder %s23, 0
      %s691 = scalar_select %p690, 1, 0
      %v692 = vstv %s691
      %vm693 = vcmp.eq.s32.totalorder %v692, 1
      %vm694 = vmor %vm654, %vm693
      %vm695 = vmor %vm655, %vm693
      %vm696 = vmor %vm656, %vm693
      %vm697 = vmor %vm657, %vm693
      %vm698 = vmor %vm658, %vm693
      %vm699 = vmor %vm659, %vm693
      %vm700 = vmor %vm660, %vm693
      %vm701 = vmor %vm661, %vm693
      %vm702 = vmor %vm662, %vm693
      %vm703 = vmor %vm663, %vm693
      %vm704 = vmor %vm664, %vm693
      %vm705 = vmor %vm665, %vm693
      %vm706 = vmor %vm666, %vm693
      %vm707 = vmor %vm667, %vm693
      %vm708 = vmor %vm668, %vm693
      %vm709 = vmor %vm669, %vm693
      %vm710 = vmor %vm670, %vm693
      %vm711 = vmor %vm671, %vm693
      %vm712 = vmor %vm672, %vm693
      %vm713 = vmor %vm673, %vm693
      %vm714 = vmor %vm674, %vm693
      %vm715 = vmor %vm675, %vm693
      %vm716 = vmor %vm676, %vm693
      %vm717 = vmor %vm677, %vm693
      %vm718 = vmor %vm678, %vm693
      %vm719 = vmor %vm679, %vm693
      %vm720 = vmor %vm680, %vm693
      %vm721 = vmor %vm681, %vm693
      %vm722 = vmor %vm682, %vm693
      %vm723 = vmor %vm683, %vm693
      %vm724 = vmor %vm684, %vm693
      %vm725 = vmor %vm685, %vm693
      %vm726 = vmor %vm686, %vm693
      %vm727 = vmor %vm687, %vm693
      %vm728 = vmor %vm688, %vm693
      %vm729 = vmor %vm689, %vm693
      %vm730 = vcmp.lt.s32.totalorder %v618, 272
      %vm731 = vcmp.lt.s32.totalorder %v619, 272
      %vm732 = vcmp.lt.s32.totalorder %v620, 272
      %vm733 = vcmp.lt.s32.totalorder %v621, 272
      %vm734 = vcmp.lt.s32.totalorder %v622, 272
      %vm735 = vcmp.lt.s32.totalorder %v623, 272
      %vm736 = vcmp.lt.s32.totalorder %v624, 272
      %vm737 = vcmp.lt.s32.totalorder %v625, 272
      %vm738 = vcmp.lt.s32.totalorder %v626, 272
      %vm739 = vcmp.lt.s32.totalorder %v627, 272
      %vm740 = vcmp.lt.s32.totalorder %v628, 272
      %vm741 = vcmp.lt.s32.totalorder %v629, 272
      %vm742 = vcmp.lt.s32.totalorder %v630, 272
      %vm743 = vcmp.lt.s32.totalorder %v631, 272
      %vm744 = vcmp.lt.s32.totalorder %v632, 272
      %vm745 = vcmp.lt.s32.totalorder %v633, 272
      %vm746 = vcmp.lt.s32.totalorder %v634, 272
      %vm747 = vcmp.lt.s32.totalorder %v635, 272
      %vm748 = vcmp.lt.s32.totalorder %v636, 272
      %vm749 = vcmp.lt.s32.totalorder %v637, 272
      %vm750 = vcmp.lt.s32.totalorder %v638, 272
      %vm751 = vcmp.lt.s32.totalorder %v639, 272
      %vm752 = vcmp.lt.s32.totalorder %v640, 272
      %vm753 = vcmp.lt.s32.totalorder %v641, 272
      %vm754 = vcmp.lt.s32.totalorder %v642, 272
      %vm755 = vcmp.lt.s32.totalorder %v643, 272
      %vm756 = vcmp.lt.s32.totalorder %v644, 272
      %vm757 = vcmp.lt.s32.totalorder %v645, 272
      %vm758 = vcmp.lt.s32.totalorder %v646, 272
      %vm759 = vcmp.lt.s32.totalorder %v647, 272
      %vm760 = vcmp.lt.s32.totalorder %v648, 272
      %vm761 = vcmp.lt.s32.totalorder %v649, 272
      %vm762 = vcmp.lt.s32.totalorder %v650, 272
      %vm763 = vcmp.lt.s32.totalorder %v651, 272
      %vm764 = vcmp.lt.s32.totalorder %v652, 272
      %vm765 = vcmp.lt.s32.totalorder %v653, 272
      %s766 = sadd.s32 %s23, 1
      %p767 = scmp.lt.s32.totalorder %s766, 1
      %s768 = scalar_select %p767, 1, 0
      %v769 = vstv %s768
      %vm770 = vcmp.eq.s32.totalorder %v769, 1
      %vm771 = vmor %vm730, %vm770
      %vm772 = vmor %vm731, %vm770
      %vm773 = vmor %vm732, %vm770
      %vm774 = vmor %vm733, %vm770
      %vm775 = vmor %vm734, %vm770
      %vm776 = vmor %vm735, %vm770
      %vm777 = vmor %vm736, %vm770
      %vm778 = vmor %vm737, %vm770
      %vm779 = vmor %vm738, %vm770
      %vm780 = vmor %vm739, %vm770
      %vm781 = vmor %vm740, %vm770
      %vm782 = vmor %vm741, %vm770
      %vm783 = vmor %vm742, %vm770
      %vm784 = vmor %vm743, %vm770
      %vm785 = vmor %vm744, %vm770
      %vm786 = vmor %vm745, %vm770
      %vm787 = vmor %vm746, %vm770
      %vm788 = vmor %vm747, %vm770
      %vm789 = vmor %vm748, %vm770
      %vm790 = vmor %vm749, %vm770
      %vm791 = vmor %vm750, %vm770
      %vm792 = vmor %vm751, %vm770
      %vm793 = vmor %vm752, %vm770
      %vm794 = vmor %vm753, %vm770
      %vm795 = vmor %vm754, %vm770
      %vm796 = vmor %vm755, %vm770
      %vm797 = vmor %vm756, %vm770
      %vm798 = vmor %vm757, %vm770
      %vm799 = vmor %vm758, %vm770
      %vm800 = vmor %vm759, %vm770
      %vm801 = vmor %vm760, %vm770
      %vm802 = vmor %vm761, %vm770
      %vm803 = vmor %vm762, %vm770
      %vm804 = vmor %vm763, %vm770
      %vm805 = vmor %vm764, %vm770
      %vm806 = vmor %vm765, %vm770
      %vm807 = vmand %vm694, %vm771
      %vm808 = vmand %vm695, %vm772
      %vm809 = vmand %vm696, %vm773
      %vm810 = vmand %vm697, %vm774
      %vm811 = vmand %vm698, %vm775
      %vm812 = vmand %vm699, %vm776
      %vm813 = vmand %vm700, %vm777
      %vm814 = vmand %vm701, %vm778
      %vm815 = vmand %vm702, %vm779
      %vm816 = vmand %vm703, %vm780
      %vm817 = vmand %vm704, %vm781
      %vm818 = vmand %vm705, %vm782
      %vm819 = vmand %vm706, %vm783
      %vm820 = vmand %vm707, %vm784
      %vm821 = vmand %vm708, %vm785
      %vm822 = vmand %vm709, %vm786
      %vm823 = vmand %vm710, %vm787
      %vm824 = vmand %vm711, %vm788
      %vm825 = vmand %vm712, %vm789
      %vm826 = vmand %vm713, %vm790
      %vm827 = vmand %vm714, %vm791
      %vm828 = vmand %vm715, %vm792
      %vm829 = vmand %vm716, %vm793
      %vm830 = vmand %vm717, %vm794
      %vm831 = vmand %vm718, %vm795
      %vm832 = vmand %vm719, %vm796
      %vm833 = vmand %vm720, %vm797
      %vm834 = vmand %vm721, %vm798
      %vm835 = vmand %vm722, %vm799
      %vm836 = vmand %vm723, %vm800
      %vm837 = vmand %vm724, %vm801
      %vm838 = vmand %vm725, %vm802
      %vm839 = vmand %vm726, %vm803
      %vm840 = vmand %vm727, %vm804
      %vm841 = vmand %vm728, %vm805
      %vm842 = vmand %vm729, %vm806
      %v843 = vsel %vm807, 1, 0
      %v844 = vsel %vm808, 1, 0
      %v845 = vsel %vm809, 1, 0
      %v846 = vsel %vm810, 1, 0
      %v847 = vsel %vm811, 1, 0
      %v848 = vsel %vm812, 1, 0
      %v849 = vsel %vm813, 1, 0
      %v850 = vsel %vm814, 1, 0
      %v851 = vsel %vm815, 1, 0
      %v852 = vsel %vm816, 1, 0
      %v853 = vsel %vm817, 1, 0
      %v854 = vsel %vm818, 1, 0
      %v855 = vsel %vm819, 1, 0
      %v856 = vsel %vm820, 1, 0
      %v857 = vsel %vm821, 1, 0
      %v858 = vsel %vm822, 1, 0
      %v859 = vsel %vm823, 1, 0
      %v860 = vsel %vm824, 1, 0
      %v861 = vsel %vm825, 1, 0
      %v862 = vsel %vm826, 1, 0
      %v863 = vsel %vm827, 1, 0
      %v864 = vsel %vm828, 1, 0
      %v865 = vsel %vm829, 1, 0
      %v866 = vsel %vm830, 1, 0
      %v867 = vsel %vm831, 1, 0
      %v868 = vsel %vm832, 1, 0
      %v869 = vsel %vm833, 1, 0
      %v870 = vsel %vm834, 1, 0
      %v871 = vsel %vm835, 1, 0
      %v872 = vsel %vm836, 1, 0
      %v873 = vsel %vm837, 1, 0
      %v874 = vsel %vm838, 1, 0
      %v875 = vsel %vm839, 1, 0
      %v876 = vsel %vm840, 1, 0
      %v877 = vsel %vm841, 1, 0
      %v878 = vsel %vm842, 1, 0
      %vm879 = vcmp.eq.s32.totalorder %v843, 1
      %vm880 = vcmp.eq.s32.totalorder %v844, 1
      %vm881 = vcmp.eq.s32.totalorder %v845, 1
      %vm882 = vcmp.eq.s32.totalorder %v846, 1
      %vm883 = vcmp.eq.s32.totalorder %v847, 1
      %vm884 = vcmp.eq.s32.totalorder %v848, 1
      %vm885 = vcmp.eq.s32.totalorder %v849, 1
      %vm886 = vcmp.eq.s32.totalorder %v850, 1
      %vm887 = vcmp.eq.s32.totalorder %v851, 1
      %vm888 = vcmp.eq.s32.totalorder %v852, 1
      %vm889 = vcmp.eq.s32.totalorder %v853, 1
      %vm890 = vcmp.eq.s32.totalorder %v854, 1
      %vm891 = vcmp.eq.s32.totalorder %v855, 1
      %vm892 = vcmp.eq.s32.totalorder %v856, 1
      %vm893 = vcmp.eq.s32.totalorder %v857, 1
      %vm894 = vcmp.eq.s32.totalorder %v858, 1
      %vm895 = vcmp.eq.s32.totalorder %v859, 1
      %vm896 = vcmp.eq.s32.totalorder %v860, 1
      %vm897 = vcmp.eq.s32.totalorder %v861, 1
      %vm898 = vcmp.eq.s32.totalorder %v862, 1
      %vm899 = vcmp.eq.s32.totalorder %v863, 1
      %vm900 = vcmp.eq.s32.totalorder %v864, 1
      %vm901 = vcmp.eq.s32.totalorder %v865, 1
      %vm902 = vcmp.eq.s32.totalorder %v866, 1
      %vm903 = vcmp.eq.s32.totalorder %v867, 1
      %vm904 = vcmp.eq.s32.totalorder %v868, 1
      %vm905 = vcmp.eq.s32.totalorder %v869, 1
      %vm906 = vcmp.eq.s32.totalorder %v870, 1
      %vm907 = vcmp.eq.s32.totalorder %v871, 1
      %vm908 = vcmp.eq.s32.totalorder %v872, 1
      %vm909 = vcmp.eq.s32.totalorder %v873, 1
      %vm910 = vcmp.eq.s32.totalorder %v874, 1
      %vm911 = vcmp.eq.s32.totalorder %v875, 1
      %vm912 = vcmp.eq.s32.totalorder %v876, 1
      %vm913 = vcmp.eq.s32.totalorder %v877, 1
      %vm914 = vcmp.eq.s32.totalorder %v878, 1
      %v915 = vsel %vm879, %v475, 0.0
      %v916 = vsel %vm880, %v478, 0.0
      %v917 = vsel %vm881, %v483, 0.0
      %v918 = vsel %vm882, %v486, 0.0
      %v919 = vsel %vm883, %v491, 0.0
      %v920 = vsel %vm884, %v494, 0.0
      %v921 = vsel %vm885, %v499, 0.0
      %v922 = vsel %vm886, %v502, 0.0
      %v923 = vsel %vm887, %v507, 0.0
      %v924 = vsel %vm888, %v510, 0.0
      %v925 = vsel %vm889, %v515, 0.0
      %v926 = vsel %vm890, %v518, 0.0
      %v927 = vsel %vm891, %v523, 0.0
      %v928 = vsel %vm892, %v526, 0.0
      %v929 = vsel %vm893, %v531, 0.0
      %v930 = vsel %vm894, %v534, 0.0
      %v931 = vsel %vm895, %v539, 0.0
      %v932 = vsel %vm896, %v542, 0.0
      %v933 = vsel %vm897, %v547, 0.0
      %v934 = vsel %vm898, %v550, 0.0
      %v935 = vsel %vm899, %v555, 0.0
      %v936 = vsel %vm900, %v558, 0.0
      %v937 = vsel %vm901, %v563, 0.0
      %v938 = vsel %vm902, %v566, 0.0
      %v939 = vsel %vm903, %v571, 0.0
      %v940 = vsel %vm904, %v574, 0.0
      %v941 = vsel %vm905, %v579, 0.0
      %v942 = vsel %vm906, %v582, 0.0
      %v943 = vsel %vm907, %v587, 0.0
      %v944 = vsel %vm908, %v590, 0.0
      %v945 = vsel %vm909, %v595, 0.0
      %v946 = vsel %vm910, %v598, 0.0
      %v947 = vsel %vm911, %v603, 0.0
      %v948 = vsel %vm912, %v606, 0.0
      %v949 = vsel %vm913, %v611, 0.0
      %v950 = vsel %vm914, %v614, 0.0
      %vm951 = vcmp.lt.s32.totalorder %v618, 0
      %v952 = vsub.s32 0, %v618
      %v953 = vsel %vm951, %v952, %v618
      %v954 = vshrl.u32 %v953, 4
      %v955 = vand.u32 %v953, 15
      %v956 = vsub.s32 0, %v955
      %v957 = vsel %vm951, %v956, %v955
      %vm958 = vcmp.lt.s32.totalorder %v619, 0
      %v959 = vsub.s32 0, %v619
      %v960 = vsel %vm958, %v959, %v619
      %v961 = vshrl.u32 %v960, 4
      %v962 = vand.u32 %v960, 15
      %v963 = vsub.s32 0, %v962
      %v964 = vsel %vm958, %v963, %v962
      %vm965 = vcmp.lt.s32.totalorder %v620, 0
      %v966 = vsub.s32 0, %v620
      %v967 = vsel %vm965, %v966, %v620
      %v968 = vshrl.u32 %v967, 4
      %v969 = vand.u32 %v967, 15
      %v970 = vsub.s32 0, %v969
      %v971 = vsel %vm965, %v970, %v969
      %vm972 = vcmp.lt.s32.totalorder %v621, 0
      %v973 = vsub.s32 0, %v621
      %v974 = vsel %vm972, %v973, %v621
      %v975 = vshrl.u32 %v974, 4
      %v976 = vand.u32 %v974, 15
      %v977 = vsub.s32 0, %v976
      %v978 = vsel %vm972, %v977, %v976
      %vm979 = vcmp.lt.s32.totalorder %v622, 0
      %v980 = vsub.s32 0, %v622
      %v981 = vsel %vm979, %v980, %v622
      %v982 = vshrl.u32 %v981, 4
      %v983 = vand.u32 %v981, 15
      %v984 = vsub.s32 0, %v983
      %v985 = vsel %vm979, %v984, %v983
      %vm986 = vcmp.lt.s32.totalorder %v623, 0
      %v987 = vsub.s32 0, %v623
      %v988 = vsel %vm986, %v987, %v623
      %v989 = vshrl.u32 %v988, 4
      %v990 = vand.u32 %v988, 15
      %v991 = vsub.s32 0, %v990
      %v992 = vsel %vm986, %v991, %v990
      %vm993 = vcmp.lt.s32.totalorder %v624, 0
      %v994 = vsub.s32 0, %v624
      %v995 = vsel %vm993, %v994, %v624
      %v996 = vshrl.u32 %v995, 4
      %v997 = vand.u32 %v995, 15
      %v998 = vsub.s32 0, %v997
      %v999 = vsel %vm993, %v998, %v997
      %vm1000 = vcmp.lt.s32.totalorder %v625, 0
      %v1001 = vsub.s32 0, %v625
      %v1002 = vsel %vm1000, %v1001, %v625
      %v1003 = vshrl.u32 %v1002, 4
      %v1004 = vand.u32 %v1002, 15
      %v1005 = vsub.s32 0, %v1004
      %v1006 = vsel %vm1000, %v1005, %v1004
      %vm1007 = vcmp.lt.s32.totalorder %v626, 0
      %v1008 = vsub.s32 0, %v626
      %v1009 = vsel %vm1007, %v1008, %v626
      %v1010 = vshrl.u32 %v1009, 4
      %v1011 = vand.u32 %v1009, 15
      %v1012 = vsub.s32 0, %v1011
      %v1013 = vsel %vm1007, %v1012, %v1011
      %vm1014 = vcmp.lt.s32.totalorder %v627, 0
      %v1015 = vsub.s32 0, %v627
      %v1016 = vsel %vm1014, %v1015, %v627
      %v1017 = vshrl.u32 %v1016, 4
      %v1018 = vand.u32 %v1016, 15
      %v1019 = vsub.s32 0, %v1018
      %v1020 = vsel %vm1014, %v1019, %v1018
      %vm1021 = vcmp.lt.s32.totalorder %v628, 0
      %v1022 = vsub.s32 0, %v628
      %v1023 = vsel %vm1021, %v1022, %v628
      %v1024 = vshrl.u32 %v1023, 4
      %v1025 = vand.u32 %v1023, 15
      %v1026 = vsub.s32 0, %v1025
      %v1027 = vsel %vm1021, %v1026, %v1025
      %vm1028 = vcmp.lt.s32.totalorder %v629, 0
      %v1029 = vsub.s32 0, %v629
      %v1030 = vsel %vm1028, %v1029, %v629
      %v1031 = vshrl.u32 %v1030, 4
      %v1032 = vand.u32 %v1030, 15
      %v1033 = vsub.s32 0, %v1032
      %v1034 = vsel %vm1028, %v1033, %v1032
      %vm1035 = vcmp.lt.s32.totalorder %v630, 0
      %v1036 = vsub.s32 0, %v630
      %v1037 = vsel %vm1035, %v1036, %v630
      %v1038 = vshrl.u32 %v1037, 4
      %v1039 = vand.u32 %v1037, 15
      %v1040 = vsub.s32 0, %v1039
      %v1041 = vsel %vm1035, %v1040, %v1039
      %vm1042 = vcmp.lt.s32.totalorder %v631, 0
      %v1043 = vsub.s32 0, %v631
      %v1044 = vsel %vm1042, %v1043, %v631
      %v1045 = vshrl.u32 %v1044, 4
      %v1046 = vand.u32 %v1044, 15
      %v1047 = vsub.s32 0, %v1046
      %v1048 = vsel %vm1042, %v1047, %v1046
      %vm1049 = vcmp.lt.s32.totalorder %v632, 0
      %v1050 = vsub.s32 0, %v632
      %v1051 = vsel %vm1049, %v1050, %v632
      %v1052 = vshrl.u32 %v1051, 4
      %v1053 = vand.u32 %v1051, 15
      %v1054 = vsub.s32 0, %v1053
      %v1055 = vsel %vm1049, %v1054, %v1053
      %vm1056 = vcmp.lt.s32.totalorder %v633, 0
      %v1057 = vsub.s32 0, %v633
      %v1058 = vsel %vm1056, %v1057, %v633
      %v1059 = vshrl.u32 %v1058, 4
      %v1060 = vand.u32 %v1058, 15
      %v1061 = vsub.s32 0, %v1060
      %v1062 = vsel %vm1056, %v1061, %v1060
      %vm1063 = vcmp.lt.s32.totalorder %v634, 0
      %v1064 = vsub.s32 0, %v634
      %v1065 = vsel %vm1063, %v1064, %v634
      %v1066 = vshrl.u32 %v1065, 4
      %v1067 = vand.u32 %v1065, 15
      %v1068 = vsub.s32 0, %v1067
      %v1069 = vsel %vm1063, %v1068, %v1067
      %vm1070 = vcmp.lt.s32.totalorder %v635, 0
      %v1071 = vsub.s32 0, %v635
      %v1072 = vsel %vm1070, %v1071, %v635
      %v1073 = vshrl.u32 %v1072, 4
      %v1074 = vand.u32 %v1072, 15
      %v1075 = vsub.s32 0, %v1074
      %v1076 = vsel %vm1070, %v1075, %v1074
      %vm1077 = vcmp.lt.s32.totalorder %v636, 0
      %v1078 = vsub.s32 0, %v636
      %v1079 = vsel %vm1077, %v1078, %v636
      %v1080 = vshrl.u32 %v1079, 4
      %v1081 = vand.u32 %v1079, 15
      %v1082 = vsub.s32 0, %v1081
      %v1083 = vsel %vm1077, %v1082, %v1081
      %vm1084 = vcmp.lt.s32.totalorder %v637, 0
      %v1085 = vsub.s32 0, %v637
      %v1086 = vsel %vm1084, %v1085, %v637
      %v1087 = vshrl.u32 %v1086, 4
      %v1088 = vand.u32 %v1086, 15
      %v1089 = vsub.s32 0, %v1088
      %v1090 = vsel %vm1084, %v1089, %v1088
      %vm1091 = vcmp.lt.s32.totalorder %v638, 0
      %v1092 = vsub.s32 0, %v638
      %v1093 = vsel %vm1091, %v1092, %v638
      %v1094 = vshrl.u32 %v1093, 4
      %v1095 = vand.u32 %v1093, 15
      %v1096 = vsub.s32 0, %v1095
      %v1097 = vsel %vm1091, %v1096, %v1095
      %vm1098 = vcmp.lt.s32.totalorder %v639, 0
      %v1099 = vsub.s32 0, %v639
      %v1100 = vsel %vm1098, %v1099, %v639
      %v1101 = vshrl.u32 %v1100, 4
      %v1102 = vand.u32 %v1100, 15
      %v1103 = vsub.s32 0, %v1102
      %v1104 = vsel %vm1098, %v1103, %v1102
      %vm1105 = vcmp.lt.s32.totalorder %v640, 0
      %v1106 = vsub.s32 0, %v640
      %v1107 = vsel %vm1105, %v1106, %v640
      %v1108 = vshrl.u32 %v1107, 4
      %v1109 = vand.u32 %v1107, 15
      %v1110 = vsub.s32 0, %v1109
      %v1111 = vsel %vm1105, %v1110, %v1109
      %vm1112 = vcmp.lt.s32.totalorder %v641, 0
      %v1113 = vsub.s32 0, %v641
      %v1114 = vsel %vm1112, %v1113, %v641
      %v1115 = vshrl.u32 %v1114, 4
      %v1116 = vand.u32 %v1114, 15
      %v1117 = vsub.s32 0, %v1116
      %v1118 = vsel %vm1112, %v1117, %v1116
      %vm1119 = vcmp.lt.s32.totalorder %v642, 0
      %v1120 = vsub.s32 0, %v642
      %v1121 = vsel %vm1119, %v1120, %v642
      %v1122 = vshrl.u32 %v1121, 4
      %v1123 = vand.u32 %v1121, 15
      %v1124 = vsub.s32 0, %v1123
      %v1125 = vsel %vm1119, %v1124, %v1123
      %vm1126 = vcmp.lt.s32.totalorder %v643, 0
      %v1127 = vsub.s32 0, %v643
      %v1128 = vsel %vm1126, %v1127, %v643
      %v1129 = vshrl.u32 %v1128, 4
      %v1130 = vand.u32 %v1128, 15
      %v1131 = vsub.s32 0, %v1130
      %v1132 = vsel %vm1126, %v1131, %v1130
      %vm1133 = vcmp.lt.s32.totalorder %v644, 0
      %v1134 = vsub.s32 0, %v644
      %v1135 = vsel %vm1133, %v1134, %v644
      %v1136 = vshrl.u32 %v1135, 4
      %v1137 = vand.u32 %v1135, 15
      %v1138 = vsub.s32 0, %v1137
      %v1139 = vsel %vm1133, %v1138, %v1137
      %vm1140 = vcmp.lt.s32.totalorder %v645, 0
      %v1141 = vsub.s32 0, %v645
      %v1142 = vsel %vm1140, %v1141, %v645
      %v1143 = vshrl.u32 %v1142, 4
      %v1144 = vand.u32 %v1142, 15
      %v1145 = vsub.s32 0, %v1144
      %v1146 = vsel %vm1140, %v1145, %v1144
      %vm1147 = vcmp.lt.s32.totalorder %v646, 0
      %v1148 = vsub.s32 0, %v646
      %v1149 = vsel %vm1147, %v1148, %v646
      %v1150 = vshrl.u32 %v1149, 4
      %v1151 = vand.u32 %v1149, 15
      %v1152 = vsub.s32 0, %v1151
      %v1153 = vsel %vm1147, %v1152, %v1151
      %vm1154 = vcmp.lt.s32.totalorder %v647, 0
      %v1155 = vsub.s32 0, %v647
      %v1156 = vsel %vm1154, %v1155, %v647
      %v1157 = vshrl.u32 %v1156, 4
      %v1158 = vand.u32 %v1156, 15
      %v1159 = vsub.s32 0, %v1158
      %v1160 = vsel %vm1154, %v1159, %v1158
      %vm1161 = vcmp.lt.s32.totalorder %v648, 0
      %v1162 = vsub.s32 0, %v648
      %v1163 = vsel %vm1161, %v1162, %v648
      %v1164 = vshrl.u32 %v1163, 4
      %v1165 = vand.u32 %v1163, 15
      %v1166 = vsub.s32 0, %v1165
      %v1167 = vsel %vm1161, %v1166, %v1165
      %vm1168 = vcmp.lt.s32.totalorder %v649, 0
      %v1169 = vsub.s32 0, %v649
      %v1170 = vsel %vm1168, %v1169, %v649
      %v1171 = vshrl.u32 %v1170, 4
      %v1172 = vand.u32 %v1170, 15
      %v1173 = vsub.s32 0, %v1172
      %v1174 = vsel %vm1168, %v1173, %v1172
      %vm1175 = vcmp.lt.s32.totalorder %v650, 0
      %v1176 = vsub.s32 0, %v650
      %v1177 = vsel %vm1175, %v1176, %v650
      %v1178 = vshrl.u32 %v1177, 4
      %v1179 = vand.u32 %v1177, 15
      %v1180 = vsub.s32 0, %v1179
      %v1181 = vsel %vm1175, %v1180, %v1179
      %vm1182 = vcmp.lt.s32.totalorder %v651, 0
      %v1183 = vsub.s32 0, %v651
      %v1184 = vsel %vm1182, %v1183, %v651
      %v1185 = vshrl.u32 %v1184, 4
      %v1186 = vand.u32 %v1184, 15
      %v1187 = vsub.s32 0, %v1186
      %v1188 = vsel %vm1182, %v1187, %v1186
      %vm1189 = vcmp.lt.s32.totalorder %v652, 0
      %v1190 = vsub.s32 0, %v652
      %v1191 = vsel %vm1189, %v1190, %v652
      %v1192 = vshrl.u32 %v1191, 4
      %v1193 = vand.u32 %v1191, 15
      %v1194 = vsub.s32 0, %v1193
      %v1195 = vsel %vm1189, %v1194, %v1193
      %vm1196 = vcmp.lt.s32.totalorder %v653, 0
      %v1197 = vsub.s32 0, %v653
      %v1198 = vsel %vm1196, %v1197, %v653
      %v1199 = vshrl.u32 %v1198, 4
      %v1200 = vand.u32 %v1198, 15
      %v1201 = vsub.s32 0, %v1200
      %v1202 = vsel %vm1196, %v1201, %v1200
      %vm1203 = vcmp.ne.s32.totalorder %v957, 0
      %vm1204 = vcmp.ne.s32.totalorder %v964, 0
      %vm1205 = vcmp.ne.s32.totalorder %v971, 0
      %vm1206 = vcmp.ne.s32.totalorder %v978, 0
      %vm1207 = vcmp.ne.s32.totalorder %v985, 0
      %vm1208 = vcmp.ne.s32.totalorder %v992, 0
      %vm1209 = vcmp.ne.s32.totalorder %v999, 0
      %vm1210 = vcmp.ne.s32.totalorder %v1006, 0
      %vm1211 = vcmp.ne.s32.totalorder %v1013, 0
      %vm1212 = vcmp.ne.s32.totalorder %v1020, 0
      %vm1213 = vcmp.ne.s32.totalorder %v1027, 0
      %vm1214 = vcmp.ne.s32.totalorder %v1034, 0
      %vm1215 = vcmp.ne.s32.totalorder %v1041, 0
      %vm1216 = vcmp.ne.s32.totalorder %v1048, 0
      %vm1217 = vcmp.ne.s32.totalorder %v1055, 0
      %vm1218 = vcmp.ne.s32.totalorder %v1062, 0
      %vm1219 = vcmp.ne.s32.totalorder %v1069, 0
      %vm1220 = vcmp.ne.s32.totalorder %v1076, 0
      %vm1221 = vcmp.ne.s32.totalorder %v1083, 0
      %vm1222 = vcmp.ne.s32.totalorder %v1090, 0
      %vm1223 = vcmp.ne.s32.totalorder %v1097, 0
      %vm1224 = vcmp.ne.s32.totalorder %v1104, 0
      %vm1225 = vcmp.ne.s32.totalorder %v1111, 0
      %vm1226 = vcmp.ne.s32.totalorder %v1118, 0
      %vm1227 = vcmp.ne.s32.totalorder %v1125, 0
      %vm1228 = vcmp.ne.s32.totalorder %v1132, 0
      %vm1229 = vcmp.ne.s32.totalorder %v1139, 0
      %vm1230 = vcmp.ne.s32.totalorder %v1146, 0
      %vm1231 = vcmp.ne.s32.totalorder %v1153, 0
      %vm1232 = vcmp.ne.s32.totalorder %v1160, 0
      %vm1233 = vcmp.ne.s32.totalorder %v1167, 0
      %vm1234 = vcmp.ne.s32.totalorder %v1174, 0
      %vm1235 = vcmp.ne.s32.totalorder %v1181, 0
      %vm1236 = vcmp.ne.s32.totalorder %v1188, 0
      %vm1237 = vcmp.ne.s32.totalorder %v1195, 0
      %vm1238 = vcmp.ne.s32.totalorder %v1202, 0
      %vm1239 = vcmp.lt.s32.totalorder %v957, 0
      %vm1240 = vcmp.lt.s32.totalorder %v964, 0
      %vm1241 = vcmp.lt.s32.totalorder %v971, 0
      %vm1242 = vcmp.lt.s32.totalorder %v978, 0
      %vm1243 = vcmp.lt.s32.totalorder %v985, 0
      %vm1244 = vcmp.lt.s32.totalorder %v992, 0
      %vm1245 = vcmp.lt.s32.totalorder %v999, 0
      %vm1246 = vcmp.lt.s32.totalorder %v1006, 0
      %vm1247 = vcmp.lt.s32.totalorder %v1013, 0
      %vm1248 = vcmp.lt.s32.totalorder %v1020, 0
      %vm1249 = vcmp.lt.s32.totalorder %v1027, 0
      %vm1250 = vcmp.lt.s32.totalorder %v1034, 0
      %vm1251 = vcmp.lt.s32.totalorder %v1041, 0
      %vm1252 = vcmp.lt.s32.totalorder %v1048, 0
      %vm1253 = vcmp.lt.s32.totalorder %v1055, 0
      %vm1254 = vcmp.lt.s32.totalorder %v1062, 0
      %vm1255 = vcmp.lt.s32.totalorder %v1069, 0
      %vm1256 = vcmp.lt.s32.totalorder %v1076, 0
      %vm1257 = vcmp.lt.s32.totalorder %v1083, 0
      %vm1258 = vcmp.lt.s32.totalorder %v1090, 0
      %vm1259 = vcmp.lt.s32.totalorder %v1097, 0
      %vm1260 = vcmp.lt.s32.totalorder %v1104, 0
      %vm1261 = vcmp.lt.s32.totalorder %v1111, 0
      %vm1262 = vcmp.lt.s32.totalorder %v1118, 0
      %vm1263 = vcmp.lt.s32.totalorder %v1125, 0
      %vm1264 = vcmp.lt.s32.totalorder %v1132, 0
      %vm1265 = vcmp.lt.s32.totalorder %v1139, 0
      %vm1266 = vcmp.lt.s32.totalorder %v1146, 0
      %vm1267 = vcmp.lt.s32.totalorder %v1153, 0
      %vm1268 = vcmp.lt.s32.totalorder %v1160, 0
      %vm1269 = vcmp.lt.s32.totalorder %v1167, 0
      %vm1270 = vcmp.lt.s32.totalorder %v1174, 0
      %vm1271 = vcmp.lt.s32.totalorder %v1181, 0
      %vm1272 = vcmp.lt.s32.totalorder %v1188, 0
      %vm1273 = vcmp.lt.s32.totalorder %v1195, 0
      %vm1274 = vcmp.lt.s32.totalorder %v1202, 0
      %vm1275 = vmand %vm1239, %vm1203
      %vm1276 = vmand %vm1240, %vm1204
      %vm1277 = vmand %vm1241, %vm1205
      %vm1278 = vmand %vm1242, %vm1206
      %vm1279 = vmand %vm1243, %vm1207
      %vm1280 = vmand %vm1244, %vm1208
      %vm1281 = vmand %vm1245, %vm1209
      %vm1282 = vmand %vm1246, %vm1210
      %vm1283 = vmand %vm1247, %vm1211
      %vm1284 = vmand %vm1248, %vm1212
      %vm1285 = vmand %vm1249, %vm1213
      %vm1286 = vmand %vm1250, %vm1214
      %vm1287 = vmand %vm1251, %vm1215
      %vm1288 = vmand %vm1252, %vm1216
      %vm1289 = vmand %vm1253, %vm1217
      %vm1290 = vmand %vm1254, %vm1218
      %vm1291 = vmand %vm1255, %vm1219
      %vm1292 = vmand %vm1256, %vm1220
      %vm1293 = vmand %vm1257, %vm1221
      %vm1294 = vmand %vm1258, %vm1222
      %vm1295 = vmand %vm1259, %vm1223
      %vm1296 = vmand %vm1260, %vm1224
      %vm1297 = vmand %vm1261, %vm1225
      %vm1298 = vmand %vm1262, %vm1226
      %vm1299 = vmand %vm1263, %vm1227
      %vm1300 = vmand %vm1264, %vm1228
      %vm1301 = vmand %vm1265, %vm1229
      %vm1302 = vmand %vm1266, %vm1230
      %vm1303 = vmand %vm1267, %vm1231
      %vm1304 = vmand %vm1268, %vm1232
      %vm1305 = vmand %vm1269, %vm1233
      %vm1306 = vmand %vm1270, %vm1234
      %vm1307 = vmand %vm1271, %vm1235
      %vm1308 = vmand %vm1272, %vm1236
      %vm1309 = vmand %vm1273, %vm1237
      %vm1310 = vmand %vm1274, %vm1238
      %v1311 = vadd.s32 %v957, 16
      %v1312 = vadd.s32 %v964, 16
      %v1313 = vadd.s32 %v971, 16
      %v1314 = vadd.s32 %v978, 16
      %v1315 = vadd.s32 %v985, 16
      %v1316 = vadd.s32 %v992, 16
      %v1317 = vadd.s32 %v999, 16
      %v1318 = vadd.s32 %v1006, 16
      %v1319 = vadd.s32 %v1013, 16
      %v1320 = vadd.s32 %v1020, 16
      %v1321 = vadd.s32 %v1027, 16
      %v1322 = vadd.s32 %v1034, 16
      %v1323 = vadd.s32 %v1041, 16
      %v1324 = vadd.s32 %v1048, 16
      %v1325 = vadd.s32 %v1055, 16
      %v1326 = vadd.s32 %v1062, 16
      %v1327 = vadd.s32 %v1069, 16
      %v1328 = vadd.s32 %v1076, 16
      %v1329 = vadd.s32 %v1083, 16
      %v1330 = vadd.s32 %v1090, 16
      %v1331 = vadd.s32 %v1097, 16
      %v1332 = vadd.s32 %v1104, 16
      %v1333 = vadd.s32 %v1111, 16
      %v1334 = vadd.s32 %v1118, 16
      %v1335 = vadd.s32 %v1125, 16
      %v1336 = vadd.s32 %v1132, 16
      %v1337 = vadd.s32 %v1139, 16
      %v1338 = vadd.s32 %v1146, 16
      %v1339 = vadd.s32 %v1153, 16
      %v1340 = vadd.s32 %v1160, 16
      %v1341 = vadd.s32 %v1167, 16
      %v1342 = vadd.s32 %v1174, 16
      %v1343 = vadd.s32 %v1181, 16
      %v1344 = vadd.s32 %v1188, 16
      %v1345 = vadd.s32 %v1195, 16
      %v1346 = vadd.s32 %v1202, 16
      %v1347 = vsel %vm1275, %v1311, %v957
      %v1348 = vsel %vm1276, %v1312, %v964
      %v1349 = vsel %vm1277, %v1313, %v971
      %v1350 = vsel %vm1278, %v1314, %v978
      %v1351 = vsel %vm1279, %v1315, %v985
      %v1352 = vsel %vm1280, %v1316, %v992
      %v1353 = vsel %vm1281, %v1317, %v999
      %v1354 = vsel %vm1282, %v1318, %v1006
      %v1355 = vsel %vm1283, %v1319, %v1013
      %v1356 = vsel %vm1284, %v1320, %v1020
      %v1357 = vsel %vm1285, %v1321, %v1027
      %v1358 = vsel %vm1286, %v1322, %v1034
      %v1359 = vsel %vm1287, %v1323, %v1041
      %v1360 = vsel %vm1288, %v1324, %v1048
      %v1361 = vsel %vm1289, %v1325, %v1055
      %v1362 = vsel %vm1290, %v1326, %v1062
      %v1363 = vsel %vm1291, %v1327, %v1069
      %v1364 = vsel %vm1292, %v1328, %v1076
      %v1365 = vsel %vm1293, %v1329, %v1083
      %v1366 = vsel %vm1294, %v1330, %v1090
      %v1367 = vsel %vm1295, %v1331, %v1097
      %v1368 = vsel %vm1296, %v1332, %v1104
      %v1369 = vsel %vm1297, %v1333, %v1111
      %v1370 = vsel %vm1298, %v1334, %v1118
      %v1371 = vsel %vm1299, %v1335, %v1125
      %v1372 = vsel %vm1300, %v1336, %v1132
      %v1373 = vsel %vm1301, %v1337, %v1139
      %v1374 = vsel %vm1302, %v1338, %v1146
      %v1375 = vsel %vm1303, %v1339, %v1153
      %v1376 = vsel %vm1304, %v1340, %v1160
      %v1377 = vsel %vm1305, %v1341, %v1167
      %v1378 = vsel %vm1306, %v1342, %v1174
      %v1379 = vsel %vm1307, %v1343, %v1181
      %v1380 = vsel %vm1308, %v1344, %v1188
      %v1381 = vsel %vm1309, %v1345, %v1195
      %v1382 = vsel %vm1310, %v1346, %v1202
      %v1383 = vld [vmem:[%s3] sm:$0xff]
      %v1384 = vld [vmem:[%s3 + $0x8] sm:$0x1]
      %v1385 = vlaneseq
      %v1386 = vshrl.u32 %v1385, 7
      %v1387 = vsub.s32 4, %v1386
      %v1388 = vrot.slane %v1383, %v1387
      %v1389 = vmul.f32 %v917, %v1388
      %v1390 = vmul.f32 %v918, %v1388
      %v1391 = vmul.f32 %v919, %v1388
      %v1392 = vmul.f32 %v920, %v1388
      %v1393 = vmul.f32 %v921, %v1388
      %v1394 = vmul.f32 %v922, %v1388
      %v1395 = vmul.f32 %v923, %v1388
      %v1396 = vmul.f32 %v924, %v1388
      %v1397 = vmul.f32 %v925, %v1388
      %v1398 = vmul.f32 %v926, %v1388
      %v1399 = vmul.f32 %v927, %v1388
      %v1400 = vmul.f32 %v928, %v1388
      %v1401 = vmul.f32 %v929, %v1388
      %v1402 = vmul.f32 %v930, %v1388
      %v1403 = vmul.f32 %v931, %v1388
      %v1404 = vmul.f32 %v932, %v1388
      %v1405 = vmul.f32 %v933, %v1388
      %v1406 = vmul.f32 %v934, %v1388
      %v1407 = vmul.f32 %v935, %v1388
      %v1408 = vmul.f32 %v936, %v1388
      %v1409 = vmul.f32 %v937, %v1388
      %v1410 = vmul.f32 %v938, %v1388
      %v1411 = vmul.f32 %v939, %v1388
      %v1412 = vmul.f32 %v940, %v1388
      %v1413 = vmul.f32 %v941, %v1388
      %v1414 = vmul.f32 %v942, %v1388
      %v1415 = vmul.f32 %v943, %v1388
      %v1416 = vmul.f32 %v944, %v1388
      %v1417 = vmul.f32 %v945, %v1388
      %v1418 = vmul.f32 %v946, %v1388
      %v1419 = vmul.f32 %v947, %v1388
      %v1420 = vmul.f32 %v948, %v1388
      %v1421 = vld [vmem:[%s4] sm:$0x1]
      %v1423 = vlaneseq
      %v1424 = vshrl.u32 %v1423, 7
      %v1425 = vsub.s32 0, %v1424
      %v1426 = vrot.slane %v1421, %v1425
      %v1428 = vadd.f32 %v1389, %v1426
      %v1429 = vadd.f32 %v1390, %v1426
      %v1430 = vadd.f32 %v1391, %v1426
      %v1431 = vadd.f32 %v1392, %v1426
      %v1432 = vadd.f32 %v1393, %v1426
      %v1433 = vadd.f32 %v1394, %v1426
      %v1434 = vadd.f32 %v1395, %v1426
      %v1435 = vadd.f32 %v1396, %v1426
      %v1436 = vadd.f32 %v1397, %v1426
      %v1437 = vadd.f32 %v1398, %v1426
      %v1438 = vadd.f32 %v1399, %v1426
      %v1439 = vadd.f32 %v1400, %v1426
      %v1440 = vadd.f32 %v1401, %v1426
      %v1441 = vadd.f32 %v1402, %v1426
      %v1442 = vadd.f32 %v1403, %v1426
      %v1443 = vadd.f32 %v1404, %v1426
      %v1444 = vadd.f32 %v1405, %v1426
      %v1445 = vadd.f32 %v1406, %v1426
      %v1446 = vadd.f32 %v1407, %v1426
      %v1447 = vadd.f32 %v1408, %v1426
      %v1448 = vadd.f32 %v1409, %v1426
      %v1449 = vadd.f32 %v1410, %v1426
      %v1450 = vadd.f32 %v1411, %v1426
      %v1451 = vadd.f32 %v1412, %v1426
      %v1452 = vadd.f32 %v1413, %v1426
      %v1453 = vadd.f32 %v1414, %v1426
      %v1454 = vadd.f32 %v1415, %v1426
      %v1455 = vadd.f32 %v1416, %v1426
      %v1456 = vadd.f32 %v1417, %v1426
      %v1457 = vadd.f32 %v1418, %v1426
      %v1458 = vadd.f32 %v1419, %v1426
      %v1459 = vadd.f32 %v1420, %v1426
      %v1460 = vlaneseq
      %v1461 = vshrl.u32 %v1460, 7
      %v1462 = vsub.s32 1, %v1461
      %v1463 = vrot.slane %v1383, %v1462
      %v1464 = vmul.f32 %v915, %v1463
      %v1465 = vmul.f32 %v916, %v1463
      %v1466 = vmul.f32 %v917, %v1463
      %v1467 = vmul.f32 %v918, %v1463
      %v1468 = vmul.f32 %v919, %v1463
      %v1469 = vmul.f32 %v920, %v1463
      %v1470 = vmul.f32 %v921, %v1463
      %v1471 = vmul.f32 %v922, %v1463
      %v1472 = vmul.f32 %v923, %v1463
      %v1473 = vmul.f32 %v924, %v1463
      %v1474 = vmul.f32 %v925, %v1463
      %v1475 = vmul.f32 %v926, %v1463
      %v1476 = vmul.f32 %v927, %v1463
      %v1477 = vmul.f32 %v928, %v1463
      %v1478 = vmul.f32 %v929, %v1463
      %v1479 = vmul.f32 %v930, %v1463
      %v1480 = vmul.f32 %v931, %v1463
      %v1481 = vmul.f32 %v932, %v1463
      %v1482 = vmul.f32 %v933, %v1463
      %v1483 = vmul.f32 %v934, %v1463
      %v1484 = vmul.f32 %v935, %v1463
      %v1485 = vmul.f32 %v936, %v1463
      %v1486 = vmul.f32 %v937, %v1463
      %v1487 = vmul.f32 %v938, %v1463
      %v1488 = vmul.f32 %v939, %v1463
      %v1489 = vmul.f32 %v940, %v1463
      %v1490 = vmul.f32 %v941, %v1463
      %v1491 = vmul.f32 %v942, %v1463
      %v1492 = vmul.f32 %v943, %v1463
      %v1493 = vmul.f32 %v944, %v1463
      %v1494 = vmul.f32 %v945, %v1463
      %v1495 = vmul.f32 %v946, %v1463
      %v1496 = vadd.f32 %v1428, %v1464
      %v1497 = vadd.f32 %v1429, %v1465
      %v1498 = vadd.f32 %v1430, %v1466
      %v1499 = vadd.f32 %v1431, %v1467
      %v1500 = vadd.f32 %v1432, %v1468
      %v1501 = vadd.f32 %v1433, %v1469
      %v1502 = vadd.f32 %v1434, %v1470
      %v1503 = vadd.f32 %v1435, %v1471
      %v1504 = vadd.f32 %v1436, %v1472
      %v1505 = vadd.f32 %v1437, %v1473
      %v1506 = vadd.f32 %v1438, %v1474
      %v1507 = vadd.f32 %v1439, %v1475
      %v1508 = vadd.f32 %v1440, %v1476
      %v1509 = vadd.f32 %v1441, %v1477
      %v1510 = vadd.f32 %v1442, %v1478
      %v1511 = vadd.f32 %v1443, %v1479
      %v1512 = vadd.f32 %v1444, %v1480
      %v1513 = vadd.f32 %v1445, %v1481
      %v1514 = vadd.f32 %v1446, %v1482
      %v1515 = vadd.f32 %v1447, %v1483
      %v1516 = vadd.f32 %v1448, %v1484
      %v1517 = vadd.f32 %v1449, %v1485
      %v1518 = vadd.f32 %v1450, %v1486
      %v1519 = vadd.f32 %v1451, %v1487
      %v1520 = vadd.f32 %v1452, %v1488
      %v1521 = vadd.f32 %v1453, %v1489
      %v1522 = vadd.f32 %v1454, %v1490
      %v1523 = vadd.f32 %v1455, %v1491
      %v1524 = vadd.f32 %v1456, %v1492
      %v1525 = vadd.f32 %v1457, %v1493
      %v1526 = vadd.f32 %v1458, %v1494
      %v1527 = vadd.f32 %v1459, %v1495
      %v1528 = vlaneseq
      %v1529 = vshrl.u32 %v1528, 7
      %v1530 = vsub.s32 7, %v1529
      %v1531 = vrot.slane %v1383, %v1530
      %v1532 = vmul.f32 %v919, %v1531
      %v1533 = vmul.f32 %v920, %v1531
      %v1534 = vmul.f32 %v921, %v1531
      %v1535 = vmul.f32 %v922, %v1531
      %v1536 = vmul.f32 %v923, %v1531
      %v1537 = vmul.f32 %v924, %v1531
      %v1538 = vmul.f32 %v925, %v1531
      %v1539 = vmul.f32 %v926, %v1531
      %v1540 = vmul.f32 %v927, %v1531
      %v1541 = vmul.f32 %v928, %v1531
      %v1542 = vmul.f32 %v929, %v1531
      %v1543 = vmul.f32 %v930, %v1531
      %v1544 = vmul.f32 %v931, %v1531
      %v1545 = vmul.f32 %v932, %v1531
      %v1546 = vmul.f32 %v933, %v1531
      %v1547 = vmul.f32 %v934, %v1531
      %v1548 = vmul.f32 %v935, %v1531
      %v1549 = vmul.f32 %v936, %v1531
      %v1550 = vmul.f32 %v937, %v1531
      %v1551 = vmul.f32 %v938, %v1531
      %v1552 = vmul.f32 %v939, %v1531
      %v1553 = vmul.f32 %v940, %v1531
      %v1554 = vmul.f32 %v941, %v1531
      %v1555 = vmul.f32 %v942, %v1531
      %v1556 = vmul.f32 %v943, %v1531
      %v1557 = vmul.f32 %v944, %v1531
      %v1558 = vmul.f32 %v945, %v1531
      %v1559 = vmul.f32 %v946, %v1531
      %v1560 = vmul.f32 %v947, %v1531
      %v1561 = vmul.f32 %v948, %v1531
      %v1562 = vmul.f32 %v949, %v1531
      %v1563 = vmul.f32 %v950, %v1531
      %v1564 = vadd.f32 %v1496, %v1532
      %v1565 = vadd.f32 %v1497, %v1533
      %v1566 = vadd.f32 %v1498, %v1534
      %v1567 = vadd.f32 %v1499, %v1535
      %v1568 = vadd.f32 %v1500, %v1536
      %v1569 = vadd.f32 %v1501, %v1537
      %v1570 = vadd.f32 %v1502, %v1538
      %v1571 = vadd.f32 %v1503, %v1539
      %v1572 = vadd.f32 %v1504, %v1540
      %v1573 = vadd.f32 %v1505, %v1541
      %v1574 = vadd.f32 %v1506, %v1542
      %v1575 = vadd.f32 %v1507, %v1543
      %v1576 = vadd.f32 %v1508, %v1544
      %v1577 = vadd.f32 %v1509, %v1545
      %v1578 = vadd.f32 %v1510, %v1546
      %v1579 = vadd.f32 %v1511, %v1547
      %v1580 = vadd.f32 %v1512, %v1548
      %v1581 = vadd.f32 %v1513, %v1549
      %v1582 = vadd.f32 %v1514, %v1550
      %v1583 = vadd.f32 %v1515, %v1551
      %v1584 = vadd.f32 %v1516, %v1552
      %v1585 = vadd.f32 %v1517, %v1553
      %v1586 = vadd.f32 %v1518, %v1554
      %v1587 = vadd.f32 %v1519, %v1555
      %v1588 = vadd.f32 %v1520, %v1556
      %v1589 = vadd.f32 %v1521, %v1557
      %v1590 = vadd.f32 %v1522, %v1558
      %v1591 = vadd.f32 %v1523, %v1559
      %v1592 = vadd.f32 %v1524, %v1560
      %v1593 = vadd.f32 %v1525, %v1561
      %v1594 = vadd.f32 %v1526, %v1562
      %v1595 = vadd.f32 %v1527, %v1563
      %vm1596 = vcmp.ge.s32.totalorder %v1347, 1
      %vm1597 = vcmp.ge.s32.totalorder %v1348, 1
      %vm1598 = vcmp.ge.s32.totalorder %v1349, 1
      %vm1599 = vcmp.ge.s32.totalorder %v1350, 1
      %vm1600 = vcmp.ge.s32.totalorder %v1351, 1
      %vm1601 = vcmp.ge.s32.totalorder %v1352, 1
      %vm1602 = vcmp.ge.s32.totalorder %v1353, 1
      %vm1603 = vcmp.ge.s32.totalorder %v1354, 1
      %vm1604 = vcmp.ge.s32.totalorder %v1355, 1
      %vm1605 = vcmp.ge.s32.totalorder %v1356, 1
      %vm1606 = vcmp.ge.s32.totalorder %v1357, 1
      %vm1607 = vcmp.ge.s32.totalorder %v1358, 1
      %vm1608 = vcmp.ge.s32.totalorder %v1359, 1
      %vm1609 = vcmp.ge.s32.totalorder %v1360, 1
      %vm1610 = vcmp.ge.s32.totalorder %v1361, 1
      %vm1611 = vcmp.ge.s32.totalorder %v1362, 1
      %vm1612 = vcmp.ge.s32.totalorder %v1363, 1
      %vm1613 = vcmp.ge.s32.totalorder %v1364, 1
      %vm1614 = vcmp.ge.s32.totalorder %v1365, 1
      %vm1615 = vcmp.ge.s32.totalorder %v1366, 1
      %vm1616 = vcmp.ge.s32.totalorder %v1367, 1
      %vm1617 = vcmp.ge.s32.totalorder %v1368, 1
      %vm1618 = vcmp.ge.s32.totalorder %v1369, 1
      %vm1619 = vcmp.ge.s32.totalorder %v1370, 1
      %vm1620 = vcmp.ge.s32.totalorder %v1371, 1
      %vm1621 = vcmp.ge.s32.totalorder %v1372, 1
      %vm1622 = vcmp.ge.s32.totalorder %v1373, 1
      %vm1623 = vcmp.ge.s32.totalorder %v1374, 1
      %vm1624 = vcmp.ge.s32.totalorder %v1375, 1
      %vm1625 = vcmp.ge.s32.totalorder %v1376, 1
      %vm1626 = vcmp.ge.s32.totalorder %v1377, 1
      %vm1627 = vcmp.ge.s32.totalorder %v1378, 1
      %vm1628 = vcmp.ge.s32.totalorder %v1379, 1
      %vm1629 = vcmp.ge.s32.totalorder %v1380, 1
      %vm1630 = vcmp.ge.s32.totalorder %v1381, 1
      %vm1631 = vcmp.ge.s32.totalorder %v1382, 1
      %v1632 = vrot.slane %v915, 7
      %v1633 = vrot.slane %v916, 7
      %v1634 = vrot.slane %v917, 7
      %v1635 = vrot.slane %v918, 7
      %v1636 = vrot.slane %v919, 7
      %v1637 = vrot.slane %v920, 7
      %v1638 = vrot.slane %v921, 7
      %v1639 = vrot.slane %v922, 7
      %v1640 = vrot.slane %v923, 7
      %v1641 = vrot.slane %v924, 7
      %v1642 = vrot.slane %v925, 7
      %v1643 = vrot.slane %v926, 7
      %v1644 = vrot.slane %v927, 7
      %v1645 = vrot.slane %v928, 7
      %v1646 = vrot.slane %v929, 7
      %v1647 = vrot.slane %v930, 7
      %v1648 = vrot.slane %v931, 7
      %v1649 = vrot.slane %v932, 7
      %v1650 = vrot.slane %v933, 7
      %v1651 = vrot.slane %v934, 7
      %v1652 = vrot.slane %v935, 7
      %v1653 = vrot.slane %v936, 7
      %v1654 = vrot.slane %v937, 7
      %v1655 = vrot.slane %v938, 7
      %v1656 = vrot.slane %v939, 7
      %v1657 = vrot.slane %v940, 7
      %v1658 = vrot.slane %v941, 7
      %v1659 = vrot.slane %v942, 7
      %v1660 = vrot.slane %v943, 7
      %v1661 = vrot.slane %v944, 7
      %v1662 = vrot.slane %v945, 7
      %v1663 = vrot.slane %v946, 7
      %v1664 = vrot.slane %v947, 7
      %v1665 = vrot.slane %v948, 7
      %v1666 = vrot.slane %v949, 7
      %v1667 = vrot.slane %v950, 7
      %vm1668 = vcmp.lt.s32.totalorder %v618, 1
      %v1669 = vsel %vm1668, %v1666, %v1667
      %v1670 = vsel %vm1668, %v1665, %v1666
      %v1671 = vsel %vm1668, %v1664, %v1665
      %v1672 = vsel %vm1668, %v1663, %v1664
      %v1673 = vsel %vm1668, %v1662, %v1663
      %v1674 = vsel %vm1668, %v1661, %v1662
      %v1675 = vsel %vm1668, %v1660, %v1661
      %v1676 = vsel %vm1668, %v1659, %v1660
      %v1677 = vsel %vm1668, %v1658, %v1659
      %v1678 = vsel %vm1668, %v1657, %v1658
      %v1679 = vsel %vm1668, %v1656, %v1657
      %v1680 = vsel %vm1668, %v1655, %v1656
      %v1681 = vsel %vm1668, %v1654, %v1655
      %v1682 = vsel %vm1668, %v1653, %v1654
      %v1683 = vsel %vm1668, %v1652, %v1653
      %v1684 = vsel %vm1668, %v1651, %v1652
      %v1685 = vsel %vm1668, %v1650, %v1651
      %v1686 = vsel %vm1668, %v1649, %v1650
      %v1687 = vsel %vm1668, %v1648, %v1649
      %v1688 = vsel %vm1668, %v1647, %v1648
      %v1689 = vsel %vm1668, %v1646, %v1647
      %v1690 = vsel %vm1668, %v1645, %v1646
      %v1691 = vsel %vm1668, %v1644, %v1645
      %v1692 = vsel %vm1668, %v1643, %v1644
      %v1693 = vsel %vm1668, %v1642, %v1643
      %v1694 = vsel %vm1668, %v1641, %v1642
      %v1695 = vsel %vm1668, %v1640, %v1641
      %v1696 = vsel %vm1668, %v1639, %v1640
      %v1697 = vsel %vm1668, %v1638, %v1639
      %v1698 = vsel %vm1668, %v1637, %v1638
      %v1699 = vsel %vm1668, %v1636, %v1637
      %v1700 = vsel %vm1668, %v1635, %v1636
      %v1701 = vsel %vm1668, %v1634, %v1635
      %v1702 = vsel %vm1668, %v1633, %v1634
      %v1703 = vsel %vm1668, %v1632, %v1633
      %v1704 = vsel %vm1668, %v1667, %v1632
      %v1705 = vsel %vm1596, 1, 0
      %v1706 = vsel %vm1597, 1, 0
      %v1707 = vsel %vm1598, 1, 0
      %v1708 = vsel %vm1599, 1, 0
      %v1709 = vsel %vm1600, 1, 0
      %v1710 = vsel %vm1601, 1, 0
      %v1711 = vsel %vm1602, 1, 0
      %v1712 = vsel %vm1603, 1, 0
      %v1713 = vsel %vm1604, 1, 0
      %v1714 = vsel %vm1605, 1, 0
      %v1715 = vsel %vm1606, 1, 0
      %v1716 = vsel %vm1607, 1, 0
      %v1717 = vsel %vm1608, 1, 0
      %v1718 = vsel %vm1609, 1, 0
      %v1719 = vsel %vm1610, 1, 0
      %v1720 = vsel %vm1611, 1, 0
      %v1721 = vsel %vm1612, 1, 0
      %v1722 = vsel %vm1613, 1, 0
      %v1723 = vsel %vm1614, 1, 0
      %v1724 = vsel %vm1615, 1, 0
      %v1725 = vsel %vm1616, 1, 0
      %v1726 = vsel %vm1617, 1, 0
      %v1727 = vsel %vm1618, 1, 0
      %v1728 = vsel %vm1619, 1, 0
      %v1729 = vsel %vm1620, 1, 0
      %v1730 = vsel %vm1621, 1, 0
      %v1731 = vsel %vm1622, 1, 0
      %v1732 = vsel %vm1623, 1, 0
      %v1733 = vsel %vm1624, 1, 0
      %v1734 = vsel %vm1625, 1, 0
      %v1735 = vsel %vm1626, 1, 0
      %v1736 = vsel %vm1627, 1, 0
      %v1737 = vsel %vm1628, 1, 0
      %v1738 = vsel %vm1629, 1, 0
      %v1739 = vsel %vm1630, 1, 0
      %v1740 = vsel %vm1631, 1, 0
      %vm1741 = vcmp.eq.s32.totalorder %v1705, 1
      %vm1742 = vcmp.eq.s32.totalorder %v1706, 1
      %vm1743 = vcmp.eq.s32.totalorder %v1707, 1
      %vm1744 = vcmp.eq.s32.totalorder %v1708, 1
      %vm1745 = vcmp.eq.s32.totalorder %v1709, 1
      %vm1746 = vcmp.eq.s32.totalorder %v1710, 1
      %vm1747 = vcmp.eq.s32.totalorder %v1711, 1
      %vm1748 = vcmp.eq.s32.totalorder %v1712, 1
      %vm1749 = vcmp.eq.s32.totalorder %v1713, 1
      %vm1750 = vcmp.eq.s32.totalorder %v1714, 1
      %vm1751 = vcmp.eq.s32.totalorder %v1715, 1
      %vm1752 = vcmp.eq.s32.totalorder %v1716, 1
      %vm1753 = vcmp.eq.s32.totalorder %v1717, 1
      %vm1754 = vcmp.eq.s32.totalorder %v1718, 1
      %vm1755 = vcmp.eq.s32.totalorder %v1719, 1
      %vm1756 = vcmp.eq.s32.totalorder %v1720, 1
      %vm1757 = vcmp.eq.s32.totalorder %v1721, 1
      %vm1758 = vcmp.eq.s32.totalorder %v1722, 1
      %vm1759 = vcmp.eq.s32.totalorder %v1723, 1
      %vm1760 = vcmp.eq.s32.totalorder %v1724, 1
      %vm1761 = vcmp.eq.s32.totalorder %v1725, 1
      %vm1762 = vcmp.eq.s32.totalorder %v1726, 1
      %vm1763 = vcmp.eq.s32.totalorder %v1727, 1
      %vm1764 = vcmp.eq.s32.totalorder %v1728, 1
      %vm1765 = vcmp.eq.s32.totalorder %v1729, 1
      %vm1766 = vcmp.eq.s32.totalorder %v1730, 1
      %vm1767 = vcmp.eq.s32.totalorder %v1731, 1
      %vm1768 = vcmp.eq.s32.totalorder %v1732, 1
      %vm1769 = vcmp.eq.s32.totalorder %v1733, 1
      %vm1770 = vcmp.eq.s32.totalorder %v1734, 1
      %vm1771 = vcmp.eq.s32.totalorder %v1735, 1
      %vm1772 = vcmp.eq.s32.totalorder %v1736, 1
      %vm1773 = vcmp.eq.s32.totalorder %v1737, 1
      %vm1774 = vcmp.eq.s32.totalorder %v1738, 1
      %vm1775 = vcmp.eq.s32.totalorder %v1739, 1
      %vm1776 = vcmp.eq.s32.totalorder %v1740, 1
      %v1777 = vsel %vm1741, %v1704, 0.0
      %v1778 = vsel %vm1742, %v1703, 0.0
      %v1779 = vsel %vm1743, %v1702, 0.0
      %v1780 = vsel %vm1744, %v1701, 0.0
      %v1781 = vsel %vm1745, %v1700, 0.0
      %v1782 = vsel %vm1746, %v1699, 0.0
      %v1783 = vsel %vm1747, %v1698, 0.0
      %v1784 = vsel %vm1748, %v1697, 0.0
      %v1785 = vsel %vm1749, %v1696, 0.0
      %v1786 = vsel %vm1750, %v1695, 0.0
      %v1787 = vsel %vm1751, %v1694, 0.0
      %v1788 = vsel %vm1752, %v1693, 0.0
      %v1789 = vsel %vm1753, %v1692, 0.0
      %v1790 = vsel %vm1754, %v1691, 0.0
      %v1791 = vsel %vm1755, %v1690, 0.0
      %v1792 = vsel %vm1756, %v1689, 0.0
      %v1793 = vsel %vm1757, %v1688, 0.0
      %v1794 = vsel %vm1758, %v1687, 0.0
      %v1795 = vsel %vm1759, %v1686, 0.0
      %v1796 = vsel %vm1760, %v1685, 0.0
      %v1797 = vsel %vm1761, %v1684, 0.0
      %v1798 = vsel %vm1762, %v1683, 0.0
      %v1799 = vsel %vm1763, %v1682, 0.0
      %v1800 = vsel %vm1764, %v1681, 0.0
      %v1801 = vsel %vm1765, %v1680, 0.0
      %v1802 = vsel %vm1766, %v1679, 0.0
      %v1803 = vsel %vm1767, %v1678, 0.0
      %v1804 = vsel %vm1768, %v1677, 0.0
      %v1805 = vsel %vm1769, %v1676, 0.0
      %v1806 = vsel %vm1770, %v1675, 0.0
      %v1807 = vsel %vm1771, %v1674, 0.0
      %v1808 = vsel %vm1772, %v1673, 0.0
      %v1809 = vsel %vm1773, %v1672, 0.0
      %v1810 = vsel %vm1774, %v1671, 0.0
      %v1811 = vsel %vm1775, %v1670, 0.0
      %v1812 = vsel %vm1776, %v1669, 0.0
      %v1813 = vlaneseq
      %v1814 = vshrl.u32 %v1813, 7
      %v1815 = vsub.s32 0, %v1814
      %v1816 = vrot.slane %v1383, %v1815
      %v1817 = vmul.f32 %v1777, %v1816
      %v1818 = vmul.f32 %v1778, %v1816
      %v1819 = vmul.f32 %v1779, %v1816
      %v1820 = vmul.f32 %v1780, %v1816
      %v1821 = vmul.f32 %v1781, %v1816
      %v1822 = vmul.f32 %v1782, %v1816
      %v1823 = vmul.f32 %v1783, %v1816
      %v1824 = vmul.f32 %v1784, %v1816
      %v1825 = vmul.f32 %v1785, %v1816
      %v1826 = vmul.f32 %v1786, %v1816
      %v1827 = vmul.f32 %v1787, %v1816
      %v1828 = vmul.f32 %v1788, %v1816
      %v1829 = vmul.f32 %v1789, %v1816
      %v1830 = vmul.f32 %v1790, %v1816
      %v1831 = vmul.f32 %v1791, %v1816
      %v1832 = vmul.f32 %v1792, %v1816
      %v1833 = vmul.f32 %v1793, %v1816
      %v1834 = vmul.f32 %v1794, %v1816
      %v1835 = vmul.f32 %v1795, %v1816
      %v1836 = vmul.f32 %v1796, %v1816
      %v1837 = vmul.f32 %v1797, %v1816
      %v1838 = vmul.f32 %v1798, %v1816
      %v1839 = vmul.f32 %v1799, %v1816
      %v1840 = vmul.f32 %v1800, %v1816
      %v1841 = vmul.f32 %v1801, %v1816
      %v1842 = vmul.f32 %v1802, %v1816
      %v1843 = vmul.f32 %v1803, %v1816
      %v1844 = vmul.f32 %v1804, %v1816
      %v1845 = vmul.f32 %v1805, %v1816
      %v1846 = vmul.f32 %v1806, %v1816
      %v1847 = vmul.f32 %v1807, %v1816
      %v1848 = vmul.f32 %v1808, %v1816
      %v1849 = vadd.f32 %v1564, %v1817
      %v1850 = vadd.f32 %v1565, %v1818
      %v1851 = vadd.f32 %v1566, %v1819
      %v1852 = vadd.f32 %v1567, %v1820
      %v1853 = vadd.f32 %v1568, %v1821
      %v1854 = vadd.f32 %v1569, %v1822
      %v1855 = vadd.f32 %v1570, %v1823
      %v1856 = vadd.f32 %v1571, %v1824
      %v1857 = vadd.f32 %v1572, %v1825
      %v1858 = vadd.f32 %v1573, %v1826
      %v1859 = vadd.f32 %v1574, %v1827
      %v1860 = vadd.f32 %v1575, %v1828
      %v1861 = vadd.f32 %v1576, %v1829
      %v1862 = vadd.f32 %v1577, %v1830
      %v1863 = vadd.f32 %v1578, %v1831
      %v1864 = vadd.f32 %v1579, %v1832
      %v1865 = vadd.f32 %v1580, %v1833
      %v1866 = vadd.f32 %v1581, %v1834
      %v1867 = vadd.f32 %v1582, %v1835
      %v1868 = vadd.f32 %v1583, %v1836
      %v1869 = vadd.f32 %v1584, %v1837
      %v1870 = vadd.f32 %v1585, %v1838
      %v1871 = vadd.f32 %v1586, %v1839
      %v1872 = vadd.f32 %v1587, %v1840
      %v1873 = vadd.f32 %v1588, %v1841
      %v1874 = vadd.f32 %v1589, %v1842
      %v1875 = vadd.f32 %v1590, %v1843
      %v1876 = vadd.f32 %v1591, %v1844
      %v1877 = vadd.f32 %v1592, %v1845
      %v1878 = vadd.f32 %v1593, %v1846
      %v1879 = vadd.f32 %v1594, %v1847
      %v1880 = vadd.f32 %v1595, %v1848
      %v1881 = vlaneseq
      %v1882 = vshrl.u32 %v1881, 7
      %v1883 = vsub.s32 3, %v1882
      %v1884 = vrot.slane %v1383, %v1883
      %v1885 = vmul.f32 %v1779, %v1884
      %v1886 = vmul.f32 %v1780, %v1884
      %v1887 = vmul.f32 %v1781, %v1884
      %v1888 = vmul.f32 %v1782, %v1884
      %v1889 = vmul.f32 %v1783, %v1884
      %v1890 = vmul.f32 %v1784, %v1884
      %v1891 = vmul.f32 %v1785, %v1884
      %v1892 = vmul.f32 %v1786, %v1884
      %v1893 = vmul.f32 %v1787, %v1884
      %v1894 = vmul.f32 %v1788, %v1884
      %v1895 = vmul.f32 %v1789, %v1884
      %v1896 = vmul.f32 %v1790, %v1884
      %v1897 = vmul.f32 %v1791, %v1884
      %v1898 = vmul.f32 %v1792, %v1884
      %v1899 = vmul.f32 %v1793, %v1884
      %v1900 = vmul.f32 %v1794, %v1884
      %v1901 = vmul.f32 %v1795, %v1884
      %v1902 = vmul.f32 %v1796, %v1884
      %v1903 = vmul.f32 %v1797, %v1884
      %v1904 = vmul.f32 %v1798, %v1884
      %v1905 = vmul.f32 %v1799, %v1884
      %v1906 = vmul.f32 %v1800, %v1884
      %v1907 = vmul.f32 %v1801, %v1884
      %v1908 = vmul.f32 %v1802, %v1884
      %v1909 = vmul.f32 %v1803, %v1884
      %v1910 = vmul.f32 %v1804, %v1884
      %v1911 = vmul.f32 %v1805, %v1884
      %v1912 = vmul.f32 %v1806, %v1884
      %v1913 = vmul.f32 %v1807, %v1884
      %v1914 = vmul.f32 %v1808, %v1884
      %v1915 = vmul.f32 %v1809, %v1884
      %v1916 = vmul.f32 %v1810, %v1884
      %v1917 = vadd.f32 %v1849, %v1885
      %v1918 = vadd.f32 %v1850, %v1886
      %v1919 = vadd.f32 %v1851, %v1887
      %v1920 = vadd.f32 %v1852, %v1888
      %v1921 = vadd.f32 %v1853, %v1889
      %v1922 = vadd.f32 %v1854, %v1890
      %v1923 = vadd.f32 %v1855, %v1891
      %v1924 = vadd.f32 %v1856, %v1892
      %v1925 = vadd.f32 %v1857, %v1893
      %v1926 = vadd.f32 %v1858, %v1894
      %v1927 = vadd.f32 %v1859, %v1895
      %v1928 = vadd.f32 %v1860, %v1896
      %v1929 = vadd.f32 %v1861, %v1897
      %v1930 = vadd.f32 %v1862, %v1898
      %v1931 = vadd.f32 %v1863, %v1899
      %v1932 = vadd.f32 %v1864, %v1900
      %v1933 = vadd.f32 %v1865, %v1901
      %v1934 = vadd.f32 %v1866, %v1902
      %v1935 = vadd.f32 %v1867, %v1903
      %v1936 = vadd.f32 %v1868, %v1904
      %v1937 = vadd.f32 %v1869, %v1905
      %v1938 = vadd.f32 %v1870, %v1906
      %v1939 = vadd.f32 %v1871, %v1907
      %v1940 = vadd.f32 %v1872, %v1908
      %v1941 = vadd.f32 %v1873, %v1909
      %v1942 = vadd.f32 %v1874, %v1910
      %v1943 = vadd.f32 %v1875, %v1911
      %v1944 = vadd.f32 %v1876, %v1912
      %v1945 = vadd.f32 %v1877, %v1913
      %v1946 = vadd.f32 %v1878, %v1914
      %v1947 = vadd.f32 %v1879, %v1915
      %v1948 = vadd.f32 %v1880, %v1916
      %v1949 = vlaneseq
      %v1950 = vshrl.u32 %v1949, 7
      %v1951 = vsub.s32 6, %v1950
      %v1952 = vrot.slane %v1383, %v1951
      %v1953 = vmul.f32 %v1781, %v1952
      %v1954 = vmul.f32 %v1782, %v1952
      %v1955 = vmul.f32 %v1783, %v1952
      %v1956 = vmul.f32 %v1784, %v1952
      %v1957 = vmul.f32 %v1785, %v1952
      %v1958 = vmul.f32 %v1786, %v1952
      %v1959 = vmul.f32 %v1787, %v1952
      %v1960 = vmul.f32 %v1788, %v1952
      %v1961 = vmul.f32 %v1789, %v1952
      %v1962 = vmul.f32 %v1790, %v1952
      %v1963 = vmul.f32 %v1791, %v1952
      %v1964 = vmul.f32 %v1792, %v1952
      %v1965 = vmul.f32 %v1793, %v1952
      %v1966 = vmul.f32 %v1794, %v1952
      %v1967 = vmul.f32 %v1795, %v1952
      %v1968 = vmul.f32 %v1796, %v1952
      %v1969 = vmul.f32 %v1797, %v1952
      %v1970 = vmul.f32 %v1798, %v1952
      %v1971 = vmul.f32 %v1799, %v1952
      %v1972 = vmul.f32 %v1800, %v1952
      %v1973 = vmul.f32 %v1801, %v1952
      %v1974 = vmul.f32 %v1802, %v1952
      %v1975 = vmul.f32 %v1803, %v1952
      %v1976 = vmul.f32 %v1804, %v1952
      %v1977 = vmul.f32 %v1805, %v1952
      %v1978 = vmul.f32 %v1806, %v1952
      %v1979 = vmul.f32 %v1807, %v1952
      %v1980 = vmul.f32 %v1808, %v1952
      %v1981 = vmul.f32 %v1809, %v1952
      %v1982 = vmul.f32 %v1810, %v1952
      %v1983 = vmul.f32 %v1811, %v1952
      %v1984 = vmul.f32 %v1812, %v1952
      %v1985 = vadd.f32 %v1917, %v1953
      %v1986 = vadd.f32 %v1918, %v1954
      %v1987 = vadd.f32 %v1919, %v1955
      %v1988 = vadd.f32 %v1920, %v1956
      %v1989 = vadd.f32 %v1921, %v1957
      %v1990 = vadd.f32 %v1922, %v1958
      %v1991 = vadd.f32 %v1923, %v1959
      %v1992 = vadd.f32 %v1924, %v1960
      %v1993 = vadd.f32 %v1925, %v1961
      %v1994 = vadd.f32 %v1926, %v1962
      %v1995 = vadd.f32 %v1927, %v1963
      %v1996 = vadd.f32 %v1928, %v1964
      %v1997 = vadd.f32 %v1929, %v1965
      %v1998 = vadd.f32 %v1930, %v1966
      %v1999 = vadd.f32 %v1931, %v1967
      %v2000 = vadd.f32 %v1932, %v1968
      %v2001 = vadd.f32 %v1933, %v1969
      %v2002 = vadd.f32 %v1934, %v1970
      %v2003 = vadd.f32 %v1935, %v1971
      %v2004 = vadd.f32 %v1936, %v1972
      %v2005 = vadd.f32 %v1937, %v1973
      %v2006 = vadd.f32 %v1938, %v1974
      %v2007 = vadd.f32 %v1939, %v1975
      %v2008 = vadd.f32 %v1940, %v1976
      %v2009 = vadd.f32 %v1941, %v1977
      %v2010 = vadd.f32 %v1942, %v1978
      %v2011 = vadd.f32 %v1943, %v1979
      %v2012 = vadd.f32 %v1944, %v1980
      %v2013 = vadd.f32 %v1945, %v1981
      %v2014 = vadd.f32 %v1946, %v1982
      %v2015 = vadd.f32 %v1947, %v1983
      %v2016 = vadd.f32 %v1948, %v1984
      %vm2017 = vcmp.lt.s32.totalorder %v1347, 15
      %vm2018 = vcmp.lt.s32.totalorder %v1348, 15
      %vm2019 = vcmp.lt.s32.totalorder %v1349, 15
      %vm2020 = vcmp.lt.s32.totalorder %v1350, 15
      %vm2021 = vcmp.lt.s32.totalorder %v1351, 15
      %vm2022 = vcmp.lt.s32.totalorder %v1352, 15
      %vm2023 = vcmp.lt.s32.totalorder %v1353, 15
      %vm2024 = vcmp.lt.s32.totalorder %v1354, 15
      %vm2025 = vcmp.lt.s32.totalorder %v1355, 15
      %vm2026 = vcmp.lt.s32.totalorder %v1356, 15
      %vm2027 = vcmp.lt.s32.totalorder %v1357, 15
      %vm2028 = vcmp.lt.s32.totalorder %v1358, 15
      %vm2029 = vcmp.lt.s32.totalorder %v1359, 15
      %vm2030 = vcmp.lt.s32.totalorder %v1360, 15
      %vm2031 = vcmp.lt.s32.totalorder %v1361, 15
      %vm2032 = vcmp.lt.s32.totalorder %v1362, 15
      %vm2033 = vcmp.lt.s32.totalorder %v1363, 15
      %vm2034 = vcmp.lt.s32.totalorder %v1364, 15
      %vm2035 = vcmp.lt.s32.totalorder %v1365, 15
      %vm2036 = vcmp.lt.s32.totalorder %v1366, 15
      %vm2037 = vcmp.lt.s32.totalorder %v1367, 15
      %vm2038 = vcmp.lt.s32.totalorder %v1368, 15
      %vm2039 = vcmp.lt.s32.totalorder %v1369, 15
      %vm2040 = vcmp.lt.s32.totalorder %v1370, 15
      %vm2041 = vcmp.lt.s32.totalorder %v1371, 15
      %vm2042 = vcmp.lt.s32.totalorder %v1372, 15
      %vm2043 = vcmp.lt.s32.totalorder %v1373, 15
      %vm2044 = vcmp.lt.s32.totalorder %v1374, 15
      %vm2045 = vcmp.lt.s32.totalorder %v1375, 15
      %vm2046 = vcmp.lt.s32.totalorder %v1376, 15
      %vm2047 = vcmp.lt.s32.totalorder %v1377, 15
      %vm2048 = vcmp.lt.s32.totalorder %v1378, 15
      %vm2049 = vcmp.lt.s32.totalorder %v1379, 15
      %vm2050 = vcmp.lt.s32.totalorder %v1380, 15
      %vm2051 = vcmp.lt.s32.totalorder %v1381, 15
      %vm2052 = vcmp.lt.s32.totalorder %v1382, 15
      %v2053 = vrot.slane %v915, 1
      %v2054 = vrot.slane %v916, 1
      %v2055 = vrot.slane %v917, 1
      %v2056 = vrot.slane %v918, 1
      %v2057 = vrot.slane %v919, 1
      %v2058 = vrot.slane %v920, 1
      %v2059 = vrot.slane %v921, 1
      %v2060 = vrot.slane %v922, 1
      %v2061 = vrot.slane %v923, 1
      %v2062 = vrot.slane %v924, 1
      %v2063 = vrot.slane %v925, 1
      %v2064 = vrot.slane %v926, 1
      %v2065 = vrot.slane %v927, 1
      %v2066 = vrot.slane %v928, 1
      %v2067 = vrot.slane %v929, 1
      %v2068 = vrot.slane %v930, 1
      %v2069 = vrot.slane %v931, 1
      %v2070 = vrot.slane %v932, 1
      %v2071 = vrot.slane %v933, 1
      %v2072 = vrot.slane %v934, 1
      %v2073 = vrot.slane %v935, 1
      %v2074 = vrot.slane %v936, 1
      %v2075 = vrot.slane %v937, 1
      %v2076 = vrot.slane %v938, 1
      %v2077 = vrot.slane %v939, 1
      %v2078 = vrot.slane %v940, 1
      %v2079 = vrot.slane %v941, 1
      %v2080 = vrot.slane %v942, 1
      %v2081 = vrot.slane %v943, 1
      %v2082 = vrot.slane %v944, 1
      %v2083 = vrot.slane %v945, 1
      %v2084 = vrot.slane %v946, 1
      %v2085 = vrot.slane %v947, 1
      %v2086 = vrot.slane %v948, 1
      %v2087 = vrot.slane %v949, 1
      %v2088 = vrot.slane %v950, 1
      %vm2089 = vcmp.lt.s32.totalorder %v618, 7
      %v2090 = vsel %vm2089, %v2087, %v2088
      %v2091 = vsel %vm2089, %v2086, %v2087
      %v2092 = vsel %vm2089, %v2085, %v2086
      %v2093 = vsel %vm2089, %v2084, %v2085
      %v2094 = vsel %vm2089, %v2083, %v2084
      %v2095 = vsel %vm2089, %v2082, %v2083
      %v2096 = vsel %vm2089, %v2081, %v2082
      %v2097 = vsel %vm2089, %v2080, %v2081
      %v2098 = vsel %vm2089, %v2079, %v2080
      %v2099 = vsel %vm2089, %v2078, %v2079
      %v2100 = vsel %vm2089, %v2077, %v2078
      %v2101 = vsel %vm2089, %v2076, %v2077
      %v2102 = vsel %vm2089, %v2075, %v2076
      %v2103 = vsel %vm2089, %v2074, %v2075
      %v2104 = vsel %vm2089, %v2073, %v2074
      %v2105 = vsel %vm2089, %v2072, %v2073
      %v2106 = vsel %vm2089, %v2071, %v2072
      %v2107 = vsel %vm2089, %v2070, %v2071
      %v2108 = vsel %vm2089, %v2069, %v2070
      %v2109 = vsel %vm2089, %v2068, %v2069
      %v2110 = vsel %vm2089, %v2067, %v2068
      %v2111 = vsel %vm2089, %v2066, %v2067
      %v2112 = vsel %vm2089, %v2065, %v2066
      %v2113 = vsel %vm2089, %v2064, %v2065
      %v2114 = vsel %vm2089, %v2063, %v2064
      %v2115 = vsel %vm2089, %v2062, %v2063
      %v2116 = vsel %vm2089, %v2061, %v2062
      %v2117 = vsel %vm2089, %v2060, %v2061
      %v2118 = vsel %vm2089, %v2059, %v2060
      %v2119 = vsel %vm2089, %v2058, %v2059
      %v2120 = vsel %vm2089, %v2057, %v2058
      %v2121 = vsel %vm2089, %v2056, %v2057
      %v2122 = vsel %vm2089, %v2055, %v2056
      %v2123 = vsel %vm2089, %v2054, %v2055
      %v2124 = vsel %vm2089, %v2053, %v2054
      %v2125 = vsel %vm2089, %v2088, %v2053
      %v2126 = vsel %vm2017, 1, 0
      %v2127 = vsel %vm2018, 1, 0
      %v2128 = vsel %vm2019, 1, 0
      %v2129 = vsel %vm2020, 1, 0
      %v2130 = vsel %vm2021, 1, 0
      %v2131 = vsel %vm2022, 1, 0
      %v2132 = vsel %vm2023, 1, 0
      %v2133 = vsel %vm2024, 1, 0
      %v2134 = vsel %vm2025, 1, 0
      %v2135 = vsel %vm2026, 1, 0
      %v2136 = vsel %vm2027, 1, 0
      %v2137 = vsel %vm2028, 1, 0
      %v2138 = vsel %vm2029, 1, 0
      %v2139 = vsel %vm2030, 1, 0
      %v2140 = vsel %vm2031, 1, 0
      %v2141 = vsel %vm2032, 1, 0
      %v2142 = vsel %vm2033, 1, 0
      %v2143 = vsel %vm2034, 1, 0
      %v2144 = vsel %vm2035, 1, 0
      %v2145 = vsel %vm2036, 1, 0
      %v2146 = vsel %vm2037, 1, 0
      %v2147 = vsel %vm2038, 1, 0
      %v2148 = vsel %vm2039, 1, 0
      %v2149 = vsel %vm2040, 1, 0
      %v2150 = vsel %vm2041, 1, 0
      %v2151 = vsel %vm2042, 1, 0
      %v2152 = vsel %vm2043, 1, 0
      %v2153 = vsel %vm2044, 1, 0
      %v2154 = vsel %vm2045, 1, 0
      %v2155 = vsel %vm2046, 1, 0
      %v2156 = vsel %vm2047, 1, 0
      %v2157 = vsel %vm2048, 1, 0
      %v2158 = vsel %vm2049, 1, 0
      %v2159 = vsel %vm2050, 1, 0
      %v2160 = vsel %vm2051, 1, 0
      %v2161 = vsel %vm2052, 1, 0
      %vm2162 = vcmp.eq.s32.totalorder %v2126, 1
      %vm2163 = vcmp.eq.s32.totalorder %v2127, 1
      %vm2164 = vcmp.eq.s32.totalorder %v2128, 1
      %vm2165 = vcmp.eq.s32.totalorder %v2129, 1
      %vm2166 = vcmp.eq.s32.totalorder %v2130, 1
      %vm2167 = vcmp.eq.s32.totalorder %v2131, 1
      %vm2168 = vcmp.eq.s32.totalorder %v2132, 1
      %vm2169 = vcmp.eq.s32.totalorder %v2133, 1
      %vm2170 = vcmp.eq.s32.totalorder %v2134, 1
      %vm2171 = vcmp.eq.s32.totalorder %v2135, 1
      %vm2172 = vcmp.eq.s32.totalorder %v2136, 1
      %vm2173 = vcmp.eq.s32.totalorder %v2137, 1
      %vm2174 = vcmp.eq.s32.totalorder %v2138, 1
      %vm2175 = vcmp.eq.s32.totalorder %v2139, 1
      %vm2176 = vcmp.eq.s32.totalorder %v2140, 1
      %vm2177 = vcmp.eq.s32.totalorder %v2141, 1
      %vm2178 = vcmp.eq.s32.totalorder %v2142, 1
      %vm2179 = vcmp.eq.s32.totalorder %v2143, 1
      %vm2180 = vcmp.eq.s32.totalorder %v2144, 1
      %vm2181 = vcmp.eq.s32.totalorder %v2145, 1
      %vm2182 = vcmp.eq.s32.totalorder %v2146, 1
      %vm2183 = vcmp.eq.s32.totalorder %v2147, 1
      %vm2184 = vcmp.eq.s32.totalorder %v2148, 1
      %vm2185 = vcmp.eq.s32.totalorder %v2149, 1
      %vm2186 = vcmp.eq.s32.totalorder %v2150, 1
      %vm2187 = vcmp.eq.s32.totalorder %v2151, 1
      %vm2188 = vcmp.eq.s32.totalorder %v2152, 1
      %vm2189 = vcmp.eq.s32.totalorder %v2153, 1
      %vm2190 = vcmp.eq.s32.totalorder %v2154, 1
      %vm2191 = vcmp.eq.s32.totalorder %v2155, 1
      %vm2192 = vcmp.eq.s32.totalorder %v2156, 1
      %vm2193 = vcmp.eq.s32.totalorder %v2157, 1
      %vm2194 = vcmp.eq.s32.totalorder %v2158, 1
      %vm2195 = vcmp.eq.s32.totalorder %v2159, 1
      %vm2196 = vcmp.eq.s32.totalorder %v2160, 1
      %vm2197 = vcmp.eq.s32.totalorder %v2161, 1
      %v2198 = vsel %vm2162, %v2124, 0.0
      %v2199 = vsel %vm2163, %v2123, 0.0
      %v2200 = vsel %vm2164, %v2122, 0.0
      %v2201 = vsel %vm2165, %v2121, 0.0
      %v2202 = vsel %vm2166, %v2120, 0.0
      %v2203 = vsel %vm2167, %v2119, 0.0
      %v2204 = vsel %vm2168, %v2118, 0.0
      %v2205 = vsel %vm2169, %v2117, 0.0
      %v2206 = vsel %vm2170, %v2116, 0.0
      %v2207 = vsel %vm2171, %v2115, 0.0
      %v2208 = vsel %vm2172, %v2114, 0.0
      %v2209 = vsel %vm2173, %v2113, 0.0
      %v2210 = vsel %vm2174, %v2112, 0.0
      %v2211 = vsel %vm2175, %v2111, 0.0
      %v2212 = vsel %vm2176, %v2110, 0.0
      %v2213 = vsel %vm2177, %v2109, 0.0
      %v2214 = vsel %vm2178, %v2108, 0.0
      %v2215 = vsel %vm2179, %v2107, 0.0
      %v2216 = vsel %vm2180, %v2106, 0.0
      %v2217 = vsel %vm2181, %v2105, 0.0
      %v2218 = vsel %vm2182, %v2104, 0.0
      %v2219 = vsel %vm2183, %v2103, 0.0
      %v2220 = vsel %vm2184, %v2102, 0.0
      %v2221 = vsel %vm2185, %v2101, 0.0
      %v2222 = vsel %vm2186, %v2100, 0.0
      %v2223 = vsel %vm2187, %v2099, 0.0
      %v2224 = vsel %vm2188, %v2098, 0.0
      %v2225 = vsel %vm2189, %v2097, 0.0
      %v2226 = vsel %vm2190, %v2096, 0.0
      %v2227 = vsel %vm2191, %v2095, 0.0
      %v2228 = vsel %vm2192, %v2094, 0.0
      %v2229 = vsel %vm2193, %v2093, 0.0
      %v2230 = vsel %vm2194, %v2092, 0.0
      %v2231 = vsel %vm2195, %v2091, 0.0
      %v2232 = vsel %vm2196, %v2090, 0.0
      %v2233 = vsel %vm2197, %v2125, 0.0
      %v2234 = vlaneseq
      %v2235 = vshrl.u32 %v2234, 7
      %v2236 = vsub.s32 2, %v2235
      %v2237 = vrot.slane %v1383, %v2236
      %v2238 = vmul.f32 %v2198, %v2237
      %v2239 = vmul.f32 %v2199, %v2237
      %v2240 = vmul.f32 %v2200, %v2237
      %v2241 = vmul.f32 %v2201, %v2237
      %v2242 = vmul.f32 %v2202, %v2237
      %v2243 = vmul.f32 %v2203, %v2237
      %v2244 = vmul.f32 %v2204, %v2237
      %v2245 = vmul.f32 %v2205, %v2237
      %v2246 = vmul.f32 %v2206, %v2237
      %v2247 = vmul.f32 %v2207, %v2237
      %v2248 = vmul.f32 %v2208, %v2237
      %v2249 = vmul.f32 %v2209, %v2237
      %v2250 = vmul.f32 %v2210, %v2237
      %v2251 = vmul.f32 %v2211, %v2237
      %v2252 = vmul.f32 %v2212, %v2237
      %v2253 = vmul.f32 %v2213, %v2237
      %v2254 = vmul.f32 %v2214, %v2237
      %v2255 = vmul.f32 %v2215, %v2237
      %v2256 = vmul.f32 %v2216, %v2237
      %v2257 = vmul.f32 %v2217, %v2237
      %v2258 = vmul.f32 %v2218, %v2237
      %v2259 = vmul.f32 %v2219, %v2237
      %v2260 = vmul.f32 %v2220, %v2237
      %v2261 = vmul.f32 %v2221, %v2237
      %v2262 = vmul.f32 %v2222, %v2237
      %v2263 = vmul.f32 %v2223, %v2237
      %v2264 = vmul.f32 %v2224, %v2237
      %v2265 = vmul.f32 %v2225, %v2237
      %v2266 = vmul.f32 %v2226, %v2237
      %v2267 = vmul.f32 %v2227, %v2237
      %v2268 = vmul.f32 %v2228, %v2237
      %v2269 = vmul.f32 %v2229, %v2237
      %v2270 = vadd.f32 %v1985, %v2238
      %v2271 = vadd.f32 %v1986, %v2239
      %v2272 = vadd.f32 %v1987, %v2240
      %v2273 = vadd.f32 %v1988, %v2241
      %v2274 = vadd.f32 %v1989, %v2242
      %v2275 = vadd.f32 %v1990, %v2243
      %v2276 = vadd.f32 %v1991, %v2244
      %v2277 = vadd.f32 %v1992, %v2245
      %v2278 = vadd.f32 %v1993, %v2246
      %v2279 = vadd.f32 %v1994, %v2247
      %v2280 = vadd.f32 %v1995, %v2248
      %v2281 = vadd.f32 %v1996, %v2249
      %v2282 = vadd.f32 %v1997, %v2250
      %v2283 = vadd.f32 %v1998, %v2251
      %v2284 = vadd.f32 %v1999, %v2252
      %v2285 = vadd.f32 %v2000, %v2253
      %v2286 = vadd.f32 %v2001, %v2254
      %v2287 = vadd.f32 %v2002, %v2255
      %v2288 = vadd.f32 %v2003, %v2256
      %v2289 = vadd.f32 %v2004, %v2257
      %v2290 = vadd.f32 %v2005, %v2258
      %v2291 = vadd.f32 %v2006, %v2259
      %v2292 = vadd.f32 %v2007, %v2260
      %v2293 = vadd.f32 %v2008, %v2261
      %v2294 = vadd.f32 %v2009, %v2262
      %v2295 = vadd.f32 %v2010, %v2263
      %v2296 = vadd.f32 %v2011, %v2264
      %v2297 = vadd.f32 %v2012, %v2265
      %v2298 = vadd.f32 %v2013, %v2266
      %v2299 = vadd.f32 %v2014, %v2267
      %v2300 = vadd.f32 %v2015, %v2268
      %v2301 = vadd.f32 %v2016, %v2269
      %v2302 = vlaneseq
      %v2303 = vshrl.u32 %v2302, 7
      %v2304 = vsub.s32 5, %v2303
      %v2305 = vrot.slane %v1383, %v2304
      %v2306 = vmul.f32 %v2200, %v2305
      %v2307 = vmul.f32 %v2201, %v2305
      %v2308 = vmul.f32 %v2202, %v2305
      %v2309 = vmul.f32 %v2203, %v2305
      %v2310 = vmul.f32 %v2204, %v2305
      %v2311 = vmul.f32 %v2205, %v2305
      %v2312 = vmul.f32 %v2206, %v2305
      %v2313 = vmul.f32 %v2207, %v2305
      %v2314 = vmul.f32 %v2208, %v2305
      %v2315 = vmul.f32 %v2209, %v2305
      %v2316 = vmul.f32 %v2210, %v2305
      %v2317 = vmul.f32 %v2211, %v2305
      %v2318 = vmul.f32 %v2212, %v2305
      %v2319 = vmul.f32 %v2213, %v2305
      %v2320 = vmul.f32 %v2214, %v2305
      %v2321 = vmul.f32 %v2215, %v2305
      %v2322 = vmul.f32 %v2216, %v2305
      %v2323 = vmul.f32 %v2217, %v2305
      %v2324 = vmul.f32 %v2218, %v2305
      %v2325 = vmul.f32 %v2219, %v2305
      %v2326 = vmul.f32 %v2220, %v2305
      %v2327 = vmul.f32 %v2221, %v2305
      %v2328 = vmul.f32 %v2222, %v2305
      %v2329 = vmul.f32 %v2223, %v2305
      %v2330 = vmul.f32 %v2224, %v2305
      %v2331 = vmul.f32 %v2225, %v2305
      %v2332 = vmul.f32 %v2226, %v2305
      %v2333 = vmul.f32 %v2227, %v2305
      %v2334 = vmul.f32 %v2228, %v2305
      %v2335 = vmul.f32 %v2229, %v2305
      %v2336 = vmul.f32 %v2230, %v2305
      %v2337 = vmul.f32 %v2231, %v2305
      %v2338 = vadd.f32 %v2270, %v2306
      %v2339 = vadd.f32 %v2271, %v2307
      %v2340 = vadd.f32 %v2272, %v2308
      %v2341 = vadd.f32 %v2273, %v2309
      %v2342 = vadd.f32 %v2274, %v2310
      %v2343 = vadd.f32 %v2275, %v2311
      %v2344 = vadd.f32 %v2276, %v2312
      %v2345 = vadd.f32 %v2277, %v2313
      %v2346 = vadd.f32 %v2278, %v2314
      %v2347 = vadd.f32 %v2279, %v2315
      %v2348 = vadd.f32 %v2280, %v2316
      %v2349 = vadd.f32 %v2281, %v2317
      %v2350 = vadd.f32 %v2282, %v2318
      %v2351 = vadd.f32 %v2283, %v2319
      %v2352 = vadd.f32 %v2284, %v2320
      %v2353 = vadd.f32 %v2285, %v2321
      %v2354 = vadd.f32 %v2286, %v2322
      %v2355 = vadd.f32 %v2287, %v2323
      %v2356 = vadd.f32 %v2288, %v2324
      %v2357 = vadd.f32 %v2289, %v2325
      %v2358 = vadd.f32 %v2290, %v2326
      %v2359 = vadd.f32 %v2291, %v2327
      %v2360 = vadd.f32 %v2292, %v2328
      %v2361 = vadd.f32 %v2293, %v2329
      %v2362 = vadd.f32 %v2294, %v2330
      %v2363 = vadd.f32 %v2295, %v2331
      %v2364 = vadd.f32 %v2296, %v2332
      %v2365 = vadd.f32 %v2297, %v2333
      %v2366 = vadd.f32 %v2298, %v2334
      %v2367 = vadd.f32 %v2299, %v2335
      %v2368 = vadd.f32 %v2300, %v2336
      %v2369 = vadd.f32 %v2301, %v2337
      %v2370 = vlaneseq
      %v2371 = vshrl.u32 %v2370, 7
      %v2372 = vsub.s32 0, %v2371
      %v2373 = vrot.slane %v1384, %v2372
      %v2374 = vmul.f32 %v2202, %v2373
      %v2375 = vmul.f32 %v2203, %v2373
      %v2376 = vmul.f32 %v2204, %v2373
      %v2377 = vmul.f32 %v2205, %v2373
      %v2378 = vmul.f32 %v2206, %v2373
      %v2379 = vmul.f32 %v2207, %v2373
      %v2380 = vmul.f32 %v2208, %v2373
      %v2381 = vmul.f32 %v2209, %v2373
      %v2382 = vmul.f32 %v2210, %v2373
      %v2383 = vmul.f32 %v2211, %v2373
      %v2384 = vmul.f32 %v2212, %v2373
      %v2385 = vmul.f32 %v2213, %v2373
      %v2386 = vmul.f32 %v2214, %v2373
      %v2387 = vmul.f32 %v2215, %v2373
      %v2388 = vmul.f32 %v2216, %v2373
      %v2389 = vmul.f32 %v2217, %v2373
      %v2390 = vmul.f32 %v2218, %v2373
      %v2391 = vmul.f32 %v2219, %v2373
      %v2392 = vmul.f32 %v2220, %v2373
      %v2393 = vmul.f32 %v2221, %v2373
      %v2394 = vmul.f32 %v2222, %v2373
      %v2395 = vmul.f32 %v2223, %v2373
      %v2396 = vmul.f32 %v2224, %v2373
      %v2397 = vmul.f32 %v2225, %v2373
      %v2398 = vmul.f32 %v2226, %v2373
      %v2399 = vmul.f32 %v2227, %v2373
      %v2400 = vmul.f32 %v2228, %v2373
      %v2401 = vmul.f32 %v2229, %v2373
      %v2402 = vmul.f32 %v2230, %v2373
      %v2403 = vmul.f32 %v2231, %v2373
      %v2404 = vmul.f32 %v2232, %v2373
      %v2405 = vmul.f32 %v2233, %v2373
      %v2406 = vadd.f32 %v2338, %v2374
      %v2407 = vadd.f32 %v2339, %v2375
      %v2408 = vadd.f32 %v2340, %v2376
      %v2409 = vadd.f32 %v2341, %v2377
      %v2410 = vadd.f32 %v2342, %v2378
      %v2411 = vadd.f32 %v2343, %v2379
      %v2412 = vadd.f32 %v2344, %v2380
      %v2413 = vadd.f32 %v2345, %v2381
      %v2414 = vadd.f32 %v2346, %v2382
      %v2415 = vadd.f32 %v2347, %v2383
      %v2416 = vadd.f32 %v2348, %v2384
      %v2417 = vadd.f32 %v2349, %v2385
      %v2418 = vadd.f32 %v2350, %v2386
      %v2419 = vadd.f32 %v2351, %v2387
      %v2420 = vadd.f32 %v2352, %v2388
      %v2421 = vadd.f32 %v2353, %v2389
      %v2422 = vadd.f32 %v2354, %v2390
      %v2423 = vadd.f32 %v2355, %v2391
      %v2424 = vadd.f32 %v2356, %v2392
      %v2425 = vadd.f32 %v2357, %v2393
      %v2426 = vadd.f32 %v2358, %v2394
      %v2427 = vadd.f32 %v2359, %v2395
      %v2428 = vadd.f32 %v2360, %v2396
      %v2429 = vadd.f32 %v2361, %v2397
      %v2430 = vadd.f32 %v2362, %v2398
      %v2431 = vadd.f32 %v2363, %v2399
      %v2432 = vadd.f32 %v2364, %v2400
      %v2433 = vadd.f32 %v2365, %v2401
      %v2434 = vadd.f32 %v2366, %v2402
      %v2435 = vadd.f32 %v2367, %v2403
      %v2436 = vadd.f32 %v2368, %v2404
      %v2437 = vadd.f32 %v2369, %v2405
      %v2438 = vmul.f32 %v2406, %v2406
      %v2439 = vmul.f32 %v2407, %v2407
      %v2440 = vmul.f32 %v2408, %v2408
      %v2441 = vmul.f32 %v2409, %v2409
      %v2442 = vmul.f32 %v2410, %v2410
      %v2443 = vmul.f32 %v2411, %v2411
      %v2444 = vmul.f32 %v2412, %v2412
      %v2445 = vmul.f32 %v2413, %v2413
      %v2446 = vmul.f32 %v2414, %v2414
      %v2447 = vmul.f32 %v2415, %v2415
      %v2448 = vmul.f32 %v2416, %v2416
      %v2449 = vmul.f32 %v2417, %v2417
      %v2450 = vmul.f32 %v2418, %v2418
      %v2451 = vmul.f32 %v2419, %v2419
      %v2452 = vmul.f32 %v2420, %v2420
      %v2453 = vmul.f32 %v2421, %v2421
      %v2454 = vmul.f32 %v2422, %v2422
      %v2455 = vmul.f32 %v2423, %v2423
      %v2456 = vmul.f32 %v2424, %v2424
      %v2457 = vmul.f32 %v2425, %v2425
      %v2458 = vmul.f32 %v2426, %v2426
      %v2459 = vmul.f32 %v2427, %v2427
      %v2460 = vmul.f32 %v2428, %v2428
      %v2461 = vmul.f32 %v2429, %v2429
      %v2462 = vmul.f32 %v2430, %v2430
      %v2463 = vmul.f32 %v2431, %v2431
      %v2464 = vmul.f32 %v2432, %v2432
      %v2465 = vmul.f32 %v2433, %v2433
      %v2466 = vmul.f32 %v2434, %v2434
      %v2467 = vmul.f32 %v2435, %v2435
      %v2468 = vmul.f32 %v2436, %v2436
      %v2469 = vmul.f32 %v2437, %v2437
      %v2470 = vmul.f32 %v2406, %v2438
      %v2471 = vmul.f32 %v2407, %v2439
      %v2472 = vmul.f32 %v2408, %v2440
      %v2473 = vmul.f32 %v2409, %v2441
      %v2474 = vmul.f32 %v2410, %v2442
      %v2475 = vmul.f32 %v2411, %v2443
      %v2476 = vmul.f32 %v2412, %v2444
      %v2477 = vmul.f32 %v2413, %v2445
      %v2478 = vmul.f32 %v2414, %v2446
      %v2479 = vmul.f32 %v2415, %v2447
      %v2480 = vmul.f32 %v2416, %v2448
      %v2481 = vmul.f32 %v2417, %v2449
      %v2482 = vmul.f32 %v2418, %v2450
      %v2483 = vmul.f32 %v2419, %v2451
      %v2484 = vmul.f32 %v2420, %v2452
      %v2485 = vmul.f32 %v2421, %v2453
      %v2486 = vmul.f32 %v2422, %v2454
      %v2487 = vmul.f32 %v2423, %v2455
      %v2488 = vmul.f32 %v2424, %v2456
      %v2489 = vmul.f32 %v2425, %v2457
      %v2490 = vmul.f32 %v2426, %v2458
      %v2491 = vmul.f32 %v2427, %v2459
      %v2492 = vmul.f32 %v2428, %v2460
      %v2493 = vmul.f32 %v2429, %v2461
      %v2494 = vmul.f32 %v2430, %v2462
      %v2495 = vmul.f32 %v2431, %v2463
      %v2496 = vmul.f32 %v2432, %v2464
      %v2497 = vmul.f32 %v2433, %v2465
      %v2498 = vmul.f32 %v2434, %v2466
      %v2499 = vmul.f32 %v2435, %v2467
      %v2500 = vmul.f32 %v2436, %v2468
      %v2501 = vmul.f32 %v2437, %v2469
      %v2502 = vmul.f32 %v2470, 0.044715
      %v2503 = vmul.f32 %v2471, 0.044715
      %v2504 = vmul.f32 %v2472, 0.044715
      %v2505 = vmul.f32 %v2473, 0.044715
      %v2506 = vmul.f32 %v2474, 0.044715
      %v2507 = vmul.f32 %v2475, 0.044715
      %v2508 = vmul.f32 %v2476, 0.044715
      %v2509 = vmul.f32 %v2477, 0.044715
      %v2510 = vmul.f32 %v2478, 0.044715
      %v2511 = vmul.f32 %v2479, 0.044715
      %v2512 = vmul.f32 %v2480, 0.044715
      %v2513 = vmul.f32 %v2481, 0.044715
      %v2514 = vmul.f32 %v2482, 0.044715
      %v2515 = vmul.f32 %v2483, 0.044715
      %v2516 = vmul.f32 %v2484, 0.044715
      %v2517 = vmul.f32 %v2485, 0.044715
      %v2518 = vmul.f32 %v2486, 0.044715
      %v2519 = vmul.f32 %v2487, 0.044715
      %v2520 = vmul.f32 %v2488, 0.044715
      %v2521 = vmul.f32 %v2489, 0.044715
      %v2522 = vmul.f32 %v2490, 0.044715
      %v2523 = vmul.f32 %v2491, 0.044715
      %v2524 = vmul.f32 %v2492, 0.044715
      %v2525 = vmul.f32 %v2493, 0.044715
      %v2526 = vmul.f32 %v2494, 0.044715
      %v2527 = vmul.f32 %v2495, 0.044715
      %v2528 = vmul.f32 %v2496, 0.044715
      %v2529 = vmul.f32 %v2497, 0.044715
      %v2530 = vmul.f32 %v2498, 0.044715
      %v2531 = vmul.f32 %v2499, 0.044715
      %v2532 = vmul.f32 %v2500, 0.044715
      %v2533 = vmul.f32 %v2501, 0.044715
      %v2534 = vadd.f32 %v2406, %v2502
      %v2535 = vadd.f32 %v2407, %v2503
      %v2536 = vadd.f32 %v2408, %v2504
      %v2537 = vadd.f32 %v2409, %v2505
      %v2538 = vadd.f32 %v2410, %v2506
      %v2539 = vadd.f32 %v2411, %v2507
      %v2540 = vadd.f32 %v2412, %v2508
      %v2541 = vadd.f32 %v2413, %v2509
      %v2542 = vadd.f32 %v2414, %v2510
      %v2543 = vadd.f32 %v2415, %v2511
      %v2544 = vadd.f32 %v2416, %v2512
      %v2545 = vadd.f32 %v2417, %v2513
      %v2546 = vadd.f32 %v2418, %v2514
      %v2547 = vadd.f32 %v2419, %v2515
      %v2548 = vadd.f32 %v2420, %v2516
      %v2549 = vadd.f32 %v2421, %v2517
      %v2550 = vadd.f32 %v2422, %v2518
      %v2551 = vadd.f32 %v2423, %v2519
      %v2552 = vadd.f32 %v2424, %v2520
      %v2553 = vadd.f32 %v2425, %v2521
      %v2554 = vadd.f32 %v2426, %v2522
      %v2555 = vadd.f32 %v2427, %v2523
      %v2556 = vadd.f32 %v2428, %v2524
      %v2557 = vadd.f32 %v2429, %v2525
      %v2558 = vadd.f32 %v2430, %v2526
      %v2559 = vadd.f32 %v2431, %v2527
      %v2560 = vadd.f32 %v2432, %v2528
      %v2561 = vadd.f32 %v2433, %v2529
      %v2562 = vadd.f32 %v2434, %v2530
      %v2563 = vadd.f32 %v2435, %v2531
      %v2564 = vadd.f32 %v2436, %v2532
      %v2565 = vadd.f32 %v2437, %v2533
      %v2566 = vmul.f32 %v2534, 0.7978846
      %v2567 = vmul.f32 %v2535, 0.7978846
      %v2568 = vmul.f32 %v2536, 0.7978846
      %v2569 = vmul.f32 %v2537, 0.7978846
      %v2570 = vmul.f32 %v2538, 0.7978846
      %v2571 = vmul.f32 %v2539, 0.7978846
      %v2572 = vmul.f32 %v2540, 0.7978846
      %v2573 = vmul.f32 %v2541, 0.7978846
      %v2574 = vmul.f32 %v2542, 0.7978846
      %v2575 = vmul.f32 %v2543, 0.7978846
      %v2576 = vmul.f32 %v2544, 0.7978846
      %v2577 = vmul.f32 %v2545, 0.7978846
      %v2578 = vmul.f32 %v2546, 0.7978846
      %v2579 = vmul.f32 %v2547, 0.7978846
      %v2580 = vmul.f32 %v2548, 0.7978846
      %v2581 = vmul.f32 %v2549, 0.7978846
      %v2582 = vmul.f32 %v2550, 0.7978846
      %v2583 = vmul.f32 %v2551, 0.7978846
      %v2584 = vmul.f32 %v2552, 0.7978846
      %v2585 = vmul.f32 %v2553, 0.7978846
      %v2586 = vmul.f32 %v2554, 0.7978846
      %v2587 = vmul.f32 %v2555, 0.7978846
      %v2588 = vmul.f32 %v2556, 0.7978846
      %v2589 = vmul.f32 %v2557, 0.7978846
      %v2590 = vmul.f32 %v2558, 0.7978846
      %v2591 = vmul.f32 %v2559, 0.7978846
      %v2592 = vmul.f32 %v2560, 0.7978846
      %v2593 = vmul.f32 %v2561, 0.7978846
      %v2594 = vmul.f32 %v2562, 0.7978846
      %v2595 = vmul.f32 %v2563, 0.7978846
      %v2596 = vmul.f32 %v2564, 0.7978846
      %v2597 = vmul.f32 %v2565, 0.7978846
      %v2598 = vtanh.pop %v2566
      %v2599 = vtanh.pop %v2567
      %v2600 = vtanh.pop %v2568
      %v2601 = vtanh.pop %v2569
      %v2602 = vtanh.pop %v2570
      %v2603 = vtanh.pop %v2571
      %v2604 = vtanh.pop %v2572
      %v2605 = vtanh.pop %v2573
      %v2606 = vtanh.pop %v2574
      %v2607 = vtanh.pop %v2575
      %v2608 = vtanh.pop %v2576
      %v2609 = vtanh.pop %v2577
      %v2610 = vtanh.pop %v2578
      %v2611 = vtanh.pop %v2579
      %v2612 = vtanh.pop %v2580
      %v2613 = vtanh.pop %v2581
      %v2614 = vtanh.pop %v2582
      %v2615 = vtanh.pop %v2583
      %v2616 = vtanh.pop %v2584
      %v2617 = vtanh.pop %v2585
      %v2618 = vtanh.pop %v2586
      %v2619 = vtanh.pop %v2587
      %v2620 = vtanh.pop %v2588
      %v2621 = vtanh.pop %v2589
      %v2622 = vtanh.pop %v2590
      %v2623 = vtanh.pop %v2591
      %v2624 = vtanh.pop %v2592
      %v2625 = vtanh.pop %v2593
      %v2626 = vtanh.pop %v2594
      %v2627 = vtanh.pop %v2595
      %v2628 = vtanh.pop %v2596
      %v2629 = vtanh.pop %v2597
      %v2630 = vadd.f32 %v2598, 1.0
      %v2631 = vadd.f32 %v2599, 1.0
      %v2632 = vadd.f32 %v2600, 1.0
      %v2633 = vadd.f32 %v2601, 1.0
      %v2634 = vadd.f32 %v2602, 1.0
      %v2635 = vadd.f32 %v2603, 1.0
      %v2636 = vadd.f32 %v2604, 1.0
      %v2637 = vadd.f32 %v2605, 1.0
      %v2638 = vadd.f32 %v2606, 1.0
      %v2639 = vadd.f32 %v2607, 1.0
      %v2640 = vadd.f32 %v2608, 1.0
      %v2641 = vadd.f32 %v2609, 1.0
      %v2642 = vadd.f32 %v2610, 1.0
      %v2643 = vadd.f32 %v2611, 1.0
      %v2644 = vadd.f32 %v2612, 1.0
      %v2645 = vadd.f32 %v2613, 1.0
      %v2646 = vadd.f32 %v2614, 1.0
      %v2647 = vadd.f32 %v2615, 1.0
      %v2648 = vadd.f32 %v2616, 1.0
      %v2649 = vadd.f32 %v2617, 1.0
      %v2650 = vadd.f32 %v2618, 1.0
      %v2651 = vadd.f32 %v2619, 1.0
      %v2652 = vadd.f32 %v2620, 1.0
      %v2653 = vadd.f32 %v2621, 1.0
      %v2654 = vadd.f32 %v2622, 1.0
      %v2655 = vadd.f32 %v2623, 1.0
      %v2656 = vadd.f32 %v2624, 1.0
      %v2657 = vadd.f32 %v2625, 1.0
      %v2658 = vadd.f32 %v2626, 1.0
      %v2659 = vadd.f32 %v2627, 1.0
      %v2660 = vadd.f32 %v2628, 1.0
      %v2661 = vadd.f32 %v2629, 1.0
      %v2662 = vmul.f32 %v2630, 0.5
      %v2663 = vmul.f32 %v2631, 0.5
      %v2664 = vmul.f32 %v2632, 0.5
      %v2665 = vmul.f32 %v2633, 0.5
      %v2666 = vmul.f32 %v2634, 0.5
      %v2667 = vmul.f32 %v2635, 0.5
      %v2668 = vmul.f32 %v2636, 0.5
      %v2669 = vmul.f32 %v2637, 0.5
      %v2670 = vmul.f32 %v2638, 0.5
      %v2671 = vmul.f32 %v2639, 0.5
      %v2672 = vmul.f32 %v2640, 0.5
      %v2673 = vmul.f32 %v2641, 0.5
      %v2674 = vmul.f32 %v2642, 0.5
      %v2675 = vmul.f32 %v2643, 0.5
      %v2676 = vmul.f32 %v2644, 0.5
      %v2677 = vmul.f32 %v2645, 0.5
      %v2678 = vmul.f32 %v2646, 0.5
      %v2679 = vmul.f32 %v2647, 0.5
      %v2680 = vmul.f32 %v2648, 0.5
      %v2681 = vmul.f32 %v2649, 0.5
      %v2682 = vmul.f32 %v2650, 0.5
      %v2683 = vmul.f32 %v2651, 0.5
      %v2684 = vmul.f32 %v2652, 0.5
      %v2685 = vmul.f32 %v2653, 0.5
      %v2686 = vmul.f32 %v2654, 0.5
      %v2687 = vmul.f32 %v2655, 0.5
      %v2688 = vmul.f32 %v2656, 0.5
      %v2689 = vmul.f32 %v2657, 0.5
      %v2690 = vmul.f32 %v2658, 0.5
      %v2691 = vmul.f32 %v2659, 0.5
      %v2692 = vmul.f32 %v2660, 0.5
      %v2693 = vmul.f32 %v2661, 0.5
      %v2694 = vmul.f32 %v2406, %v2662
      %v2695 = vmul.f32 %v2407, %v2663
      %v2696 = vmul.f32 %v2408, %v2664
      %v2697 = vmul.f32 %v2409, %v2665
      %v2698 = vmul.f32 %v2410, %v2666
      %v2699 = vmul.f32 %v2411, %v2667
      %v2700 = vmul.f32 %v2412, %v2668
      %v2701 = vmul.f32 %v2413, %v2669
      %v2702 = vmul.f32 %v2414, %v2670
      %v2703 = vmul.f32 %v2415, %v2671
      %v2704 = vmul.f32 %v2416, %v2672
      %v2705 = vmul.f32 %v2417, %v2673
      %v2706 = vmul.f32 %v2418, %v2674
      %v2707 = vmul.f32 %v2419, %v2675
      %v2708 = vmul.f32 %v2420, %v2676
      %v2709 = vmul.f32 %v2421, %v2677
      %v2710 = vmul.f32 %v2422, %v2678
      %v2711 = vmul.f32 %v2423, %v2679
      %v2712 = vmul.f32 %v2424, %v2680
      %v2713 = vmul.f32 %v2425, %v2681
      %v2714 = vmul.f32 %v2426, %v2682
      %v2715 = vmul.f32 %v2427, %v2683
      %v2716 = vmul.f32 %v2428, %v2684
      %v2717 = vmul.f32 %v2429, %v2685
      %v2718 = vmul.f32 %v2430, %v2686
      %v2719 = vmul.f32 %v2431, %v2687
      %v2720 = vmul.f32 %v2432, %v2688
      %v2721 = vmul.f32 %v2433, %v2689
      %v2722 = vmul.f32 %v2434, %v2690
      %v2723 = vmul.f32 %v2435, %v2691
      %v2724 = vmul.f32 %v2436, %v2692
      %v2725 = vmul.f32 %v2437, %v2693
      %v2726 = vpack.c.bf16 %v2695, %v2694
      %v2727 = vpack.c.bf16 %v2697, %v2696
      %v2728 = vpack.c.bf16 %v2699, %v2698
      %v2729 = vpack.c.bf16 %v2701, %v2700
      %v2730 = vpack.c.bf16 %v2703, %v2702
      %v2731 = vpack.c.bf16 %v2705, %v2704
      %v2732 = vpack.c.bf16 %v2707, %v2706
      %v2733 = vpack.c.bf16 %v2709, %v2708
      %v2734 = vpack.c.bf16 %v2711, %v2710
      %v2735 = vpack.c.bf16 %v2713, %v2712
      %v2736 = vpack.c.bf16 %v2715, %v2714
      %v2737 = vpack.c.bf16 %v2717, %v2716
      %v2738 = vpack.c.bf16 %v2719, %v2718
      %v2739 = vpack.c.bf16 %v2721, %v2720
      %v2740 = vpack.c.bf16 %v2723, %v2722
      %v2741 = vpack.c.bf16 %v2725, %v2724
      %v2742 = vld [vmem:[%s5] sm:$0xf]
      %v2743 = vld [vmem:[%s5 + $0x4] sm:$0xf]
      %v2744 = vld [vmem:[%s5 + $0x8] sm:$0xf]
      %v2745 = vld [vmem:[%s5 + $0xc] sm:$0xf]
      %v2746 = vld [vmem:[%s5 + $0x10] sm:$0xf]
      %v2747 = vld [vmem:[%s5 + $0x14] sm:$0xf]
      %v2748 = vld [vmem:[%s5 + $0x18] sm:$0xf]
      %v2749 = vld [vmem:[%s5 + $0x1c] sm:$0xf]
      %v2750 = vld [vmem:[%s5 + $0x20] sm:$0xf]
      %v2751 = vld [vmem:[%s5 + $0x24] sm:$0xf]
      %v2752 = vld [vmem:[%s5 + $0x28] sm:$0xf]
      %v2753 = vld [vmem:[%s5 + $0x2c] sm:$0xf]
      %v2754 = vld [vmem:[%s5 + $0x30] sm:$0xf]
      %v2755 = vld [vmem:[%s5 + $0x34] sm:$0xf]
      %v2756 = vld [vmem:[%s5 + $0x38] sm:$0xf]
      %v2757 = vld [vmem:[%s5 + $0x3c] sm:$0xf]
      %v2758 = vld [vmem:[%s6] sm:$0x1]
      %v2760 = vlaneseq
      %v2761 = vshrl.u32 %v2760, 7
      %v2762 = vsub.s32 0, %v2761
      %v2763 = vrot.slane %v2758, %v2762
      %v2781 = vunpack.c.l.b16 %v2742
      %v2782 = vunpack.c.l.b16 %v2743
      %v2783 = vunpack.c.l.b16 %v2744
      %v2784 = vunpack.c.l.b16 %v2745
      %v2785 = vunpack.c.l.b16 %v2746
      %v2786 = vunpack.c.l.b16 %v2747
      %v2787 = vunpack.c.l.b16 %v2748
      %v2788 = vunpack.c.l.b16 %v2749
      %v2789 = vunpack.c.l.b16 %v2750
      %v2790 = vunpack.c.l.b16 %v2751
      %v2791 = vunpack.c.l.b16 %v2752
      %v2792 = vunpack.c.l.b16 %v2753
      %v2793 = vunpack.c.l.b16 %v2754
      %v2794 = vunpack.c.l.b16 %v2755
      %v2795 = vunpack.c.l.b16 %v2756
      %v2796 = vunpack.c.l.b16 %v2757
      %v2797 = vpack.c.b16 %v2782, %v2781
      %v2798 = vpack.c.b16 %v2784, %v2783
      %v2799 = vpack.c.b16 %v2786, %v2785
      %v2800 = vpack.c.b16 %v2788, %v2787
      %v2801 = vpack.c.b16 %v2790, %v2789
      %v2802 = vpack.c.b16 %v2792, %v2791
      %v2803 = vpack.c.b16 %v2794, %v2793
      %v2804 = vpack.c.b16 %v2796, %v2795
      %2813 = vmatprep.subr.bf16.mxu0 0
      %2814 = vmatpush1.bf16.msra.mxu0 %v2797
      %2815 = vmatprep.subr.bf16.mxu0 0
      %2816 = vmatpush1.bf16.msra.mxu0 %v2798
      %2817 = vmatprep.subr.bf16.mxu0 0
      %2818 = vmatpush1.bf16.msra.mxu0 %v2799
      %2819 = vmatprep.subr.bf16.mxu0 0
      %2820 = vmatpush1.bf16.msra.mxu0 %v2800
      %2821 = vmatprep.subr.bf16.mxu0 0
      %2822 = vmatpush1.bf16.msra.mxu0 %v2801
      %2823 = vmatprep.subr.bf16.mxu0 0
      %2824 = vmatpush1.bf16.msra.mxu0 %v2802
      %2825 = vmatprep.subr.bf16.mxu0 0
      %2826 = vmatpush1.bf16.msra.mxu0 %v2803
      %2827 = vmatprep.subr.bf16.mxu0 0
      %2828 = vmatpush1.bf16.msra.mxu0 %v2804
      %2829 = vmatprep.subr.bf16.mxu0 0
      %2830 = vmatpush1.bf16.msra.mxu0 0
      %2831 = vmatprep.subr.bf16.mxu0 0
      %2832 = vmatpush1.bf16.msra.mxu0 0
      %2833 = vmatprep.subr.bf16.mxu0 0
      %2834 = vmatpush1.bf16.msra.mxu0 0
      %2835 = vmatprep.subr.bf16.mxu0 0
      %2836 = vmatpush1.bf16.msra.mxu0 0
      %2837 = vmatprep.subr.bf16.mxu0 0
      %2838 = vmatpush1.bf16.msra.mxu0 0
      %2839 = vmatprep.subr.bf16.mxu0 0
      %2840 = vmatpush1.bf16.msra.mxu0 0
      %2841 = vmatprep.subr.bf16.mxu0 0
      %2842 = vmatpush1.bf16.msra.mxu0 0
      %2843 = vmatprep.subr.bf16.mxu0 0
      %2844 = vmatpush1.bf16.msra.mxu0 0
      %2845 = vmatprep.mubr.bf16.mxu0 0
      %2846 = vmatmul.mubr.bf16.gmra.mrb[0].mxu0 %v2726
      %v2847 = vpop.f32.mrb[0].mxu0
      %v2848 = vadd.f32 %v2763, %v2847
      %v2849 = vpop.f32.mrb[0].mxu0
      %v2850 = vpop.f32.mrb[0].mxu0
      %v2851 = vadd.f32 %v2763, %v2850
      %v2852 = vpop.f32.mrb[0].mxu0
      %2853 = vmatprep.mubr.bf16.mxu0 0
      %2854 = vmatmul.mubr.bf16.gmra.mrb[0].mxu0 %v2727
      %v2855 = vpop.f32.mrb[0].mxu0
      %v2856 = vadd.f32 %v2763, %v2855
      %v2857 = vpop.f32.mrb[0].mxu0
      %v2858 = vpop.f32.mrb[0].mxu0
      %v2859 = vadd.f32 %v2763, %v2858
      %v2860 = vpop.f32.mrb[0].mxu0
      %2861 = vmatprep.mubr.bf16.mxu0 0
      %2862 = vmatmul.mubr.bf16.gmra.mrb[0].mxu0 %v2728
      %v2863 = vpop.f32.mrb[0].mxu0
      %v2864 = vadd.f32 %v2763, %v2863
      %v2865 = vpop.f32.mrb[0].mxu0
      %v2866 = vpop.f32.mrb[0].mxu0
      %v2867 = vadd.f32 %v2763, %v2866
      %v2868 = vpop.f32.mrb[0].mxu0
      %2869 = vmatprep.mubr.bf16.mxu0 0
      %2870 = vmatmul.mubr.bf16.gmra.mrb[0].mxu0 %v2729
      %v2871 = vpop.f32.mrb[0].mxu0
      %v2872 = vadd.f32 %v2763, %v2871
      %v2873 = vpop.f32.mrb[0].mxu0
      %v2874 = vpop.f32.mrb[0].mxu0
      %v2875 = vadd.f32 %v2763, %v2874
      %v2876 = vpop.f32.mrb[0].mxu0
      %2877 = vmatprep.mubr.bf16.mxu0 0
      %2878 = vmatmul.mubr.bf16.gmra.mrb[0].mxu0 %v2730
      %v2879 = vpop.f32.mrb[0].mxu0
      %v2880 = vadd.f32 %v2763, %v2879
      %v2881 = vpop.f32.mrb[0].mxu0
      %v2882 = vpop.f32.mrb[0].mxu0
      %v2883 = vadd.f32 %v2763, %v2882
      %v2884 = vpop.f32.mrb[0].mxu0
      %2885 = vmatprep.mubr.bf16.mxu0 0
      %2886 = vmatmul.mubr.bf16.gmra.mrb[0].mxu0 %v2731
      %v2887 = vpop.f32.mrb[0].mxu0
      %v2888 = vadd.f32 %v2763, %v2887
      %v2889 = vpop.f32.mrb[0].mxu0
      %v2890 = vpop.f32.mrb[0].mxu0
      %v2891 = vadd.f32 %v2763, %v2890
      %v2892 = vpop.f32.mrb[0].mxu0
      %2893 = vmatprep.mubr.bf16.mxu0 0
      %2894 = vmatmul.mubr.bf16.gmra.mrb[0].mxu0 %v2732
      %v2895 = vpop.f32.mrb[0].mxu0
      %v2896 = vadd.f32 %v2763, %v2895
      %v2897 = vpop.f32.mrb[0].mxu0
      %v2898 = vpop.f32.mrb[0].mxu0
      %v2899 = vadd.f32 %v2763, %v2898
      %v2900 = vpop.f32.mrb[0].mxu0
      %2901 = vmatprep.mubr.bf16.mxu0 0
      %2902 = vmatmul.mubr.bf16.gmra.mrb[0].mxu0 %v2733
      %v2903 = vpop.f32.mrb[0].mxu0
      %v2904 = vadd.f32 %v2763, %v2903
      %v2905 = vpop.f32.mrb[0].mxu0
      %v2906 = vpop.f32.mrb[0].mxu0
      %v2907 = vadd.f32 %v2763, %v2906
      %v2908 = vpop.f32.mrb[0].mxu0
      %2909 = vmatprep.mubr.bf16.mxu0 0
      %2910 = vmatmul.mubr.bf16.gmra.mrb[0].mxu0 %v2734
      %v2911 = vpop.f32.mrb[0].mxu0
      %v2912 = vadd.f32 %v2763, %v2911
      %v2913 = vpop.f32.mrb[0].mxu0
      %v2914 = vpop.f32.mrb[0].mxu0
      %v2915 = vadd.f32 %v2763, %v2914
      %v2916 = vpop.f32.mrb[0].mxu0
      %2917 = vmatprep.mubr.bf16.mxu0 0
      %2918 = vmatmul.mubr.bf16.gmra.mrb[0].mxu0 %v2735
      %v2919 = vpop.f32.mrb[0].mxu0
      %v2920 = vadd.f32 %v2763, %v2919
      %v2921 = vpop.f32.mrb[0].mxu0
      %v2922 = vpop.f32.mrb[0].mxu0
      %v2923 = vadd.f32 %v2763, %v2922
      %v2924 = vpop.f32.mrb[0].mxu0
      %2925 = vmatprep.mubr.bf16.mxu0 0
      %2926 = vmatmul.mubr.bf16.gmra.mrb[0].mxu0 %v2736
      %v2927 = vpop.f32.mrb[0].mxu0
      %v2928 = vadd.f32 %v2763, %v2927
      %v2929 = vpop.f32.mrb[0].mxu0
      %v2930 = vpop.f32.mrb[0].mxu0
      %v2931 = vadd.f32 %v2763, %v2930
      %v2932 = vpop.f32.mrb[0].mxu0
      %2933 = vmatprep.mubr.bf16.mxu0 0
      %2934 = vmatmul.mubr.bf16.gmra.mrb[0].mxu0 %v2737
      %v2935 = vpop.f32.mrb[0].mxu0
      %v2936 = vadd.f32 %v2763, %v2935
      %v2937 = vpop.f32.mrb[0].mxu0
      %v2938 = vpop.f32.mrb[0].mxu0
      %v2939 = vadd.f32 %v2763, %v2938
      %v2940 = vpop.f32.mrb[0].mxu0
      %2941 = vmatprep.mubr.bf16.mxu0 0
      %2942 = vmatmul.mubr.bf16.gmra.mrb[0].mxu0 %v2738
      %v2943 = vpop.f32.mrb[0].mxu0
      %v2944 = vadd.f32 %v2763, %v2943
      %v2945 = vpop.f32.mrb[0].mxu0
      %v2946 = vpop.f32.mrb[0].mxu0
      %v2947 = vadd.f32 %v2763, %v2946
      %v2948 = vpop.f32.mrb[0].mxu0
      %2949 = vmatprep.mubr.bf16.mxu0 0
      %2950 = vmatmul.mubr.bf16.gmra.mrb[0].mxu0 %v2739
      %v2951 = vpop.f32.mrb[0].mxu0
      %v2952 = vadd.f32 %v2763, %v2951
      %v2953 = vpop.f32.mrb[0].mxu0
      %v2954 = vpop.f32.mrb[0].mxu0
      %v2955 = vadd.f32 %v2763, %v2954
      %v2956 = vpop.f32.mrb[0].mxu0
      %2957 = vmatprep.mubr.bf16.mxu0 0
      %2958 = vmatmul.mubr.bf16.gmra.mrb[0].mxu0 %v2740
      %v2959 = vpop.f32.mrb[0].mxu0
      %v2960 = vadd.f32 %v2763, %v2959
      %v2961 = vpop.f32.mrb[0].mxu0
      %v2962 = vpop.f32.mrb[0].mxu0
      %v2963 = vadd.f32 %v2763, %v2962
      %v2964 = vpop.f32.mrb[0].mxu0
      %2965 = vmatprep.mubr.bf16.mxu0 0
      %2966 = vmatmul.mubr.bf16.gmra.mrb[0].mxu0 %v2741
      %v2967 = vpop.f32.mrb[0].mxu0
      %v2968 = vadd.f32 %v2763, %v2967
      %v2969 = vpop.f32.mrb[0].mxu0
      %v2970 = vpop.f32.mrb[0].mxu0
      %v2971 = vadd.f32 %v2763, %v2970
      %v2972 = vpop.f32.mrb[0].mxu0
      %2973 = vdwg.mxu0
      %2974 = vst.msk [vmem:[%s300] sm:$0xff] %vm385, %v2848
      %2975 = vst.msk [vmem:[%s300 + $0x8] sm:$0xff] %vm385, %v2851
      %2976 = vst.msk [vmem:[%s300 + $0x10] sm:$0xff] %vm385, %v2856
      %2977 = vst.msk [vmem:[%s300 + $0x18] sm:$0xff] %vm385, %v2859
      %2978 = vst.msk [vmem:[%s300 + $0x20] sm:$0xff] %vm385, %v2864
      %2979 = vst.msk [vmem:[%s300 + $0x28] sm:$0xff] %vm385, %v2867
      %2980 = vst.msk [vmem:[%s300 + $0x30] sm:$0xff] %vm385, %v2872
      %2981 = vst.msk [vmem:[%s300 + $0x38] sm:$0xff] %vm385, %v2875
      %2982 = vst.msk [vmem:[%s300 + $0x40] sm:$0xff] %vm385, %v2880
      %2983 = vst.msk [vmem:[%s300 + $0x48] sm:$0xff] %vm385, %v2883
      %2984 = vst.msk [vmem:[%s300 + $0x50] sm:$0xff] %vm385, %v2888
      %2985 = vst.msk [vmem:[%s300 + $0x58] sm:$0xff] %vm385, %v2891
      %2986 = vst.msk [vmem:[%s300 + $0x60] sm:$0xff] %vm385, %v2896
      %2987 = vst.msk [vmem:[%s300 + $0x68] sm:$0xff] %vm385, %v2899
      %2988 = vst.msk [vmem:[%s300 + $0x70] sm:$0xff] %vm385, %v2904
      %2989 = vst.msk [vmem:[%s300 + $0x78] sm:$0xff] %vm385, %v2907
      %2990 = vst.msk [vmem:[%s300 + $0x80] sm:$0xff] %vm385, %v2912
      %2991 = vst.msk [vmem:[%s300 + $0x88] sm:$0xff] %vm385, %v2915
      %2992 = vst.msk [vmem:[%s300 + $0x90] sm:$0xff] %vm385, %v2920
      %2993 = vst.msk [vmem:[%s300 + $0x98] sm:$0xff] %vm385, %v2923
      %2994 = vst.msk [vmem:[%s300 + $0xa0] sm:$0xff] %vm385, %v2928
      %2995 = vst.msk [vmem:[%s300 + $0xa8] sm:$0xff] %vm385, %v2931
      %2996 = vst.msk [vmem:[%s300 + $0xb0] sm:$0xff] %vm385, %v2936
      %2997 = vst.msk [vmem:[%s300 + $0xb8] sm:$0xff] %vm385, %v2939
      %2998 = vst.msk [vmem:[%s300 + $0xc0] sm:$0xff] %vm385, %v2944
      %2999 = vst.msk [vmem:[%s300 + $0xc8] sm:$0xff] %vm385, %v2947
      %3000 = vst.msk [vmem:[%s300 + $0xd0] sm:$0xff] %vm385, %v2952
      %3001 = vst.msk [vmem:[%s300 + $0xd8] sm:$0xff] %vm385, %v2955
      %3002 = vst.msk [vmem:[%s300 + $0xe0] sm:$0xff] %vm385, %v2960
      %3003 = vst.msk [vmem:[%s300 + $0xe8] sm:$0xff] %vm385, %v2963
      %3004 = vst.msk [vmem:[%s300 + $0xf0] sm:$0xff] %vm385, %v2968
      %3005 = vst.msk [vmem:[%s300 + $0xf8] sm:$0xff] %vm385, %v2971
      %s3006 = smul.u32 32, %s23
      %p3007 = scmp.lt.s32.totalorder %s22, 1
      %s3008 = scalar_select %p3007, %s22, 1
      %p3009 = scmp.lt.s32.totalorder %s3006, 31
      %s3010 = scalar_select %p3009, %s3006, 31
      %s3011 = smul.addr %s3008, 32
      %s3012 = sadd.s32 %s3010, %s3011
      %s3013 = smul.addr %s3012, 8
      %s3014 = scalar_lea.vmem %s7, %s3013
      // Predicated region
      $region49: #{tpu_custom_call.1} parent=47 // pred_check
        %p3015 = pneg %p202
      $region50: #{tpu_custom_call.1} parent=47 // pred_check_branch
        %3017 = sbr.rel (%p3015) target = $region52
      $region51: #{tpu_custom_call.1} parent=47 // pred_region
        %s3018 = smul.u32 32, %s23
      $region52: #{tpu_custom_call.1} parent=47 // pred_fallthru
        _
    $region48: #{tpu_custom_call.1} parent=5 // pred_fallthru
      _
    %p3019 = scmp.le.s32.totalorder 2, %s13
    // Predicated region
    $region53: #{tpu_custom_call.1} parent=5 // pred_check
      %p3020 = pneg %p3019
    $region54: #{tpu_custom_call.1} parent=5 // pred_check_branch
      %3022 = sbr.rel (%p3020) target = $region56
    $region55: #{tpu_custom_call.1} parent=5 // pred_region
      %s3023 = ssub.s32 %s13, 2
      // Predicated region
      $region57: #{tpu_custom_call.1} parent=55 // pred_check
        %p3024 = pneg %p208
      $region58: #{tpu_custom_call.1} parent=55 // pred_check_branch
        %3026 = sbr.rel (%p3024) target = $region60
      $region59: #{tpu_custom_call.1} parent=55 // pred_region
        %s3027 = smul.u32 32, %s25
        %p3028 = scmp.lt.s32.totalorder %s24, 1
        %s3029 = scalar_select %p3028, %s24, 1
        %p3030 = scmp.lt.s32.totalorder %s3027, 31
        %s3031 = scalar_select %p3030, %s3027, 31
        %s3032 = smul.addr %s3029, 32
        %s3033 = sadd.s32 %s3031, %s3032
        %s3034 = smul.addr %s3033, 8
        %s3035 = scalar_lea.vmem %s7, %s3034
      $region60: #{tpu_custom_call.1} parent=55 // pred_fallthru
        _
    $region56: #{tpu_custom_call.1} parent=5 // pred_fallthru
      _
  $region6: #{tpu_custom_call.1} parent=0 // loop_footer
    %s17 = sadd.s32 1, %s13
  $region7: #{tpu_custom_call.1} parent=0 // loop_footer_branch
    %12 = sbr.rel target = $region3
  $region8: #{tpu_custom_call.1} parent=0 // loop_exit
    _

</llo_original>
